<compile_context>
chip_gen: v6e
topology: v6e:2x2x1
jax: 0.10.0
libtpu: 0.0.40
codegen_flags: <defaults>
</compile_context>

<pallas_src>
import functools

import jax
import jax.numpy as jnp
from jax import lax
from jax.experimental import pallas as pl
from jax.experimental.pallas import tpu as pltpu


# ----------------------------- kernel helpers ------------------------------

def _layernorm(x, w, b, eps=1e-5):
    # LayerNorm over the last axis (biased variance), matches nn.LayerNorm.
    mu = jnp.mean(x, axis=-1, keepdims=True)
    var = jnp.mean((x - mu) ** 2, axis=-1, keepdims=True)
    return (x - mu) * lax.rsqrt(var + eps) * w + b


# ------------------------------- the kernel --------------------------------

def perceiver_attention_kernel(
    x_ref,        # (Bb, n_x, C) f32   conditioning tokens (block of batches)
    lat_ref,      # (Bb, n_l, C) f32   latents
    nxw_ref,      # (1, C)  norm_x weight
    nxb_ref,      # (1, C)  norm_x bias
    nlw_ref,      # (1, C)  norm_l weight
    nlb_ref,      # (1, C)  norm_l bias
    qw_ref,       # (H, C, D)  bf16  head-major Q weight, scale pre-folded
    kvw_ref,      # (2H, C, D) bf16  head-major fused KV weight (K heads, then V)
    outw_ref,     # (H, D, C)  bf16  head-major output Linear weight
    olnw_ref,     # (1, C)  output LayerNorm weight
    olnb_ref,     # (1, C)  output LayerNorm bias
    out_ref,      # (Bb, n_l, C) f32
    *, heads, dim_head):

    Bb, n_x, C = x_ref.shape
    n_l = lat_ref.shape[1]
    n_kv = n_x + n_l
    H, D = heads, dim_head

    x = x_ref[...]        # (Bb, n_x, C) f32
    lat = lat_ref[...]    # (Bb, n_l, C) f32

    # Pre-norms (f32 VPU math).
    xn = _layernorm(x, nxw_ref[...], nxb_ref[...])
    ln = _layernorm(lat, nlw_ref[...], nlb_ref[...])

    # KV input = cat(norm_x(x), norm_l(latents)) along the sequence axis,
    # per folded batch element; then flatten batch into matmul M.
    kv_in = jnp.concatenate([xn, ln], axis=1)                 # (Bb, n_kv, C)
    kv2 = kv_in.reshape(Bb * n_kv, C).astype(jnp.bfloat16)    # (Mkv, C)
    ln2 = ln.reshape(Bb * n_l, C).astype(jnp.bfloat16)        # (Mq,  C)

    # Head-major projections straight off the MXU (no lane-offset head slicing).
    # Leading-batch-dim batched matmuls, bf16 operands, f32 accumulation.
    q3 = jnp.einsum("hmc,hcd->hmd",
                    jnp.broadcast_to(ln2[None], (H, Bb * n_l, C)),
                    qw_ref[...],
                    preferred_element_type=jnp.float32)        # (H, Mq, D)
    kv3 = jnp.einsum("gmc,gcd->gmd",
                     jnp.broadcast_to(kv2[None], (2 * H, Bb * n_kv, C)),
                     kvw_ref[...],
                     preferred_element_type=jnp.float32)       # (2H, Mkv, D)
    k3 = kv3[:H]                                               # (H, Mkv, D)
    v3 = kv3[H:]                                               # (H, Mkv, D)

    # Fold (head, batch) into one attention batch axis g = H*Bb; sublane-aligned
    # regrouping only (last dim untouched), no lane relayouts.
    q4 = q3.astype(jnp.bfloat16).reshape(H * Bb, n_l, D)
    k4 = k3.astype(jnp.bfloat16).reshape(H * Bb, n_kv, D)
    v4 = v3.astype(jnp.bfloat16).reshape(H * Bb, n_kv, D)

    # Scores + one softmax pass over all heads and folded batch elements (f32).
    s = jnp.einsum("gmd,gnd->gmn", q4, k4,
                   preferred_element_type=jnp.float32)         # (H*Bb, n_l, n_kv)
    m = jnp.max(s, axis=-1, keepdims=True)
    p = jnp.exp(s - m)
    denom = jnp.sum(p, axis=-1, keepdims=True)                 # (H*Bb, n_l, 1)

    att = jnp.einsum("gmn,gnd->gmd", p.astype(jnp.bfloat16), v4,
                     preferred_element_type=jnp.float32)       # (H*Bb, n_l, D)
    att = att * pl.reciprocal(denom, approx=True)              # EUP divide

    # Output projection accumulated per head (no lane-offset concat):
    #   o[m, c] = sum_h sum_d att[h, m, d] * W[h, d, c]
    att_h = att.astype(jnp.bfloat16).reshape(H, Bb * n_l, D)
    o_h = jnp.einsum("hmd,hdc->hmc", att_h, outw_ref[...],
                     preferred_element_type=jnp.float32)       # (H, Bb*n_l, C)
    o = jnp.sum(o_h, axis=0)                                   # (Bb*n_l, C)

    o = _layernorm(o, olnw_ref[...], olnb_ref[...])
    out_ref[...] = o.reshape(Bb, n_l, C)                       # lane-dense C=128


# ------------------------------- the wrapper --------------------------------

def _pick_block_b(b, rows_per_batch, max_rows=512):
    """Fold several batch elements per grid step: raises matmul M toward the
    MXU's 128/256 rows and amortizes per-step overhead, while preferring an
    even grid length so v7x's two TensorCores get equal work."""
    divisors = [d for d in range(1, b + 1) if b % d == 0]
    fits = [d for d in divisors if d * rows_per_batch <= max_rows] or [1]
    even_grid = [d for d in fits if (b // d) % 2 == 0]
    return max(even_grid) if even_grid else max(fits)


def perceiver_attention(x, latents, params, *, heads, dim_head, block_b=None):
    b, n_x, c = x.shape
    _, n_l, _ = latents.shape
    scale = dim_head ** -0.5

    if block_b is None:
        block_b = _pick_block_b(b, n_x + n_l)
    assert b % block_b == 0
    grid = (b // block_b,)

    # Head-major weights (trace-time layout plumbing, free inside the kernel).
    # Q scale folded into the weight once (no per-step activation scaling).
    qw_h = (params["qw_t"] * scale).reshape(c, heads, dim_head)
    qw_h = jnp.transpose(qw_h, (1, 0, 2)).astype(jnp.bfloat16)        # (H, C, D)
    # Fused KV weight passed whole: columns [0, H*D) are K (head-major), the
    # rest are V, so the (C, 2H, D) reshape puts K heads first, V heads last.
    kvw_h = params["kvw_t"].reshape(c, 2 * heads, dim_head)
    kvw_h = jnp.transpose(kvw_h, (1, 0, 2)).astype(jnp.bfloat16)      # (2H, C, D)
    outw_h = params["outw_t"].reshape(heads, dim_head, c).astype(jnp.bfloat16)

    kernel = functools.partial(
        perceiver_attention_kernel, heads=heads, dim_head=dim_head)

    def const(arr):
        # Grid-invariant operand (weights / norm params): constant index_map,
        # so Pallas never re-DMAs it between grid steps.
        return pl.BlockSpec(arr.shape, lambda i: (0,) * arr.ndim)

    out = pl.pallas_call(
        kernel,
        out_shape=jax.ShapeDtypeStruct((b, n_l, c), jnp.float32),
        grid=grid,
        in_specs=[
            pl.BlockSpec((block_b, n_x, c), lambda i: (i, 0, 0)),   # x
            pl.BlockSpec((block_b, n_l, c), lambda i: (i, 0, 0)),   # latents
            const(params["norm_x_w"]), const(params["norm_x_b"]),
            const(params["norm_l_w"]), const(params["norm_l_b"]),
            const(qw_h), const(kvw_h), const(outw_h),
            const(params["oln_w"]), const(params["oln_b"]),
        ],
        out_specs=pl.BlockSpec((block_b, n_l, c), lambda i: (i, 0, 0)),
        compiler_params=pltpu.CompilerParams(
            dimension_semantics=("parallel",),       # even grid -> both v7x TCs
            vmem_limit_bytes=32 * 1024 * 1024),
    )(x, latents,
      params["norm_x_w"], params["norm_x_b"],
      params["norm_l_w"], params["norm_l_b"],
      qw_h, kvw_h, outw_h,
      params["oln_w"], params["oln_b"])
    return out


# --------------------------- pure-JAX reference ------------------------------

def ref_forward(x, latents, p, *, heads, dim_head):
    b, n_x, c = x.shape
    n_l = latents.shape[1]
    inner = heads * dim_head
    scale = dim_head ** -0.5

    xn = _layernorm(x, p["norm_x_w"][0], p["norm_x_b"][0])
    ln = _layernorm(latents, p["norm_l_w"][0], p["norm_l_b"][0])

    q = ln @ p["qw_t"]                                        # (b, n_l, H*D)
    kv = jnp.concatenate([xn, ln], axis=1) @ p["kvw_t"]       # (b, n_kv, 2*H*D)
    k, v = kv[..., :inner], kv[..., inner:]

    def split_heads(t):
        bb, n, _ = t.shape
        return t.reshape(bb, n, heads, dim_head).transpose(0, 2, 1, 3)

    qh = split_heads(q) * scale
    kh = split_heads(k)
    vh = split_heads(v)

    s = jnp.einsum("bhid,bhjd->bhij", qh, kh)
    probs = jax.nn.softmax(s.astype(jnp.float32), axis=-1)
    att = jnp.einsum("bhij,bhjd->bhid", probs, vh)
    att = att.transpose(0, 2, 1, 3).reshape(b, n_l, inner)

    o = att @ p["outw_t"]
    return _layernorm(o, p["oln_w"][0], p["oln_b"][0])


# ----------------------------------- main ------------------------------------

if __name__ == "__main__":
    # Small shapes consistent with PerceiverAttention(cond_dim, dim_head, heads).
    batch, n_x, n_l = 4, 16, 8
    cond_dim, heads, dim_head = 128, 4, 32
    inner = heads * dim_head

    key = jax.random.PRNGKey(0)
    ks = jax.random.split(key, 6)

    def bf16_exact(a):
        # Quantize synthetic weights to bf16-representable values so the bf16
        # kernel and the f32 reference see (nearly) identical parameters.
        return a.astype(jnp.bfloat16).astype(jnp.float32)

    params = {
        "norm_x_w": jnp.ones((1, cond_dim), jnp.float32),
        "norm_x_b": jnp.zeros((1, cond_dim), jnp.float32),
        "norm_l_w": jnp.ones((1, cond_dim), jnp.float32),
        "norm_l_b": jnp.zeros((1, cond_dim), jnp.float32),
        # Linear weights stored pre-transposed as (in, out), no biases.
        "qw_t":   bf16_exact(jax.random.normal(ks[0], (cond_dim, inner), jnp.float32) * 0.05),
        "kvw_t":  bf16_exact(jax.random.normal(ks[1], (cond_dim, 2 * inner), jnp.float32) * 0.05),
        "outw_t": bf16_exact(jax.random.normal(ks[2], (inner, cond_dim), jnp.float32) * 0.05),
        "oln_w":  jnp.ones((1, cond_dim), jnp.float32),
        "oln_b":  jnp.zeros((1, cond_dim), jnp.float32),
    }

    x = jax.random.normal(ks[3], (batch, n_x, cond_dim), jnp.float32)
    latents = jax.random.normal(ks[4], (batch, n_l, cond_dim), jnp.float32)

    out = perceiver_attention(x, latents, params, heads=heads, dim_head=dim_head)
    out = jax.block_until_ready(out)

    ref = jax.block_until_ready(
        ref_forward(x, latents, params, heads=heads, dim_head=dim_head))

    assert out.shape == (batch, n_l, cond_dim)
    # bf16 MXU operands (f32 accumulation) + approx reciprocal -> loosened tol.
    assert jnp.allclose(out, ref, atol=2e-2, rtol=2e-2), \
        "mismatch vs pure-JAX reference"

    print("KERNEL_OK")
</pallas_src>

<mosaic_0001>
module attributes {stable_mosaic.version = 11 : i64} {
  func.func @perceiver_attention_kernel(%arg0: i32, %arg1: memref<2x16x128xf32, #tpu.memory_space<vmem>>, %arg2: memref<2x8x128xf32, #tpu.memory_space<vmem>>, %arg3: memref<1x128xf32, #tpu.memory_space<vmem>>, %arg4: memref<1x128xf32, #tpu.memory_space<vmem>>, %arg5: memref<1x128xf32, #tpu.memory_space<vmem>>, %arg6: memref<1x128xf32, #tpu.memory_space<vmem>>, %arg7: memref<4x128x32xbf16, #tpu.memory_space<vmem>>, %arg8: memref<8x128x32xbf16, #tpu.memory_space<vmem>>, %arg9: memref<4x32x128xbf16, #tpu.memory_space<vmem>>, %arg10: memref<1x128xf32, #tpu.memory_space<vmem>>, %arg11: memref<1x128xf32, #tpu.memory_space<vmem>>, %arg12: memref<2x8x128xf32, #tpu.memory_space<vmem>>) attributes {dimension_semantics = [#tpu.dimension_semantics<parallel>], iteration_bounds = array<i64: 2>, scalar_prefetch = 0 : i64, scratch_operands = 0 : i64, tpu.core_type = #tpu.core_type<tc>, window_params = [{transform_indices = @transform_0, window_bounds = array<i64: 2, 16, 128>}, {transform_indices = @transform_1, window_bounds = array<i64: 2, 8, 128>}, {pipeline_mode = #tpu.pipeline_mode<synchronous>, transform_indices = @transform_2, window_bounds = array<i64: 1, 128>}, {pipeline_mode = #tpu.pipeline_mode<synchronous>, transform_indices = @transform_3, window_bounds = array<i64: 1, 128>}, {pipeline_mode = #tpu.pipeline_mode<synchronous>, transform_indices = @transform_4, window_bounds = array<i64: 1, 128>}, {pipeline_mode = #tpu.pipeline_mode<synchronous>, transform_indices = @transform_5, window_bounds = array<i64: 1, 128>}, {pipeline_mode = #tpu.pipeline_mode<synchronous>, transform_indices = @transform_6, window_bounds = array<i64: 4, 128, 32>}, {pipeline_mode = #tpu.pipeline_mode<synchronous>, transform_indices = @transform_7, window_bounds = array<i64: 8, 128, 32>}, {pipeline_mode = #tpu.pipeline_mode<synchronous>, transform_indices = @transform_8, window_bounds = array<i64: 4, 32, 128>}, {pipeline_mode = #tpu.pipeline_mode<synchronous>, transform_indices = @transform_9, window_bounds = array<i64: 1, 128>}, {pipeline_mode = #tpu.pipeline_mode<synchronous>, transform_indices = @transform_10, window_bounds = array<i64: 1, 128>}, {transform_indices = @transform_11, window_bounds = array<i64: 2, 8, 128>}]} {
    %c0 = arith.constant 0 : index
    %c0_0 = arith.constant 0 : index
    %c0_1 = arith.constant 0 : index
    %0 = vector.load %arg1[%c0, %c0_0, %c0_1] : memref<2x16x128xf32, #tpu.memory_space<vmem>>, vector<2x16x128xf32>
    %c0_2 = arith.constant 0 : index
    %c0_3 = arith.constant 0 : index
    %c0_4 = arith.constant 0 : index
    %1 = vector.load %arg2[%c0_2, %c0_3, %c0_4] : memref<2x8x128xf32, #tpu.memory_space<vmem>>, vector<2x8x128xf32>
    %c0_5 = arith.constant 0 : index
    %c0_6 = arith.constant 0 : index
    %2 = vector.load %arg3[%c0_5, %c0_6] : memref<1x128xf32, #tpu.memory_space<vmem>>, vector<1x128xf32>
    %c0_7 = arith.constant 0 : index
    %c0_8 = arith.constant 0 : index
    %3 = vector.load %arg4[%c0_7, %c0_8] : memref<1x128xf32, #tpu.memory_space<vmem>>, vector<1x128xf32>
    %cst = arith.constant dense<0.000000e+00> : vector<2x16xf32>
    %4 = vector.multi_reduction <add>, %0, %cst [2] : vector<2x16x128xf32> to vector<2x16xf32>
    %5 = vector.shape_cast %4 : vector<2x16xf32> to vector<2x16x1xf32>
    %cst_9 = arith.constant 1.280000e+02 : f32
    %6 = vector.broadcast %cst_9 : f32 to vector<2x16x1xf32>
    %7 = arith.divf %5, %6 : vector<2x16x1xf32>
    %8 = vector.broadcast %7 : vector<2x16x1xf32> to vector<2x16x128xf32>
    %9 = arith.subf %0, %8 : vector<2x16x128xf32>
    %10 = arith.mulf %9, %9 : vector<2x16x128xf32>
    %cst_10 = arith.constant dense<0.000000e+00> : vector<2x16xf32>
    %11 = vector.multi_reduction <add>, %10, %cst_10 [2] : vector<2x16x128xf32> to vector<2x16xf32>
    %12 = vector.shape_cast %11 : vector<2x16xf32> to vector<2x16x1xf32>
    %cst_11 = arith.constant 1.280000e+02 : f32
    %13 = vector.broadcast %cst_11 : f32 to vector<2x16x1xf32>
    %14 = arith.divf %12, %13 : vector<2x16x1xf32>
    %15 = vector.broadcast %7 : vector<2x16x1xf32> to vector<2x16x128xf32>
    %16 = arith.subf %0, %15 : vector<2x16x128xf32>
    %cst_12 = arith.constant 9.99999974E-6 : f32
    %17 = vector.broadcast %cst_12 : f32 to vector<2x16x1xf32>
    %18 = arith.addf %14, %17 : vector<2x16x1xf32>
    %19 = math.rsqrt %18 : vector<2x16x1xf32>
    %20 = vector.broadcast %19 : vector<2x16x1xf32> to vector<2x16x128xf32>
    %21 = arith.mulf %16, %20 : vector<2x16x128xf32>
    %22 = vector.shape_cast %2 : vector<1x128xf32> to vector<1x1x128xf32>
    %23 = vector.broadcast %22 : vector<1x1x128xf32> to vector<2x16x128xf32>
    %24 = arith.mulf %21, %23 : vector<2x16x128xf32>
    %25 = vector.shape_cast %3 : vector<1x128xf32> to vector<1x1x128xf32>
    %26 = vector.broadcast %25 : vector<1x1x128xf32> to vector<2x16x128xf32>
    %27 = arith.addf %24, %26 : vector<2x16x128xf32>
    %c0_13 = arith.constant 0 : index
    %c0_14 = arith.constant 0 : index
    %28 = vector.load %arg5[%c0_13, %c0_14] : memref<1x128xf32, #tpu.memory_space<vmem>>, vector<1x128xf32>
    %c0_15 = arith.constant 0 : index
    %c0_16 = arith.constant 0 : index
    %29 = vector.load %arg6[%c0_15, %c0_16] : memref<1x128xf32, #tpu.memory_space<vmem>>, vector<1x128xf32>
    %cst_17 = arith.constant dense<0.000000e+00> : vector<2x8xf32>
    %30 = vector.multi_reduction <add>, %1, %cst_17 [2] : vector<2x8x128xf32> to vector<2x8xf32>
    %31 = vector.shape_cast %30 : vector<2x8xf32> to vector<2x8x1xf32>
    %cst_18 = arith.constant 1.280000e+02 : f32
    %32 = vector.broadcast %cst_18 : f32 to vector<2x8x1xf32>
    %33 = arith.divf %31, %32 : vector<2x8x1xf32>
    %34 = vector.broadcast %33 : vector<2x8x1xf32> to vector<2x8x128xf32>
    %35 = arith.subf %1, %34 : vector<2x8x128xf32>
    %36 = arith.mulf %35, %35 : vector<2x8x128xf32>
    %cst_19 = arith.constant dense<0.000000e+00> : vector<2x8xf32>
    %37 = vector.multi_reduction <add>, %36, %cst_19 [2] : vector<2x8x128xf32> to vector<2x8xf32>
    %38 = vector.shape_cast %37 : vector<2x8xf32> to vector<2x8x1xf32>
    %cst_20 = arith.constant 1.280000e+02 : f32
    %39 = vector.broadcast %cst_20 : f32 to vector<2x8x1xf32>
    %40 = arith.divf %38, %39 : vector<2x8x1xf32>
    %41 = vector.broadcast %33 : vector<2x8x1xf32> to vector<2x8x128xf32>
    %42 = arith.subf %1, %41 : vector<2x8x128xf32>
    %cst_21 = arith.constant 9.99999974E-6 : f32
    %43 = vector.broadcast %cst_21 : f32 to vector<2x8x1xf32>
    %44 = arith.addf %40, %43 : vector<2x8x1xf32>
    %45 = math.rsqrt %44 : vector<2x8x1xf32>
    %46 = vector.broadcast %45 : vector<2x8x1xf32> to vector<2x8x128xf32>
    %47 = arith.mulf %42, %46 : vector<2x8x128xf32>
    %48 = vector.shape_cast %28 : vector<1x128xf32> to vector<1x1x128xf32>
    %49 = vector.broadcast %48 : vector<1x1x128xf32> to vector<2x8x128xf32>
    %50 = arith.mulf %47, %49 : vector<2x8x128xf32>
    %51 = vector.shape_cast %29 : vector<1x128xf32> to vector<1x1x128xf32>
    %52 = vector.broadcast %51 : vector<1x1x128xf32> to vector<2x8x128xf32>
    %53 = arith.addf %50, %52 : vector<2x8x128xf32>
    %54 = tpu.concatenate %27, %53 in 1 : vector<2x16x128xf32>, vector<2x8x128xf32> -> vector<2x24x128xf32>
    %55 = vector.shape_cast %54 : vector<2x24x128xf32> to vector<48x128xf32>
    %56 = arith.truncf %55 : vector<48x128xf32> to vector<48x128xbf16>
    %57 = vector.shape_cast %53 : vector<2x8x128xf32> to vector<16x128xf32>
    %58 = arith.truncf %57 : vector<16x128xf32> to vector<16x128xbf16>
    %59 = vector.shape_cast %58 : vector<16x128xbf16> to vector<1x16x128xbf16>
    %60 = vector.shape_cast %59 : vector<1x16x128xbf16> to vector<1x16x128xbf16>
    %61 = vector.broadcast %60 : vector<1x16x128xbf16> to vector<4x16x128xbf16>
    %c0_22 = arith.constant 0 : index
    %c0_23 = arith.constant 0 : index
    %c0_24 = arith.constant 0 : index
    %62 = vector.load %arg7[%c0_22, %c0_23, %c0_24] : memref<4x128x32xbf16, #tpu.memory_space<vmem>>, vector<4x128x32xbf16>
    "tpu.trace_start"() <{level = 10 : i32, message = "hmc,hcd->hmd"}> : () -> ()
    %cst_25 = arith.constant dense<0.000000e+00> : vector<4x16x32xf32>
    %63 = tpu.matmul %61, %62, %cst_25 {dimension_numbers = #tpu.dot_dimension_numbers<[2], [1], [1], [2], [0, 0, 0, 1, 1, 2], [0], [0]>} : vector<4x16x128xbf16>, vector<4x128x32xbf16>, vector<4x16x32xf32> -> vector<4x16x32xf32>
    "tpu.trace_stop"() : () -> ()
    %64 = vector.shape_cast %56 : vector<48x128xbf16> to vector<1x48x128xbf16>
    %65 = vector.shape_cast %64 : vector<1x48x128xbf16> to vector<1x48x128xbf16>
    %66 = vector.broadcast %65 : vector<1x48x128xbf16> to vector<8x48x128xbf16>
    %c0_26 = arith.constant 0 : index
    %c0_27 = arith.constant 0 : index
    %c0_28 = arith.constant 0 : index
    %67 = vector.load %arg8[%c0_26, %c0_27, %c0_28] : memref<8x128x32xbf16, #tpu.memory_space<vmem>>, vector<8x128x32xbf16>
    "tpu.trace_start"() <{level = 10 : i32, message = "gmc,gcd->gmd"}> : () -> ()
    %cst_29 = arith.constant dense<0.000000e+00> : vector<8x48x32xf32>
    %68 = tpu.matmul %66, %67, %cst_29 {dimension_numbers = #tpu.dot_dimension_numbers<[2], [1], [1], [2], [0, 0, 0, 1, 1, 2], [0], [0]>} : vector<8x48x128xbf16>, vector<8x128x32xbf16>, vector<8x48x32xf32> -> vector<8x48x32xf32>
    "tpu.trace_stop"() : () -> ()
    %69 = vector.extract_strided_slice %68 {offsets = [0, 0, 0], sizes = [4, 48, 32], strides = [1, 1, 1]} : vector<8x48x32xf32> to vector<4x48x32xf32>
    %70 = vector.extract_strided_slice %68 {offsets = [4, 0, 0], sizes = [4, 48, 32], strides = [1, 1, 1]} : vector<8x48x32xf32> to vector<4x48x32xf32>
    %71 = arith.truncf %63 : vector<4x16x32xf32> to vector<4x16x32xbf16>
    %72 = vector.shape_cast %71 : vector<4x16x32xbf16> to vector<8x8x32xbf16>
    %73 = arith.truncf %69 : vector<4x48x32xf32> to vector<4x48x32xbf16>
    %74 = vector.shape_cast %73 : vector<4x48x32xbf16> to vector<8x24x32xbf16>
    %75 = arith.truncf %70 : vector<4x48x32xf32> to vector<4x48x32xbf16>
    %76 = vector.shape_cast %75 : vector<4x48x32xbf16> to vector<8x24x32xbf16>
    "tpu.trace_start"() <{level = 10 : i32, message = "gmd,gnd->gmn"}> : () -> ()
    %cst_30 = arith.constant dense<0.000000e+00> : vector<8x8x24xf32>
    %77 = tpu.matmul %72, %74, %cst_30 {dimension_numbers = #tpu.dot_dimension_numbers<[2], [2], [1], [1], [0, 0, 0, 1, 1, 1], [0], [0]>} : vector<8x8x32xbf16>, vector<8x24x32xbf16>, vector<8x8x24xf32> -> vector<8x8x24xf32>
    "tpu.trace_stop"() : () -> ()
    %cst_31 = arith.constant dense<0xFF800000> : vector<8x8xf32>
    %78 = vector.multi_reduction <maximumf>, %77, %cst_31 [2] : vector<8x8x24xf32> to vector<8x8xf32>
    %79 = vector.shape_cast %78 : vector<8x8xf32> to vector<8x8x1xf32>
    %80 = vector.broadcast %79 : vector<8x8x1xf32> to vector<8x8x24xf32>
    %81 = arith.subf %77, %80 : vector<8x8x24xf32>
    %82 = math.exp %81 : vector<8x8x24xf32>
    %cst_32 = arith.constant dense<0.000000e+00> : vector<8x8xf32>
    %83 = vector.multi_reduction <add>, %82, %cst_32 [2] : vector<8x8x24xf32> to vector<8x8xf32>
    %84 = vector.shape_cast %83 : vector<8x8xf32> to vector<8x8x1xf32>
    %85 = arith.truncf %82 : vector<8x8x24xf32> to vector<8x8x24xbf16>
    "tpu.trace_start"() <{level = 10 : i32, message = "gmn,gnd->gmd"}> : () -> ()
    %cst_33 = arith.constant dense<0.000000e+00> : vector<8x8x32xf32>
    %86 = tpu.matmul %85, %76, %cst_33 {dimension_numbers = #tpu.dot_dimension_numbers<[2], [1], [1], [2], [0, 0, 0, 1, 1, 2], [0], [0]>} : vector<8x8x24xbf16>, vector<8x24x32xbf16>, vector<8x8x32xf32> -> vector<8x8x32xf32>
    "tpu.trace_stop"() : () -> ()
    %87 = tpu.reciprocal %84 {approx = true} : vector<8x8x1xf32> -> vector<8x8x1xf32>
    %88 = vector.broadcast %87 : vector<8x8x1xf32> to vector<8x8x32xf32>
    %89 = arith.mulf %86, %88 : vector<8x8x32xf32>
    %90 = arith.truncf %89 : vector<8x8x32xf32> to vector<8x8x32xbf16>
    %91 = vector.shape_cast %90 : vector<8x8x32xbf16> to vector<4x16x32xbf16>
    %c0_34 = arith.constant 0 : index
    %c0_35 = arith.constant 0 : index
    %c0_36 = arith.constant 0 : index
    %92 = vector.load %arg9[%c0_34, %c0_35, %c0_36] : memref<4x32x128xbf16, #tpu.memory_space<vmem>>, vector<4x32x128xbf16>
    "tpu.trace_start"() <{level = 10 : i32, message = "hmd,hdc->hmc"}> : () -> ()
    %cst_37 = arith.constant dense<0.000000e+00> : vector<4x16x128xf32>
    %93 = tpu.matmul %91, %92, %cst_37 {dimension_numbers = #tpu.dot_dimension_numbers<[2], [1], [1], [2], [0, 0, 0, 1, 1, 2], [0], [0]>} : vector<4x16x32xbf16>, vector<4x32x128xbf16>, vector<4x16x128xf32> -> vector<4x16x128xf32>
    "tpu.trace_stop"() : () -> ()
    %cst_38 = arith.constant dense<0.000000e+00> : vector<16x128xf32>
    %94 = vector.multi_reduction <add>, %93, %cst_38 [0] : vector<4x16x128xf32> to vector<16x128xf32>
    %c0_39 = arith.constant 0 : index
    %c0_40 = arith.constant 0 : index
    %95 = vector.load %arg10[%c0_39, %c0_40] : memref<1x128xf32, #tpu.memory_space<vmem>>, vector<1x128xf32>
    %c0_41 = arith.constant 0 : index
    %c0_42 = arith.constant 0 : index
    %96 = vector.load %arg11[%c0_41, %c0_42] : memref<1x128xf32, #tpu.memory_space<vmem>>, vector<1x128xf32>
    %cst_43 = arith.constant dense<0.000000e+00> : vector<16xf32>
    %97 = vector.multi_reduction <add>, %94, %cst_43 [1] : vector<16x128xf32> to vector<16xf32>
    %98 = vector.shape_cast %97 : vector<16xf32> to vector<16x1xf32>
    %cst_44 = arith.constant 1.280000e+02 : f32
    %99 = vector.broadcast %cst_44 : f32 to vector<16x1xf32>
    %100 = arith.divf %98, %99 : vector<16x1xf32>
    %101 = vector.broadcast %100 : vector<16x1xf32> to vector<16x128xf32>
    %102 = arith.subf %94, %101 : vector<16x128xf32>
    %103 = arith.mulf %102, %102 : vector<16x128xf32>
    %cst_45 = arith.constant dense<0.000000e+00> : vector<16xf32>
    %104 = vector.multi_reduction <add>, %103, %cst_45 [1] : vector<16x128xf32> to vector<16xf32>
    %105 = vector.shape_cast %104 : vector<16xf32> to vector<16x1xf32>
    %cst_46 = arith.constant 1.280000e+02 : f32
    %106 = vector.broadcast %cst_46 : f32 to vector<16x1xf32>
    %107 = arith.divf %105, %106 : vector<16x1xf32>
    %108 = vector.broadcast %100 : vector<16x1xf32> to vector<16x128xf32>
    %109 = arith.subf %94, %108 : vector<16x128xf32>
    %cst_47 = arith.constant 9.99999974E-6 : f32
    %110 = vector.broadcast %cst_47 : f32 to vector<16x1xf32>
    %111 = arith.addf %107, %110 : vector<16x1xf32>
    %112 = math.rsqrt %111 : vector<16x1xf32>
    %113 = vector.broadcast %112 : vector<16x1xf32> to vector<16x128xf32>
    %114 = arith.mulf %109, %113 : vector<16x128xf32>
    %115 = vector.broadcast %95 : vector<1x128xf32> to vector<16x128xf32>
    %116 = arith.mulf %114, %115 : vector<16x128xf32>
    %117 = vector.broadcast %96 : vector<1x128xf32> to vector<16x128xf32>
    %118 = arith.addf %116, %117 : vector<16x128xf32>
    %119 = vector.shape_cast %118 : vector<16x128xf32> to vector<2x8x128xf32>
    %c0_48 = arith.constant 0 : index
    %c0_49 = arith.constant 0 : index
    %c0_50 = arith.constant 0 : index
    %120 = vector.load %arg12[%c0_48, %c0_49, %c0_50] : memref<2x8x128xf32, #tpu.memory_space<vmem>>, vector<2x8x128xf32>
    tpu.vector_store %arg12[%c0_48, %c0_49, %c0_50], %119 {strides = array<i32>} : memref<2x8x128xf32, #tpu.memory_space<vmem>>, vector<2x8x128xf32>,
    return
  }
  func.func @transform_0(%arg0: i32) -> (i32, i32, i32) {
    %c0_i32 = arith.constant 0 : i32
    %c0_i32_0 = arith.constant 0 : i32
    %c0_i32_1 = arith.constant 0 : i32
    return %arg0, %c0_i32, %c0_i32_0 : i32, i32, i32
  }
  func.func @transform_1(%arg0: i32) -> (i32, i32, i32) {
    %c0_i32 = arith.constant 0 : i32
    %c0_i32_0 = arith.constant 0 : i32
    %c0_i32_1 = arith.constant 0 : i32
    return %arg0, %c0_i32, %c0_i32_0 : i32, i32, i32
  }
  func.func @transform_2(%arg0: i32) -> (i32, i32) {
    %c0_i32 = arith.constant 0 : i32
    %c0_i32_0 = arith.constant 0 : i32
    %c0_i32_1 = arith.constant 0 : i32
    return %c0_i32, %c0_i32_0 : i32, i32
  }
  func.func @transform_3(%arg0: i32) -> (i32, i32) {
    %c0_i32 = arith.constant 0 : i32
    %c0_i32_0 = arith.constant 0 : i32
    %c0_i32_1 = arith.constant 0 : i32
    return %c0_i32, %c0_i32_0 : i32, i32
  }
  func.func @transform_4(%arg0: i32) -> (i32, i32) {
    %c0_i32 = arith.constant 0 : i32
    %c0_i32_0 = arith.constant 0 : i32
    %c0_i32_1 = arith.constant 0 : i32
    return %c0_i32, %c0_i32_0 : i32, i32
  }
  func.func @transform_5(%arg0: i32) -> (i32, i32) {
    %c0_i32 = arith.constant 0 : i32
    %c0_i32_0 = arith.constant 0 : i32
    %c0_i32_1 = arith.constant 0 : i32
    return %c0_i32, %c0_i32_0 : i32, i32
  }
  func.func @transform_6(%arg0: i32) -> (i32, i32, i32) {
    %c0_i32 = arith.constant 0 : i32
    %c0_i32_0 = arith.constant 0 : i32
    %c0_i32_1 = arith.constant 0 : i32
    %c0_i32_2 = arith.constant 0 : i32
    return %c0_i32, %c0_i32_0, %c0_i32_1 : i32, i32, i32
  }
  func.func @transform_7(%arg0: i32) -> (i32, i32, i32) {
    %c0_i32 = arith.constant 0 : i32
    %c0_i32_0 = arith.constant 0 : i32
    %c0_i32_1 = arith.constant 0 : i32
    %c0_i32_2 = arith.constant 0 : i32
    return %c0_i32, %c0_i32_0, %c0_i32_1 : i32, i32, i32
  }
  func.func @transform_8(%arg0: i32) -> (i32, i32, i32) {
    %c0_i32 = arith.constant 0 : i32
    %c0_i32_0 = arith.constant 0 : i32
    %c0_i32_1 = arith.constant 0 : i32
    %c0_i32_2 = arith.constant 0 : i32
    return %c0_i32, %c0_i32_0, %c0_i32_1 : i32, i32, i32
  }
  func.func @transform_9(%arg0: i32) -> (i32, i32) {
    %c0_i32 = arith.constant 0 : i32
    %c0_i32_0 = arith.constant 0 : i32
    %c0_i32_1 = arith.constant 0 : i32
    return %c0_i32, %c0_i32_0 : i32, i32
  }
  func.func @transform_10(%arg0: i32) -> (i32, i32) {
    %c0_i32 = arith.constant 0 : i32
    %c0_i32_0 = arith.constant 0 : i32
    %c0_i32_1 = arith.constant 0 : i32
    return %c0_i32, %c0_i32_0 : i32, i32
  }
  func.func @transform_11(%arg0: i32) -> (i32, i32, i32) {
    %c0_i32 = arith.constant 0 : i32
    %c0_i32_0 = arith.constant 0 : i32
    %c0_i32_1 = arith.constant 0 : i32
    return %arg0, %c0_i32, %c0_i32_0 : i32, i32, i32
  }
}

</mosaic_0001>

<llo_original>
// kernel: tpu_custom_call.1
$region0: #{tpu_custom_call.1}
  #allocation0 [shape = 'u32[]', space=smem, size = 0x4, offset = 0x4, fixed_abs, tag = 'smem constant byte address 0x4 - core index']
  #allocation1 [shape = 'u32[144,128]{1,0:T(1,128)}', space=vmem, size = 0x12000, scoped, tag = 'internal scratch']
  %s0 = inlined_call_operand.vmem [shape: f32[4,16,128], index: 0, kind: input, shape index: {}]
  %s1 = inlined_call_operand.vmem [shape: f32[4,8,128], index: 1, kind: input, shape index: {}]
  %s2 = inlined_call_operand.vmem [shape: f32[1,128], index: 2, kind: input, shape index: {}]
  %s3 = inlined_call_operand.vmem [shape: f32[1,128], index: 3, kind: input, shape index: {}]
  %s4 = inlined_call_operand.vmem [shape: f32[1,128], index: 4, kind: input, shape index: {}]
  %s5 = inlined_call_operand.vmem [shape: f32[1,128], index: 5, kind: input, shape index: {}]
  %s6 = inlined_call_operand.vmem [shape: bf16[4,128,32], index: 6, kind: input, shape index: {}]
  %s7 = inlined_call_operand.vmem [shape: bf16[8,128,32], index: 7, kind: input, shape index: {}]
  %s8 = inlined_call_operand.vmem [shape: bf16[4,32,128], index: 8, kind: input, shape index: {}]
  %s9 = inlined_call_operand.vmem [shape: f32[1,128], index: 9, kind: input, shape index: {}]
  %s10 = inlined_call_operand.vmem [shape: f32[1,128], index: 10, kind: input, shape index: {}]
  %s11 = inlined_call_operand.hbm [shape: f32[4,8,128], index: 11, kind: output, shape index: {}]
  %s12 = sld [smem:[#allocation0]]
  $region77: #{tpu_custom_call.1} parent=0
    _
  %s14 = ssub.s32 1, %s12
  %s15 = scalar_select 0, %s14, %s12
  $region1: #{tpu_custom_call.1} parent=0
    #allocation2 [shape = 'u8[16384]{0}', space=vmem, size = 0x4000, scoped, tag = 'output window, operand 0']
    #allocation3 [shape = 's32[2]{0}', space=sflag, size = 0x8, scoped, tag = 'scoped memory for tpu_custom_call.1']
    %16 = vsyncpa [#allocation3], 0
    %s17 = scalar_lea.sflag [#allocation3], 1
    %18 = vsyncpa %s17, 0
    loop: start=0, step=1, limit=4
    $region2: #{tpu_custom_call.1} parent=1 // loop_pre_header
      _
    $region3: #{tpu_custom_call.1} parent=1 // loop_header
      %s20 = sphi 0, %s24
      %p21 = scmp.ge.s32.totalorder %s20, 4
      %s30 = sphi 0, %s32
      %s33 = sphi 0, %s30
      %s34 = sphi 0, %s33
      %s50 = sphi 0, %s34
      %s56 = sphi 0, %s58
      %s59 = sphi 0, %s56
      %s60 = sphi 0, %s59
      %s76 = sphi 0, %s60
      %s80 = sphi 0, %s80
      %s82 = sphi 0, %s80
      %s83 = sphi 0, %s82
      %s97 = sphi 0, %s83
      %s101 = sphi 0, %s101
      %s103 = sphi 0, %s101
      %s104 = sphi 0, %s103
      %s118 = sphi 0, %s104
      %s122 = sphi 0, %s122
      %s124 = sphi 0, %s122
      %s125 = sphi 0, %s124
      %s139 = sphi 0, %s125
      %s143 = sphi 0, %s143
      %s145 = sphi 0, %s143
      %s146 = sphi 0, %s145
      %s160 = sphi 0, %s146
      %s164 = sphi 0, %s164
      %s166 = sphi 0, %s164
      %s167 = sphi 0, %s166
      %s181 = sphi 0, %s167
      %s185 = sphi 0, %s185
      %s187 = sphi 0, %s185
      %s188 = sphi 0, %s187
      %s202 = sphi 0, %s188
      %s206 = sphi 0, %s206
      %s208 = sphi 0, %s206
      %s209 = sphi 0, %s208
      %s223 = sphi 0, %s209
      %s227 = sphi 0, %s227
      %s229 = sphi 0, %s227
      %s230 = sphi 0, %s229
      %s244 = sphi 0, %s230
      %s248 = sphi 0, %s248
      %s250 = sphi 0, %s248
      %s251 = sphi 0, %s250
      %s265 = sphi 0, %s251
      %s271 = sphi 0, %s273
      %s274 = sphi 0, %s271
      %s275 = sphi 0, %s274
      %s291 = sphi 0, %s275
    $region4: #{tpu_custom_call.1} parent=1 // loop_header_branch
      %23 = sbr.rel (%p21) target = $region8
    $region5: #{tpu_custom_call.1} parent=1 // loop_body
      %s25 = ssub.s32 %s20, 1
      %s26 = ssub.s32 %s20, 2
      %s27 = sadd.s32 %s20, 1
      %s28 = ssub.s32 %s20, %s27
      %p29 = scmp.eq.s32.totalorder %s28, 0
      %s31 = sadd.s32 %s30, 1
      %s32 = scalar_select %p29, %s30, %s31
      %p35 = pneg %p29
      %p36 = scmp.eq.s32.totalorder %s20, 1
      %p37 = por %p35, %p36
      %p38 = scmp.ne.s32.totalorder %s30, %s33
      %p39 = scmp.eq.s32.totalorder %s20, 0
      %p40 = por %p38, %p39
      %p41 = scmp.ne.s32.totalorder %s30, %s33
      %p42 = scmp.eq.s32.totalorder %s25, 1
      %p43 = por %p41, %p42
      %p44 = scmp.ne.s32.totalorder %s33, %s34
      %p45 = scmp.eq.s32.totalorder %s25, 0
      %p46 = por %p44, %p45
      %p47 = scmp.ne.s32.totalorder %s33, %s34
      %p48 = scmp.eq.s32.totalorder %s26, 1
      %p49 = por %p47, %p48
      %p51 = scmp.ne.s32.totalorder %s34, %s50
      %p52 = scmp.eq.s32.totalorder %s26, 0
      %p53 = por %p51, %p52
      %s54 = ssub.s32 %s20, %s27
      %p55 = scmp.eq.s32.totalorder %s54, 0
      %s57 = sadd.s32 %s56, 1
      %s58 = scalar_select %p55, %s56, %s57
      %p61 = pneg %p55
      %p62 = scmp.eq.s32.totalorder %s20, 1
      %p63 = por %p61, %p62
      %p64 = scmp.ne.s32.totalorder %s56, %s59
      %p65 = scmp.eq.s32.totalorder %s20, 0
      %p66 = por %p64, %p65
      %p67 = scmp.ne.s32.totalorder %s56, %s59
      %p68 = scmp.eq.s32.totalorder %s25, 1
      %p69 = por %p67, %p68
      %p70 = scmp.ne.s32.totalorder %s59, %s60
      %p71 = scmp.eq.s32.totalorder %s25, 0
      %p72 = por %p70, %p71
      %p73 = scmp.ne.s32.totalorder %s59, %s60
      %p74 = scmp.eq.s32.totalorder %s26, 1
      %p75 = por %p73, %p74
      %p77 = scmp.ne.s32.totalorder %s60, %s76
      %p78 = scmp.eq.s32.totalorder %s26, 0
      %p79 = por %p77, %p78
      %s81 = sadd.s32 %s80, 1
      %p84 = scmp.eq.s32.totalorder %s20, 1
      %p85 = scmp.ne.s32.totalorder %s80, %s82
      %p86 = scmp.eq.s32.totalorder %s20, 0
      %p87 = por %p85, %p86
      %p88 = scmp.ne.s32.totalorder %s80, %s82
      %p89 = scmp.eq.s32.totalorder %s25, 1
      %p90 = por %p88, %p89
      %p91 = scmp.ne.s32.totalorder %s82, %s83
      %p92 = scmp.eq.s32.totalorder %s25, 0
      %p93 = por %p91, %p92
      %p94 = scmp.ne.s32.totalorder %s82, %s83
      %p95 = scmp.eq.s32.totalorder %s26, 1
      %p96 = por %p94, %p95
      %p98 = scmp.ne.s32.totalorder %s83, %s97
      %p99 = scmp.eq.s32.totalorder %s26, 0
      %p100 = por %p98, %p99
      %s102 = sadd.s32 %s101, 1
      %p105 = scmp.eq.s32.totalorder %s20, 1
      %p106 = scmp.ne.s32.totalorder %s101, %s103
      %p107 = scmp.eq.s32.totalorder %s20, 0
      %p108 = por %p106, %p107
      %p109 = scmp.ne.s32.totalorder %s101, %s103
      %p110 = scmp.eq.s32.totalorder %s25, 1
      %p111 = por %p109, %p110
      %p112 = scmp.ne.s32.totalorder %s103, %s104
      %p113 = scmp.eq.s32.totalorder %s25, 0
      %p114 = por %p112, %p113
      %p115 = scmp.ne.s32.totalorder %s103, %s104
      %p116 = scmp.eq.s32.totalorder %s26, 1
      %p117 = por %p115, %p116
      %p119 = scmp.ne.s32.totalorder %s104, %s118
      %p120 = scmp.eq.s32.totalorder %s26, 0
      %p121 = por %p119, %p120
      %s123 = sadd.s32 %s122, 1
      %p126 = scmp.eq.s32.totalorder %s20, 1
      %p127 = scmp.ne.s32.totalorder %s122, %s124
      %p128 = scmp.eq.s32.totalorder %s20, 0
      %p129 = por %p127, %p128
      %p130 = scmp.ne.s32.totalorder %s122, %s124
      %p131 = scmp.eq.s32.totalorder %s25, 1
      %p132 = por %p130, %p131
      %p133 = scmp.ne.s32.totalorder %s124, %s125
      %p134 = scmp.eq.s32.totalorder %s25, 0
      %p135 = por %p133, %p134
      %p136 = scmp.ne.s32.totalorder %s124, %s125
      %p137 = scmp.eq.s32.totalorder %s26, 1
      %p138 = por %p136, %p137
      %p140 = scmp.ne.s32.totalorder %s125, %s139
      %p141 = scmp.eq.s32.totalorder %s26, 0
      %p142 = por %p140, %p141
      %s144 = sadd.s32 %s143, 1
      %p147 = scmp.eq.s32.totalorder %s20, 1
      %p148 = scmp.ne.s32.totalorder %s143, %s145
      %p149 = scmp.eq.s32.totalorder %s20, 0
      %p150 = por %p148, %p149
      %p151 = scmp.ne.s32.totalorder %s143, %s145
      %p152 = scmp.eq.s32.totalorder %s25, 1
      %p153 = por %p151, %p152
      %p154 = scmp.ne.s32.totalorder %s145, %s146
      %p155 = scmp.eq.s32.totalorder %s25, 0
      %p156 = por %p154, %p155
      %p157 = scmp.ne.s32.totalorder %s145, %s146
      %p158 = scmp.eq.s32.totalorder %s26, 1
      %p159 = por %p157, %p158
      %p161 = scmp.ne.s32.totalorder %s146, %s160
      %p162 = scmp.eq.s32.totalorder %s26, 0
      %p163 = por %p161, %p162
      %s165 = sadd.s32 %s164, 1
      %p168 = scmp.eq.s32.totalorder %s20, 1
      %p169 = scmp.ne.s32.totalorder %s164, %s166
      %p170 = scmp.eq.s32.totalorder %s20, 0
      %p171 = por %p169, %p170
      %p172 = scmp.ne.s32.totalorder %s164, %s166
      %p173 = scmp.eq.s32.totalorder %s25, 1
      %p174 = por %p172, %p173
      %p175 = scmp.ne.s32.totalorder %s166, %s167
      %p176 = scmp.eq.s32.totalorder %s25, 0
      %p177 = por %p175, %p176
      %p178 = scmp.ne.s32.totalorder %s166, %s167
      %p179 = scmp.eq.s32.totalorder %s26, 1
      %p180 = por %p178, %p179
      %p182 = scmp.ne.s32.totalorder %s167, %s181
      %p183 = scmp.eq.s32.totalorder %s26, 0
      %p184 = por %p182, %p183
      %s186 = sadd.s32 %s185, 1
      %p189 = scmp.eq.s32.totalorder %s20, 1
      %p190 = scmp.ne.s32.totalorder %s185, %s187
      %p191 = scmp.eq.s32.totalorder %s20, 0
      %p192 = por %p190, %p191
      %p193 = scmp.ne.s32.totalorder %s185, %s187
      %p194 = scmp.eq.s32.totalorder %s25, 1
      %p195 = por %p193, %p194
      %p196 = scmp.ne.s32.totalorder %s187, %s188
      %p197 = scmp.eq.s32.totalorder %s25, 0
      %p198 = por %p196, %p197
      %p199 = scmp.ne.s32.totalorder %s187, %s188
      %p200 = scmp.eq.s32.totalorder %s26, 1
      %p201 = por %p199, %p200
      %p203 = scmp.ne.s32.totalorder %s188, %s202
      %p204 = scmp.eq.s32.totalorder %s26, 0
      %p205 = por %p203, %p204
      %s207 = sadd.s32 %s206, 1
      %p210 = scmp.eq.s32.totalorder %s20, 1
      %p211 = scmp.ne.s32.totalorder %s206, %s208
      %p212 = scmp.eq.s32.totalorder %s20, 0
      %p213 = por %p211, %p212
      %p214 = scmp.ne.s32.totalorder %s206, %s208
      %p215 = scmp.eq.s32.totalorder %s25, 1
      %p216 = por %p214, %p215
      %p217 = scmp.ne.s32.totalorder %s208, %s209
      %p218 = scmp.eq.s32.totalorder %s25, 0
      %p219 = por %p217, %p218
      %p220 = scmp.ne.s32.totalorder %s208, %s209
      %p221 = scmp.eq.s32.totalorder %s26, 1
      %p222 = por %p220, %p221
      %p224 = scmp.ne.s32.totalorder %s209, %s223
      %p225 = scmp.eq.s32.totalorder %s26, 0
      %p226 = por %p224, %p225
      %s228 = sadd.s32 %s227, 1
      %p231 = scmp.eq.s32.totalorder %s20, 1
      %p232 = scmp.ne.s32.totalorder %s227, %s229
      %p233 = scmp.eq.s32.totalorder %s20, 0
      %p234 = por %p232, %p233
      %p235 = scmp.ne.s32.totalorder %s227, %s229
      %p236 = scmp.eq.s32.totalorder %s25, 1
      %p237 = por %p235, %p236
      %p238 = scmp.ne.s32.totalorder %s229, %s230
      %p239 = scmp.eq.s32.totalorder %s25, 0
      %p240 = por %p238, %p239
      %p241 = scmp.ne.s32.totalorder %s229, %s230
      %p242 = scmp.eq.s32.totalorder %s26, 1
      %p243 = por %p241, %p242
      %p245 = scmp.ne.s32.totalorder %s230, %s244
      %p246 = scmp.eq.s32.totalorder %s26, 0
      %p247 = por %p245, %p246
      %s249 = sadd.s32 %s248, 1
      %p252 = scmp.eq.s32.totalorder %s20, 1
      %p253 = scmp.ne.s32.totalorder %s248, %s250
      %p254 = scmp.eq.s32.totalorder %s20, 0
      %p255 = por %p253, %p254
      %p256 = scmp.ne.s32.totalorder %s248, %s250
      %p257 = scmp.eq.s32.totalorder %s25, 1
      %p258 = por %p256, %p257
      %p259 = scmp.ne.s32.totalorder %s250, %s251
      %p260 = scmp.eq.s32.totalorder %s25, 0
      %p261 = por %p259, %p260
      %p262 = scmp.ne.s32.totalorder %s250, %s251
      %p263 = scmp.eq.s32.totalorder %s26, 1
      %p264 = por %p262, %p263
      %p266 = scmp.ne.s32.totalorder %s251, %s265
      %p267 = scmp.eq.s32.totalorder %s26, 0
      %p268 = por %p266, %p267
      %s269 = ssub.s32 %s20, %s27
      %p270 = scmp.eq.s32.totalorder %s269, 0
      %s272 = sadd.s32 %s271, 1
      %s273 = scalar_select %p270, %s271, %s272
      %p276 = pneg %p270
      %p277 = scmp.eq.s32.totalorder %s20, 1
      %p278 = por %p276, %p277
      %p279 = scmp.ne.s32.totalorder %s271, %s274
      %p280 = scmp.eq.s32.totalorder %s20, 0
      %p281 = por %p279, %p280
      %p282 = scmp.ne.s32.totalorder %s271, %s274
      %p283 = scmp.eq.s32.totalorder %s25, 1
      %p284 = por %p282, %p283
      %p285 = scmp.ne.s32.totalorder %s274, %s275
      %p286 = scmp.eq.s32.totalorder %s25, 0
      %p287 = por %p285, %p286
      %p288 = scmp.ne.s32.totalorder %s274, %s275
      %p289 = scmp.eq.s32.totalorder %s26, 1
      %p290 = por %p288, %p289
      %p292 = scmp.ne.s32.totalorder %s275, %s291
      %p293 = scmp.eq.s32.totalorder %s26, 0
      %p294 = por %p292, %p293
      %p295 = scmp.le.s32.totalorder 1, %s20
      %p296 = scmp.lt.s32.totalorder %s20, 3
      %p297 = pnand %p295, %p296
      %p298 = pneg %p297
      // Predicated region
      $region9: #{tpu_custom_call.1} parent=5 // pred_check
        _
      $region10: #{tpu_custom_call.1} parent=5 // pred_check_branch
        %300 = sbr.rel (%p297) target = $region12
      $region11: #{tpu_custom_call.1} parent=5 // pred_region
        %s301 = ssub.s32 %s20, 1
        // Predicated region
        $region13: #{tpu_custom_call.1} parent=11 // pred_check
          %p302 = pneg %p93
        $region14: #{tpu_custom_call.1} parent=11 // pred_check_branch
          %304 = sbr.rel (%p302) target = $region16
        $region15: #{tpu_custom_call.1} parent=11 // pred_region
          _
        $region16: #{tpu_custom_call.1} parent=11 // pred_fallthru
          _
        // Predicated region
        $region17: #{tpu_custom_call.1} parent=11 // pred_check
          %p305 = pneg %p114
        $region18: #{tpu_custom_call.1} parent=11 // pred_check_branch
          %307 = sbr.rel (%p305) target = $region20
        $region19: #{tpu_custom_call.1} parent=11 // pred_region
          _
        $region20: #{tpu_custom_call.1} parent=11 // pred_fallthru
          _
        // Predicated region
        $region21: #{tpu_custom_call.1} parent=11 // pred_check
          %p308 = pneg %p135
        $region22: #{tpu_custom_call.1} parent=11 // pred_check_branch
          %310 = sbr.rel (%p308) target = $region24
        $region23: #{tpu_custom_call.1} parent=11 // pred_region
          _
        $region24: #{tpu_custom_call.1} parent=11 // pred_fallthru
          _
        // Predicated region
        $region25: #{tpu_custom_call.1} parent=11 // pred_check
          %p311 = pneg %p156
        $region26: #{tpu_custom_call.1} parent=11 // pred_check_branch
          %313 = sbr.rel (%p311) target = $region28
        $region27: #{tpu_custom_call.1} parent=11 // pred_region
          _
        $region28: #{tpu_custom_call.1} parent=11 // pred_fallthru
          _
        // Predicated region
        $region29: #{tpu_custom_call.1} parent=11 // pred_check
          %p314 = pneg %p177
        $region30: #{tpu_custom_call.1} parent=11 // pred_check_branch
          %316 = sbr.rel (%p314) target = $region32
        $region31: #{tpu_custom_call.1} parent=11 // pred_region
          _
        $region32: #{tpu_custom_call.1} parent=11 // pred_fallthru
          _
        // Predicated region
        $region33: #{tpu_custom_call.1} parent=11 // pred_check
          %p317 = pneg %p198
        $region34: #{tpu_custom_call.1} parent=11 // pred_check_branch
          %319 = sbr.rel (%p317) target = $region36
        $region35: #{tpu_custom_call.1} parent=11 // pred_region
          _
        $region36: #{tpu_custom_call.1} parent=11 // pred_fallthru
          _
        // Predicated region
        $region37: #{tpu_custom_call.1} parent=11 // pred_check
          %p320 = pneg %p219
        $region38: #{tpu_custom_call.1} parent=11 // pred_check_branch
          %322 = sbr.rel (%p320) target = $region40
        $region39: #{tpu_custom_call.1} parent=11 // pred_region
          _
        $region40: #{tpu_custom_call.1} parent=11 // pred_fallthru
          _
        // Predicated region
        $region41: #{tpu_custom_call.1} parent=11 // pred_check
          %p323 = pneg %p240
        $region42: #{tpu_custom_call.1} parent=11 // pred_check_branch
          %325 = sbr.rel (%p323) target = $region44
        $region43: #{tpu_custom_call.1} parent=11 // pred_region
          _
        $region44: #{tpu_custom_call.1} parent=11 // pred_fallthru
          _
        // Predicated region
        $region45: #{tpu_custom_call.1} parent=11 // pred_check
          %p326 = pneg %p261
        $region46: #{tpu_custom_call.1} parent=11 // pred_check_branch
          %328 = sbr.rel (%p326) target = $region48
        $region47: #{tpu_custom_call.1} parent=11 // pred_region
          _
        $region48: #{tpu_custom_call.1} parent=11 // pred_fallthru
          _
      $region12: #{tpu_custom_call.1} parent=5 // pred_fallthru
        _
      %p329 = scmp.lt.s32.totalorder %s20, 2
      // Predicated region
      $region49: #{tpu_custom_call.1} parent=5 // pred_check
        %p330 = pneg %p329
      $region50: #{tpu_custom_call.1} parent=5 // pred_check_branch
        %332 = sbr.rel (%p330) target = $region52
      $region51: #{tpu_custom_call.1} parent=5 // pred_region
        // Predicated region
        $region53: #{tpu_custom_call.1} parent=51 // pred_check
          %p333 = pneg %p40
        $region54: #{tpu_custom_call.1} parent=51 // pred_check_branch
          %335 = sbr.rel (%p333) target = $region56
        $region55: #{tpu_custom_call.1} parent=51 // pred_region
          %s336 = smul.u32 2, %s20
          %p337 = scmp.lt.s32.totalorder %s336, 3
          %s338 = scalar_select %p337, %s336, 3
          %s339 = smul.addr %s338, 2
          %s340 = smul.addr %s339, 8
          %s341 = scalar_lea.vmem %s0, %s340
          %s342 = smul.u32 2, %s20
        $region56: #{tpu_custom_call.1} parent=51 // pred_fallthru
          _
        // Predicated region
        $region57: #{tpu_custom_call.1} parent=51 // pred_check
          %p343 = pneg %p66
        $region58: #{tpu_custom_call.1} parent=51 // pred_check_branch
          %345 = sbr.rel (%p343) target = $region60
        $region59: #{tpu_custom_call.1} parent=51 // pred_region
          %s346 = smul.u32 2, %s20
          %p347 = scmp.lt.s32.totalorder %s346, 3
          %s348 = scalar_select %p347, %s346, 3
          %s349 = smul.addr %s348, 8
          %s350 = scalar_lea.vmem %s1, %s349
          %s351 = smul.u32 2, %s20
        $region60: #{tpu_custom_call.1} parent=51 // pred_fallthru
          _
      $region52: #{tpu_custom_call.1} parent=5 // pred_fallthru
        _
      %p352 = scmp.le.s32.totalorder 1, %s20
      %p353 = scmp.lt.s32.totalorder %s20, 3
      %p354 = pnand %p352, %p353
      %p355 = pneg %p354
      // Predicated region
      $region61: #{tpu_custom_call.1} parent=5 // pred_check
        _
      $region62: #{tpu_custom_call.1} parent=5 // pred_check_branch
        %357 = sbr.rel (%p354) target = $region64
      $region63: #{tpu_custom_call.1} parent=5 // pred_region
        %s358 = ssub.s32 %s20, 1
        %s359 = smul.u32 2, %s25
        %p360 = scmp.lt.s32.totalorder %s359, 3
        %s361 = scalar_select %p360, %s359, 3
        %s362 = smul.addr %s361, 2
        %s363 = smul.addr %s362, 8
        %s364 = scalar_lea.vmem %s0, %s363
        %p365 = pneg %p46
        %p366 = pneg %p43
        %s367 = smul.u32 2, %s25
        %p368 = scmp.lt.s32.totalorder %s367, 3
        %s369 = scalar_select %p368, %s367, 3
        %s370 = smul.addr %s369, 8
        %s371 = scalar_lea.vmem %s1, %s370
        %p372 = pneg %p72
        %p373 = pneg %p69
        %p374 = pneg %p93
        %p375 = pneg %p90
        %p376 = pneg %p114
        %p377 = pneg %p111
        %p378 = pneg %p135
        %p379 = pneg %p132
        %p380 = pneg %p156
        %p381 = pneg %p153
        %p382 = pneg %p177
        %p383 = pneg %p174
        %p384 = pneg %p198
        %p385 = pneg %p195
        %p386 = pneg %p219
        %p387 = pneg %p216
        %p388 = pneg %p240
        %p389 = pneg %p237
        %p390 = pneg %p261
        %p391 = pneg %p258
        %p392 = pneg %p287
        %p393 = pneg %p284
        %s394 = sand.u32 %s274, 1
        %s395 = scalar_lea.sflag [#allocation3], %s394
        %s396 = sand.u32 %s274, 1
        %s397 = smul.addr %s396, 16
        %s398 = scalar_lea.vmem [#allocation2], %s397
        %s399 = smul.u32 2, %s25
        %p400 = scmp.lt.s32.totalorder %s399, 3
        %s401 = scalar_select %p400, %s399, 3
        %s402 = smul.addr %s401, 2
        %s403 = smul.addr %s402, 8
        %s404 = scalar_lea.vmem %s0, %s403
        %s405 = smul.u32 2, %s25
        %s406 = smul.u32 2, %s25
        %p407 = scmp.lt.s32.totalorder %s406, 3
        %s408 = scalar_select %p407, %s406, 3
        %s409 = smul.addr %s408, 8
        %s410 = scalar_lea.vmem %s1, %s409
        %s411 = smul.u32 2, %s25
        %s412 = smul.u32 2, %s25
        %v414 = vld [vmem:[%s404] sm:$0xff]
        %v415 = vld [vmem:[%s404 + $0x8] sm:$0xff]
        %v416 = vld [vmem:[%s404 + $0x10] sm:$0xff]
        %v417 = vld [vmem:[%s404 + $0x18] sm:$0xff]
        %v418 = vld [vmem:[%s410] sm:$0xff]
        %v419 = vld [vmem:[%s410 + $0x8] sm:$0xff]
        %v420 = vld [vmem:[%s2] sm:$0x1]
        %v421 = vld [vmem:[%s3] sm:$0x1]
        %422 = vadd.xlane.f32.xlu0 %v414
        %v423 = vpop.xlane.xlu0 %422
        %424 = vadd.xlane.f32.xlu0 %v415
        %v425 = vpop.xlane.xlu0 %424
        %426 = vadd.xlane.f32.xlu0 %v416
        %v427 = vpop.xlane.xlu0 %426
        %428 = vadd.xlane.f32.xlu0 %v417
        %v429 = vpop.xlane.xlu0 %428
        %v430 = vrcp.pop 128.0
        %v431 = vmul.f32 %v423, %v430
        %v432 = vmul.f32 %v425, %v430
        %v433 = vmul.f32 %v427, %v430
        %v434 = vmul.f32 %v429, %v430
        %v435 = vsub.f32 %v414, %v431
        %v436 = vsub.f32 %v415, %v432
        %v437 = vsub.f32 %v416, %v433
        %v438 = vsub.f32 %v417, %v434
        %v439 = vmul.f32 %v435, %v435
        %v440 = vmul.f32 %v436, %v436
        %v441 = vmul.f32 %v437, %v437
        %v442 = vmul.f32 %v438, %v438
        %443 = vadd.xlane.f32.xlu0 %v439
        %v444 = vpop.xlane.xlu0 %443
        %445 = vadd.xlane.f32.xlu0 %v440
        %v446 = vpop.xlane.xlu0 %445
        %447 = vadd.xlane.f32.xlu0 %v441
        %v448 = vpop.xlane.xlu0 %447
        %449 = vadd.xlane.f32.xlu0 %v442
        %v450 = vpop.xlane.xlu0 %449
        %v451 = vmul.f32 %v444, %v430
        %v452 = vmul.f32 %v446, %v430
        %v453 = vmul.f32 %v448, %v430
        %v454 = vmul.f32 %v450, %v430
        %v455 = vadd.f32 %v451, 1e-05
        %v456 = vadd.f32 %v452, 1e-05
        %v457 = vadd.f32 %v453, 1e-05
        %v458 = vadd.f32 %v454, 1e-05
        %v459 = vrsqrt.pop %v455
        %v460 = vrsqrt.pop %v456
        %v461 = vrsqrt.pop %v457
        %v462 = vrsqrt.pop %v458
        %v463 = vmul.f32 %v435, %v459
        %v464 = vmul.f32 %v436, %v460
        %v465 = vmul.f32 %v437, %v461
        %v466 = vmul.f32 %v438, %v462
        %v468 = vlaneseq
        %v469 = vshrl.u32 %v468, 7
        %v470 = vsub.s32 0, %v469
        %v471 = vrot.slane %v420, %v470
        %v473 = vmul.f32 %v463, %v471
        %v474 = vmul.f32 %v464, %v471
        %v475 = vmul.f32 %v465, %v471
        %v476 = vmul.f32 %v466, %v471
        %v478 = vlaneseq
        %v479 = vshrl.u32 %v478, 7
        %v480 = vsub.s32 0, %v479
        %v481 = vrot.slane %v421, %v480
        %v483 = vadd.f32 %v473, %v481
        %v484 = vadd.f32 %v474, %v481
        %v485 = vadd.f32 %v475, %v481
        %v486 = vadd.f32 %v476, %v481
        %v487 = vld [vmem:[%s4] sm:$0x1]
        %v488 = vld [vmem:[%s5] sm:$0x1]
        %489 = vadd.xlane.f32.xlu0 %v418
        %v490 = vpop.xlane.xlu0 %489
        %491 = vadd.xlane.f32.xlu0 %v419
        %v492 = vpop.xlane.xlu0 %491
        %v493 = vmul.f32 %v490, %v430
        %v494 = vmul.f32 %v492, %v430
        %v495 = vsub.f32 %v418, %v493
        %v496 = vsub.f32 %v419, %v494
        %v497 = vmul.f32 %v495, %v495
        %v498 = vmul.f32 %v496, %v496
        %499 = vadd.xlane.f32.xlu0 %v497
        %v500 = vpop.xlane.xlu0 %499
        %501 = vadd.xlane.f32.xlu0 %v498
        %v502 = vpop.xlane.xlu0 %501
        %v503 = vmul.f32 %v500, %v430
        %v504 = vmul.f32 %v502, %v430
        %v505 = vadd.f32 %v503, 1e-05
        %v506 = vadd.f32 %v504, 1e-05
        %v507 = vrsqrt.pop %v505
        %v508 = vrsqrt.pop %v506
        %v509 = vmul.f32 %v495, %v507
        %v510 = vmul.f32 %v496, %v508
        %v512 = vlaneseq
        %v513 = vshrl.u32 %v512, 7
        %v514 = vsub.s32 0, %v513
        %v515 = vrot.slane %v487, %v514
        %v517 = vmul.f32 %v509, %v515
        %v518 = vmul.f32 %v510, %v515
        %v520 = vlaneseq
        %v521 = vshrl.u32 %v520, 7
        %v522 = vsub.s32 0, %v521
        %v523 = vrot.slane %v488, %v522
        %v525 = vadd.f32 %v517, %v523
        %v526 = vadd.f32 %v518, %v523
        %v527 = vpack.c.bf16 %v484, %v483
        %v528 = vpack.c.bf16 %v485, %v525
        %v529 = vpack.c.bf16 %v526, %v486
        %v530 = vpack.c.bf16 %v526, %v525
        %v531 = vld [vmem:[%s6] sm:$0xf]
        %v532 = vld [vmem:[%s6 + $0x4] sm:$0xf]
        %v533 = vld [vmem:[%s6 + $0x8] sm:$0xf]
        %v534 = vld [vmem:[%s6 + $0xc] sm:$0xf]
        %v535 = vld [vmem:[%s6 + $0x10] sm:$0xf]
        %v536 = vld [vmem:[%s6 + $0x14] sm:$0xf]
        %v537 = vld [vmem:[%s6 + $0x18] sm:$0xf]
        %v538 = vld [vmem:[%s6 + $0x1c] sm:$0xf]
        %v539 = vld [vmem:[%s6 + $0x20] sm:$0xf]
        %v540 = vld [vmem:[%s6 + $0x24] sm:$0xf]
        %v541 = vld [vmem:[%s6 + $0x28] sm:$0xf]
        %v542 = vld [vmem:[%s6 + $0x2c] sm:$0xf]
        %v543 = vld [vmem:[%s6 + $0x30] sm:$0xf]
        %v544 = vld [vmem:[%s6 + $0x34] sm:$0xf]
        %v545 = vld [vmem:[%s6 + $0x38] sm:$0xf]
        %v546 = vld [vmem:[%s6 + $0x3c] sm:$0xf]
        %v547 = vld [vmem:[%s6 + $0x40] sm:$0xf]
        %v548 = vld [vmem:[%s6 + $0x44] sm:$0xf]
        %v549 = vld [vmem:[%s6 + $0x48] sm:$0xf]
        %v550 = vld [vmem:[%s6 + $0x4c] sm:$0xf]
        %v551 = vld [vmem:[%s6 + $0x50] sm:$0xf]
        %v552 = vld [vmem:[%s6 + $0x54] sm:$0xf]
        %v553 = vld [vmem:[%s6 + $0x58] sm:$0xf]
        %v554 = vld [vmem:[%s6 + $0x5c] sm:$0xf]
        %v555 = vld [vmem:[%s6 + $0x60] sm:$0xf]
        %v556 = vld [vmem:[%s6 + $0x64] sm:$0xf]
        %v557 = vld [vmem:[%s6 + $0x68] sm:$0xf]
        %v558 = vld [vmem:[%s6 + $0x6c] sm:$0xf]
        %v559 = vld [vmem:[%s6 + $0x70] sm:$0xf]
        %v560 = vld [vmem:[%s6 + $0x74] sm:$0xf]
        %v561 = vld [vmem:[%s6 + $0x78] sm:$0xf]
        %v562 = vld [vmem:[%s6 + $0x7c] sm:$0xf]
        %v563 = vld [vmem:[%s6 + $0x80] sm:$0xf]
        %v564 = vld [vmem:[%s6 + $0x84] sm:$0xf]
        %v565 = vld [vmem:[%s6 + $0x88] sm:$0xf]
        %v566 = vld [vmem:[%s6 + $0x8c] sm:$0xf]
        %v567 = vld [vmem:[%s6 + $0x90] sm:$0xf]
        %v568 = vld [vmem:[%s6 + $0x94] sm:$0xf]
        %v569 = vld [vmem:[%s6 + $0x98] sm:$0xf]
        %v570 = vld [vmem:[%s6 + $0x9c] sm:$0xf]
        %v571 = vld [vmem:[%s6 + $0xa0] sm:$0xf]
        %v572 = vld [vmem:[%s6 + $0xa4] sm:$0xf]
        %v573 = vld [vmem:[%s6 + $0xa8] sm:$0xf]
        %v574 = vld [vmem:[%s6 + $0xac] sm:$0xf]
        %v575 = vld [vmem:[%s6 + $0xb0] sm:$0xf]
        %v576 = vld [vmem:[%s6 + $0xb4] sm:$0xf]
        %v577 = vld [vmem:[%s6 + $0xb8] sm:$0xf]
        %v578 = vld [vmem:[%s6 + $0xbc] sm:$0xf]
        %v579 = vld [vmem:[%s6 + $0xc0] sm:$0xf]
        %v580 = vld [vmem:[%s6 + $0xc4] sm:$0xf]
        %v581 = vld [vmem:[%s6 + $0xc8] sm:$0xf]
        %v582 = vld [vmem:[%s6 + $0xcc] sm:$0xf]
        %v583 = vld [vmem:[%s6 + $0xd0] sm:$0xf]
        %v584 = vld [vmem:[%s6 + $0xd4] sm:$0xf]
        %v585 = vld [vmem:[%s6 + $0xd8] sm:$0xf]
        %v586 = vld [vmem:[%s6 + $0xdc] sm:$0xf]
        %v587 = vld [vmem:[%s6 + $0xe0] sm:$0xf]
        %v588 = vld [vmem:[%s6 + $0xe4] sm:$0xf]
        %v589 = vld [vmem:[%s6 + $0xe8] sm:$0xf]
        %v590 = vld [vmem:[%s6 + $0xec] sm:$0xf]
        %v591 = vld [vmem:[%s6 + $0xf0] sm:$0xf]
        %v592 = vld [vmem:[%s6 + $0xf4] sm:$0xf]
        %v593 = vld [vmem:[%s6 + $0xf8] sm:$0xf]
        %v594 = vld [vmem:[%s6 + $0xfc] sm:$0xf]
        %v611 = vunpack.c.l.b16 %v531
        %v612 = vunpack.c.l.b16 %v532
        %v613 = vunpack.c.l.b16 %v533
        %v614 = vunpack.c.l.b16 %v534
        %v615 = vunpack.c.l.b16 %v535
        %v616 = vunpack.c.l.b16 %v536
        %v617 = vunpack.c.l.b16 %v537
        %v618 = vunpack.c.l.b16 %v538
        %v619 = vunpack.c.l.b16 %v539
        %v620 = vunpack.c.l.b16 %v540
        %v621 = vunpack.c.l.b16 %v541
        %v622 = vunpack.c.l.b16 %v542
        %v623 = vunpack.c.l.b16 %v543
        %v624 = vunpack.c.l.b16 %v544
        %v625 = vunpack.c.l.b16 %v545
        %v626 = vunpack.c.l.b16 %v546
        %v627 = vpack.c.b16 %v612, %v611
        %v628 = vpack.c.b16 %v614, %v613
        %v629 = vpack.c.b16 %v616, %v615
        %v630 = vpack.c.b16 %v618, %v617
        %v631 = vpack.c.b16 %v620, %v619
        %v632 = vpack.c.b16 %v622, %v621
        %v633 = vpack.c.b16 %v624, %v623
        %v634 = vpack.c.b16 %v626, %v625
        %643 = vmatprep.subr.bf16.mxu0 0
        %644 = vmatpush1.bf16.msra.mxu0 %v634
        %645 = vmatprep.subr.bf16.mxu0 0
        %646 = vmatpush1.bf16.msra.mxu0 %v633
        %647 = vmatprep.subr.bf16.mxu0 0
        %648 = vmatpush1.bf16.msra.mxu0 %v632
        %649 = vmatprep.subr.bf16.mxu0 0
        %650 = vmatpush1.bf16.msra.mxu0 %v631
        %651 = vmatprep.subr.bf16.mxu0 0
        %652 = vmatpush1.bf16.msra.mxu0 %v630
        %653 = vmatprep.subr.bf16.mxu0 0
        %654 = vmatpush1.bf16.msra.mxu0 %v629
        %655 = vmatprep.subr.bf16.mxu0 0
        %656 = vmatpush1.bf16.msra.mxu0 %v628
        %657 = vmatprep.subr.bf16.mxu0 0
        %658 = vmatpush1.bf16.msra.mxu0 %v627
        %659 = vmatprep.subr.bf16.mxu0 0
        %660 = vmatpush2.bf16.msra.mxu0 0
        %661 = vmatprep.subr.bf16.mxu0 0
        %662 = vmatpush2.bf16.msra.mxu0 0
        %663 = vmatprep.subr.bf16.mxu0 0
        %664 = vmatpush2.bf16.msra.mxu0 0
        %665 = vmatprep.subr.bf16.mxu0 0
        %666 = vmatpush2.bf16.msra.mxu0 0
        %667 = vmatprep.subr.bf16.mxu0 0
        %668 = vmatpush2.bf16.msra.mxu0 0
        %669 = vmatprep.subr.bf16.mxu0 0
        %670 = vmatpush2.bf16.msra.mxu0 0
        %671 = vmatprep.subr.bf16.mxu0 0
        %672 = vmatpush2.bf16.msra.mxu0 0
        %673 = vmatprep.subr.bf16.mxu0 0
        %674 = vmatpush2.bf16.msra.mxu0 0
        %675 = vmatprep.mubr.bf16.mxu0 0
        %676 = vmatmul.mubr.bf16.gmra.mxu0 %v530
        %v677 = vpop.f32.mrf.mxu0
        %v678 = vadd.f32 0.0, %v677
        %v679 = vpop.f32.mrf.mxu0
        %v680 = vpop.f32.mrf.mxu0
        %v681 = vadd.f32 0.0, %v680
        %v682 = vpop.f32.mrf.mxu0
        %683 = vdwg.mxu0
        %v700 = vunpack.c.l.b16 %v547
        %v701 = vunpack.c.l.b16 %v548
        %v702 = vunpack.c.l.b16 %v549
        %v703 = vunpack.c.l.b16 %v550
        %v704 = vunpack.c.l.b16 %v551
        %v705 = vunpack.c.l.b16 %v552
        %v706 = vunpack.c.l.b16 %v553
        %v707 = vunpack.c.l.b16 %v554
        %v708 = vunpack.c.l.b16 %v555
        %v709 = vunpack.c.l.b16 %v556
        %v710 = vunpack.c.l.b16 %v557
        %v711 = vunpack.c.l.b16 %v558
        %v712 = vunpack.c.l.b16 %v559
        %v713 = vunpack.c.l.b16 %v560
        %v714 = vunpack.c.l.b16 %v561
        %v715 = vunpack.c.l.b16 %v562
        %v716 = vpack.c.b16 %v701, %v700
        %v717 = vpack.c.b16 %v703, %v702
        %v718 = vpack.c.b16 %v705, %v704
        %v719 = vpack.c.b16 %v707, %v706
        %v720 = vpack.c.b16 %v709, %v708
        %v721 = vpack.c.b16 %v711, %v710
        %v722 = vpack.c.b16 %v713, %v712
        %v723 = vpack.c.b16 %v715, %v714
        %732 = vmatprep.subr.bf16.mxu0 0
        %733 = vmatpush1.bf16.msra.mxu0 %v723
        %734 = vmatprep.subr.bf16.mxu0 0
        %735 = vmatpush1.bf16.msra.mxu0 %v722
        %736 = vmatprep.subr.bf16.mxu0 0
        %737 = vmatpush1.bf16.msra.mxu0 %v721
        %738 = vmatprep.subr.bf16.mxu0 0
        %739 = vmatpush1.bf16.msra.mxu0 %v720
        %740 = vmatprep.subr.bf16.mxu0 0
        %741 = vmatpush1.bf16.msra.mxu0 %v719
        %742 = vmatprep.subr.bf16.mxu0 0
        %743 = vmatpush1.bf16.msra.mxu0 %v718
        %744 = vmatprep.subr.bf16.mxu0 0
        %745 = vmatpush1.bf16.msra.mxu0 %v717
        %746 = vmatprep.subr.bf16.mxu0 0
        %747 = vmatpush1.bf16.msra.mxu0 %v716
        %748 = vmatprep.subr.bf16.mxu0 0
        %749 = vmatpush2.bf16.msra.mxu0 0
        %750 = vmatprep.subr.bf16.mxu0 0
        %751 = vmatpush2.bf16.msra.mxu0 0
        %752 = vmatprep.subr.bf16.mxu0 0
        %753 = vmatpush2.bf16.msra.mxu0 0
        %754 = vmatprep.subr.bf16.mxu0 0
        %755 = vmatpush2.bf16.msra.mxu0 0
        %756 = vmatprep.subr.bf16.mxu0 0
        %757 = vmatpush2.bf16.msra.mxu0 0
        %758 = vmatprep.subr.bf16.mxu0 0
        %759 = vmatpush2.bf16.msra.mxu0 0
        %760 = vmatprep.subr.bf16.mxu0 0
        %761 = vmatpush2.bf16.msra.mxu0 0
        %762 = vmatprep.subr.bf16.mxu0 0
        %763 = vmatpush2.bf16.msra.mxu0 0
        %764 = vmatprep.mubr.bf16.mxu0 0
        %765 = vmatmul.mubr.bf16.gmra.mxu0 %v530
        %v766 = vpop.f32.mrf.mxu0
        %v767 = vadd.f32 0.0, %v766
        %v768 = vpop.f32.mrf.mxu0
        %v769 = vpop.f32.mrf.mxu0
        %v770 = vadd.f32 0.0, %v769
        %v771 = vpop.f32.mrf.mxu0
        %772 = vdwg.mxu0
        %v789 = vunpack.c.l.b16 %v563
        %v790 = vunpack.c.l.b16 %v564
        %v791 = vunpack.c.l.b16 %v565
        %v792 = vunpack.c.l.b16 %v566
        %v793 = vunpack.c.l.b16 %v567
        %v794 = vunpack.c.l.b16 %v568
        %v795 = vunpack.c.l.b16 %v569
        %v796 = vunpack.c.l.b16 %v570
        %v797 = vunpack.c.l.b16 %v571
        %v798 = vunpack.c.l.b16 %v572
        %v799 = vunpack.c.l.b16 %v573
        %v800 = vunpack.c.l.b16 %v574
        %v801 = vunpack.c.l.b16 %v575
        %v802 = vunpack.c.l.b16 %v576
        %v803 = vunpack.c.l.b16 %v577
        %v804 = vunpack.c.l.b16 %v578
        %v805 = vpack.c.b16 %v790, %v789
        %v806 = vpack.c.b16 %v792, %v791
        %v807 = vpack.c.b16 %v794, %v793
        %v808 = vpack.c.b16 %v796, %v795
        %v809 = vpack.c.b16 %v798, %v797
        %v810 = vpack.c.b16 %v800, %v799
        %v811 = vpack.c.b16 %v802, %v801
        %v812 = vpack.c.b16 %v804, %v803
        %821 = vmatprep.subr.bf16.mxu0 0
        %822 = vmatpush1.bf16.msra.mxu0 %v812
        %823 = vmatprep.subr.bf16.mxu0 0
        %824 = vmatpush1.bf16.msra.mxu0 %v811
        %825 = vmatprep.subr.bf16.mxu0 0
        %826 = vmatpush1.bf16.msra.mxu0 %v810
        %827 = vmatprep.subr.bf16.mxu0 0
        %828 = vmatpush1.bf16.msra.mxu0 %v809
        %829 = vmatprep.subr.bf16.mxu0 0
        %830 = vmatpush1.bf16.msra.mxu0 %v808
        %831 = vmatprep.subr.bf16.mxu0 0
        %832 = vmatpush1.bf16.msra.mxu0 %v807
        %833 = vmatprep.subr.bf16.mxu0 0
        %834 = vmatpush1.bf16.msra.mxu0 %v806
        %835 = vmatprep.subr.bf16.mxu0 0
        %836 = vmatpush1.bf16.msra.mxu0 %v805
        %837 = vmatprep.subr.bf16.mxu0 0
        %838 = vmatpush2.bf16.msra.mxu0 0
        %839 = vmatprep.subr.bf16.mxu0 0
        %840 = vmatpush2.bf16.msra.mxu0 0
        %841 = vmatprep.subr.bf16.mxu0 0
        %842 = vmatpush2.bf16.msra.mxu0 0
        %843 = vmatprep.subr.bf16.mxu0 0
        %844 = vmatpush2.bf16.msra.mxu0 0
        %845 = vmatprep.subr.bf16.mxu0 0
        %846 = vmatpush2.bf16.msra.mxu0 0
        %847 = vmatprep.subr.bf16.mxu0 0
        %848 = vmatpush2.bf16.msra.mxu0 0
        %849 = vmatprep.subr.bf16.mxu0 0
        %850 = vmatpush2.bf16.msra.mxu0 0
        %851 = vmatprep.subr.bf16.mxu0 0
        %852 = vmatpush2.bf16.msra.mxu0 0
        %853 = vmatprep.mubr.bf16.mxu0 0
        %854 = vmatmul.mubr.bf16.gmra.mxu0 %v530
        %v855 = vpop.f32.mrf.mxu0
        %v856 = vadd.f32 0.0, %v855
        %v857 = vpop.f32.mrf.mxu0
        %v858 = vpop.f32.mrf.mxu0
        %v859 = vadd.f32 0.0, %v858
        %v860 = vpop.f32.mrf.mxu0
        %861 = vdwg.mxu0
        %v878 = vunpack.c.l.b16 %v579
        %v879 = vunpack.c.l.b16 %v580
        %v880 = vunpack.c.l.b16 %v581
        %v881 = vunpack.c.l.b16 %v582
        %v882 = vunpack.c.l.b16 %v583
        %v883 = vunpack.c.l.b16 %v584
        %v884 = vunpack.c.l.b16 %v585
        %v885 = vunpack.c.l.b16 %v586
        %v886 = vunpack.c.l.b16 %v587
        %v887 = vunpack.c.l.b16 %v588
        %v888 = vunpack.c.l.b16 %v589
        %v889 = vunpack.c.l.b16 %v590
        %v890 = vunpack.c.l.b16 %v591
        %v891 = vunpack.c.l.b16 %v592
        %v892 = vunpack.c.l.b16 %v593
        %v893 = vunpack.c.l.b16 %v594
        %v894 = vpack.c.b16 %v879, %v878
        %v895 = vpack.c.b16 %v881, %v880
        %v896 = vpack.c.b16 %v883, %v882
        %v897 = vpack.c.b16 %v885, %v884
        %v898 = vpack.c.b16 %v887, %v886
        %v899 = vpack.c.b16 %v889, %v888
        %v900 = vpack.c.b16 %v891, %v890
        %v901 = vpack.c.b16 %v893, %v892
        %910 = vmatprep.subr.bf16.mxu0 0
        %911 = vmatpush1.bf16.msra.mxu0 %v901
        %912 = vmatprep.subr.bf16.mxu0 0
        %913 = vmatpush1.bf16.msra.mxu0 %v900
        %914 = vmatprep.subr.bf16.mxu0 0
        %915 = vmatpush1.bf16.msra.mxu0 %v899
        %916 = vmatprep.subr.bf16.mxu0 0
        %917 = vmatpush1.bf16.msra.mxu0 %v898
        %918 = vmatprep.subr.bf16.mxu0 0
        %919 = vmatpush1.bf16.msra.mxu0 %v897
        %920 = vmatprep.subr.bf16.mxu0 0
        %921 = vmatpush1.bf16.msra.mxu0 %v896
        %922 = vmatprep.subr.bf16.mxu0 0
        %923 = vmatpush1.bf16.msra.mxu0 %v895
        %924 = vmatprep.subr.bf16.mxu0 0
        %925 = vmatpush1.bf16.msra.mxu0 %v894
        %926 = vmatprep.subr.bf16.mxu0 0
        %927 = vmatpush2.bf16.msra.mxu0 0
        %928 = vmatprep.subr.bf16.mxu0 0
        %929 = vmatpush2.bf16.msra.mxu0 0
        %930 = vmatprep.subr.bf16.mxu0 0
        %931 = vmatpush2.bf16.msra.mxu0 0
        %932 = vmatprep.subr.bf16.mxu0 0
        %933 = vmatpush2.bf16.msra.mxu0 0
        %934 = vmatprep.subr.bf16.mxu0 0
        %935 = vmatpush2.bf16.msra.mxu0 0
        %936 = vmatprep.subr.bf16.mxu0 0
        %937 = vmatpush2.bf16.msra.mxu0 0
        %938 = vmatprep.subr.bf16.mxu0 0
        %939 = vmatpush2.bf16.msra.mxu0 0
        %940 = vmatprep.subr.bf16.mxu0 0
        %941 = vmatpush2.bf16.msra.mxu0 0
        %942 = vmatprep.mubr.bf16.mxu0 0
        %943 = vmatmul.mubr.bf16.gmra.mxu0 %v530
        %v944 = vpop.f32.mrf.mxu0
        %v945 = vadd.f32 0.0, %v944
        %v946 = vpop.f32.mrf.mxu0
        %v947 = vpop.f32.mrf.mxu0
        %v948 = vadd.f32 0.0, %v947
        %v949 = vpop.f32.mrf.mxu0
        %950 = vdwg.mxu0
        %v951 = vld [vmem:[%s7] sm:$0xf]
        %v952 = vld [vmem:[%s7 + $0x4] sm:$0xf]
        %v953 = vld [vmem:[%s7 + $0x8] sm:$0xf]
        %v954 = vld [vmem:[%s7 + $0xc] sm:$0xf]
        %v955 = vld [vmem:[%s7 + $0x10] sm:$0xf]
        %v956 = vld [vmem:[%s7 + $0x14] sm:$0xf]
        %v957 = vld [vmem:[%s7 + $0x18] sm:$0xf]
        %v958 = vld [vmem:[%s7 + $0x1c] sm:$0xf]
        %v959 = vld [vmem:[%s7 + $0x20] sm:$0xf]
        %v960 = vld [vmem:[%s7 + $0x24] sm:$0xf]
        %v961 = vld [vmem:[%s7 + $0x28] sm:$0xf]
        %v962 = vld [vmem:[%s7 + $0x2c] sm:$0xf]
        %v963 = vld [vmem:[%s7 + $0x30] sm:$0xf]
        %v964 = vld [vmem:[%s7 + $0x34] sm:$0xf]
        %v965 = vld [vmem:[%s7 + $0x38] sm:$0xf]
        %v966 = vld [vmem:[%s7 + $0x3c] sm:$0xf]
        %v967 = vld [vmem:[%s7 + $0x40] sm:$0xf]
        %v968 = vld [vmem:[%s7 + $0x44] sm:$0xf]
        %v969 = vld [vmem:[%s7 + $0x48] sm:$0xf]
        %v970 = vld [vmem:[%s7 + $0x4c] sm:$0xf]
        %v971 = vld [vmem:[%s7 + $0x50] sm:$0xf]
        %v972 = vld [vmem:[%s7 + $0x54] sm:$0xf]
        %v973 = vld [vmem:[%s7 + $0x58] sm:$0xf]
        %v974 = vld [vmem:[%s7 + $0x5c] sm:$0xf]
        %v975 = vld [vmem:[%s7 + $0x60] sm:$0xf]
        %v976 = vld [vmem:[%s7 + $0x64] sm:$0xf]
        %v977 = vld [vmem:[%s7 + $0x68] sm:$0xf]
        %v978 = vld [vmem:[%s7 + $0x6c] sm:$0xf]
        %v979 = vld [vmem:[%s7 + $0x70] sm:$0xf]
        %v980 = vld [vmem:[%s7 + $0x74] sm:$0xf]
        %v981 = vld [vmem:[%s7 + $0x78] sm:$0xf]
        %v982 = vld [vmem:[%s7 + $0x7c] sm:$0xf]
        %v983 = vld [vmem:[%s7 + $0x80] sm:$0xf]
        %v984 = vld [vmem:[%s7 + $0x84] sm:$0xf]
        %v985 = vld [vmem:[%s7 + $0x88] sm:$0xf]
        %v986 = vld [vmem:[%s7 + $0x8c] sm:$0xf]
        %v987 = vld [vmem:[%s7 + $0x90] sm:$0xf]
        %v988 = vld [vmem:[%s7 + $0x94] sm:$0xf]
        %v989 = vld [vmem:[%s7 + $0x98] sm:$0xf]
        %v990 = vld [vmem:[%s7 + $0x9c] sm:$0xf]
        %v991 = vld [vmem:[%s7 + $0xa0] sm:$0xf]
        %v992 = vld [vmem:[%s7 + $0xa4] sm:$0xf]
        %v993 = vld [vmem:[%s7 + $0xa8] sm:$0xf]
        %v994 = vld [vmem:[%s7 + $0xac] sm:$0xf]
        %v995 = vld [vmem:[%s7 + $0xb0] sm:$0xf]
        %v996 = vld [vmem:[%s7 + $0xb4] sm:$0xf]
        %v997 = vld [vmem:[%s7 + $0xb8] sm:$0xf]
        %v998 = vld [vmem:[%s7 + $0xbc] sm:$0xf]
        %v999 = vld [vmem:[%s7 + $0xc0] sm:$0xf]
        %v1000 = vld [vmem:[%s7 + $0xc4] sm:$0xf]
        %v1001 = vld [vmem:[%s7 + $0xc8] sm:$0xf]
        %v1002 = vld [vmem:[%s7 + $0xcc] sm:$0xf]
        %v1003 = vld [vmem:[%s7 + $0xd0] sm:$0xf]
        %v1004 = vld [vmem:[%s7 + $0xd4] sm:$0xf]
        %v1005 = vld [vmem:[%s7 + $0xd8] sm:$0xf]
        %v1006 = vld [vmem:[%s7 + $0xdc] sm:$0xf]
        %v1007 = vld [vmem:[%s7 + $0xe0] sm:$0xf]
        %v1008 = vld [vmem:[%s7 + $0xe4] sm:$0xf]
        %v1009 = vld [vmem:[%s7 + $0xe8] sm:$0xf]
        %v1010 = vld [vmem:[%s7 + $0xec] sm:$0xf]
        %v1011 = vld [vmem:[%s7 + $0xf0] sm:$0xf]
        %v1012 = vld [vmem:[%s7 + $0xf4] sm:$0xf]
        %v1013 = vld [vmem:[%s7 + $0xf8] sm:$0xf]
        %v1014 = vld [vmem:[%s7 + $0xfc] sm:$0xf]
        %v1015 = vld [vmem:[%s7 + $0x100] sm:$0xf]
        %v1016 = vld [vmem:[%s7 + $0x104] sm:$0xf]
        %v1017 = vld [vmem:[%s7 + $0x108] sm:$0xf]
        %v1018 = vld [vmem:[%s7 + $0x10c] sm:$0xf]
        %v1019 = vld [vmem:[%s7 + $0x110] sm:$0xf]
        %v1020 = vld [vmem:[%s7 + $0x114] sm:$0xf]
        %v1021 = vld [vmem:[%s7 + $0x118] sm:$0xf]
        %v1022 = vld [vmem:[%s7 + $0x11c] sm:$0xf]
        %v1023 = vld [vmem:[%s7 + $0x120] sm:$0xf]
        %v1024 = vld [vmem:[%s7 + $0x124] sm:$0xf]
        %v1025 = vld [vmem:[%s7 + $0x128] sm:$0xf]
        %v1026 = vld [vmem:[%s7 + $0x12c] sm:$0xf]
        %v1027 = vld [vmem:[%s7 + $0x130] sm:$0xf]
        %v1028 = vld [vmem:[%s7 + $0x134] sm:$0xf]
        %v1029 = vld [vmem:[%s7 + $0x138] sm:$0xf]
        %v1030 = vld [vmem:[%s7 + $0x13c] sm:$0xf]
        %v1031 = vld [vmem:[%s7 + $0x140] sm:$0xf]
        %v1032 = vld [vmem:[%s7 + $0x144] sm:$0xf]
        %v1033 = vld [vmem:[%s7 + $0x148] sm:$0xf]
        %v1034 = vld [vmem:[%s7 + $0x14c] sm:$0xf]
        %v1035 = vld [vmem:[%s7 + $0x150] sm:$0xf]
        %v1036 = vld [vmem:[%s7 + $0x154] sm:$0xf]
        %v1037 = vld [vmem:[%s7 + $0x158] sm:$0xf]
        %v1038 = vld [vmem:[%s7 + $0x15c] sm:$0xf]
        %v1039 = vld [vmem:[%s7 + $0x160] sm:$0xf]
        %v1040 = vld [vmem:[%s7 + $0x164] sm:$0xf]
        %v1041 = vld [vmem:[%s7 + $0x168] sm:$0xf]
        %v1042 = vld [vmem:[%s7 + $0x16c] sm:$0xf]
        %v1043 = vld [vmem:[%s7 + $0x170] sm:$0xf]
        %v1044 = vld [vmem:[%s7 + $0x174] sm:$0xf]
        %v1045 = vld [vmem:[%s7 + $0x178] sm:$0xf]
        %v1046 = vld [vmem:[%s7 + $0x17c] sm:$0xf]
        %v1047 = vld [vmem:[%s7 + $0x180] sm:$0xf]
        %v1048 = vld [vmem:[%s7 + $0x184] sm:$0xf]
        %v1049 = vld [vmem:[%s7 + $0x188] sm:$0xf]
        %v1050 = vld [vmem:[%s7 + $0x18c] sm:$0xf]
        %v1051 = vld [vmem:[%s7 + $0x190] sm:$0xf]
        %v1052 = vld [vmem:[%s7 + $0x194] sm:$0xf]
        %v1053 = vld [vmem:[%s7 + $0x198] sm:$0xf]
        %v1054 = vld [vmem:[%s7 + $0x19c] sm:$0xf]
        %v1055 = vld [vmem:[%s7 + $0x1a0] sm:$0xf]
        %v1056 = vld [vmem:[%s7 + $0x1a4] sm:$0xf]
        %v1057 = vld [vmem:[%s7 + $0x1a8] sm:$0xf]
        %v1058 = vld [vmem:[%s7 + $0x1ac] sm:$0xf]
        %v1059 = vld [vmem:[%s7 + $0x1b0] sm:$0xf]
        %v1060 = vld [vmem:[%s7 + $0x1b4] sm:$0xf]
        %v1061 = vld [vmem:[%s7 + $0x1b8] sm:$0xf]
        %v1062 = vld [vmem:[%s7 + $0x1bc] sm:$0xf]
        %v1063 = vld [vmem:[%s7 + $0x1c0] sm:$0xf]
        %v1064 = vld [vmem:[%s7 + $0x1c4] sm:$0xf]
        %v1065 = vld [vmem:[%s7 + $0x1c8] sm:$0xf]
        %v1066 = vld [vmem:[%s7 + $0x1cc] sm:$0xf]
        %v1067 = vld [vmem:[%s7 + $0x1d0] sm:$0xf]
        %v1068 = vld [vmem:[%s7 + $0x1d4] sm:$0xf]
        %v1069 = vld [vmem:[%s7 + $0x1d8] sm:$0xf]
        %v1070 = vld [vmem:[%s7 + $0x1dc] sm:$0xf]
        %v1071 = vld [vmem:[%s7 + $0x1e0] sm:$0xf]
        %v1072 = vld [vmem:[%s7 + $0x1e4] sm:$0xf]
        %v1073 = vld [vmem:[%s7 + $0x1e8] sm:$0xf]
        %v1074 = vld [vmem:[%s7 + $0x1ec] sm:$0xf]
        %v1075 = vld [vmem:[%s7 + $0x1f0] sm:$0xf]
        %v1076 = vld [vmem:[%s7 + $0x1f4] sm:$0xf]
        %v1077 = vld [vmem:[%s7 + $0x1f8] sm:$0xf]
        %v1078 = vld [vmem:[%s7 + $0x1fc] sm:$0xf]
        %v1095 = vunpack.c.l.b16 %v951
        %v1096 = vunpack.c.l.b16 %v952
        %v1097 = vunpack.c.l.b16 %v953
        %v1098 = vunpack.c.l.b16 %v954
        %v1099 = vunpack.c.l.b16 %v955
        %v1100 = vunpack.c.l.b16 %v956
        %v1101 = vunpack.c.l.b16 %v957
        %v1102 = vunpack.c.l.b16 %v958
        %v1103 = vunpack.c.l.b16 %v959
        %v1104 = vunpack.c.l.b16 %v960
        %v1105 = vunpack.c.l.b16 %v961
        %v1106 = vunpack.c.l.b16 %v962
        %v1107 = vunpack.c.l.b16 %v963
        %v1108 = vunpack.c.l.b16 %v964
        %v1109 = vunpack.c.l.b16 %v965
        %v1110 = vunpack.c.l.b16 %v966
        %v1111 = vpack.c.b16 %v1096, %v1095
        %v1112 = vpack.c.b16 %v1098, %v1097
        %v1113 = vpack.c.b16 %v1100, %v1099
        %v1114 = vpack.c.b16 %v1102, %v1101
        %v1115 = vpack.c.b16 %v1104, %v1103
        %v1116 = vpack.c.b16 %v1106, %v1105
        %v1117 = vpack.c.b16 %v1108, %v1107
        %v1118 = vpack.c.b16 %v1110, %v1109
        %1127 = vmatprep.subr.bf16.mxu0 0
        %1128 = vmatpush1.bf16.msra.mxu0 %v1118
        %1129 = vmatprep.subr.bf16.mxu0 0
        %1130 = vmatpush1.bf16.msra.mxu0 %v1117
        %1131 = vmatprep.subr.bf16.mxu0 0
        %1132 = vmatpush1.bf16.msra.mxu0 %v1116
        %1133 = vmatprep.subr.bf16.mxu0 0
        %1134 = vmatpush1.bf16.msra.mxu0 %v1115
        %1135 = vmatprep.subr.bf16.mxu0 0
        %1136 = vmatpush1.bf16.msra.mxu0 %v1114
        %1137 = vmatprep.subr.bf16.mxu0 0
        %1138 = vmatpush1.bf16.msra.mxu0 %v1113
        %1139 = vmatprep.subr.bf16.mxu0 0
        %1140 = vmatpush1.bf16.msra.mxu0 %v1112
        %1141 = vmatprep.subr.bf16.mxu0 0
        %1142 = vmatpush1.bf16.msra.mxu0 %v1111
        %1143 = vmatprep.subr.bf16.mxu0 0
        %1144 = vmatpush2.bf16.msra.mxu0 0
        %1145 = vmatprep.subr.bf16.mxu0 0
        %1146 = vmatpush2.bf16.msra.mxu0 0
        %1147 = vmatprep.subr.bf16.mxu0 0
        %1148 = vmatpush2.bf16.msra.mxu0 0
        %1149 = vmatprep.subr.bf16.mxu0 0
        %1150 = vmatpush2.bf16.msra.mxu0 0
        %1151 = vmatprep.subr.bf16.mxu0 0
        %1152 = vmatpush2.bf16.msra.mxu0 0
        %1153 = vmatprep.subr.bf16.mxu0 0
        %1154 = vmatpush2.bf16.msra.mxu0 0
        %1155 = vmatprep.subr.bf16.mxu0 0
        %1156 = vmatpush2.bf16.msra.mxu0 0
        %1157 = vmatprep.subr.bf16.mxu0 0
        %1158 = vmatpush2.bf16.msra.mxu0 0
        %1159 = vmatprep.mubr.bf16.mxu0 0
        %1160 = vmatmul.mubr.bf16.gmra.mxu0 %v527
        %v1161 = vpop.f32.mrf.mxu0
        %v1162 = vadd.f32 0.0, %v1161
        %v1163 = vpop.f32.mrf.mxu0
        %v1164 = vpop.f32.mrf.mxu0
        %v1165 = vadd.f32 0.0, %v1164
        %v1166 = vpop.f32.mrf.mxu0
        %1167 = vmatprep.mubr.bf16.mxu0 0
        %1168 = vmatmul.mubr.bf16.gmra.mxu0 %v528
        %v1169 = vpop.f32.mrf.mxu0
        %v1170 = vadd.f32 0.0, %v1169
        %v1171 = vpop.f32.mrf.mxu0
        %v1172 = vpop.f32.mrf.mxu0
        %v1173 = vadd.f32 0.0, %v1172
        %v1174 = vpop.f32.mrf.mxu0
        %1175 = vmatprep.mubr.bf16.mxu0 0
        %1176 = vmatmul.mubr.bf16.gmra.mxu0 %v529
        %v1177 = vpop.f32.mrf.mxu0
        %v1178 = vadd.f32 0.0, %v1177
        %v1179 = vpop.f32.mrf.mxu0
        %v1180 = vpop.f32.mrf.mxu0
        %v1181 = vadd.f32 0.0, %v1180
        %v1182 = vpop.f32.mrf.mxu0
        %1183 = vdwg.mxu0
        %v1200 = vunpack.c.l.b16 %v967
        %v1201 = vunpack.c.l.b16 %v968
        %v1202 = vunpack.c.l.b16 %v969
        %v1203 = vunpack.c.l.b16 %v970
        %v1204 = vunpack.c.l.b16 %v971
        %v1205 = vunpack.c.l.b16 %v972
        %v1206 = vunpack.c.l.b16 %v973
        %v1207 = vunpack.c.l.b16 %v974
        %v1208 = vunpack.c.l.b16 %v975
        %v1209 = vunpack.c.l.b16 %v976
        %v1210 = vunpack.c.l.b16 %v977
        %v1211 = vunpack.c.l.b16 %v978
        %v1212 = vunpack.c.l.b16 %v979
        %v1213 = vunpack.c.l.b16 %v980
        %v1214 = vunpack.c.l.b16 %v981
        %v1215 = vunpack.c.l.b16 %v982
        %v1216 = vpack.c.b16 %v1201, %v1200
        %v1217 = vpack.c.b16 %v1203, %v1202
        %v1218 = vpack.c.b16 %v1205, %v1204
        %v1219 = vpack.c.b16 %v1207, %v1206
        %v1220 = vpack.c.b16 %v1209, %v1208
        %v1221 = vpack.c.b16 %v1211, %v1210
        %v1222 = vpack.c.b16 %v1213, %v1212
        %v1223 = vpack.c.b16 %v1215, %v1214
        %1232 = vmatprep.subr.bf16.mxu0 0
        %1233 = vmatpush1.bf16.msra.mxu0 %v1223
        %1234 = vmatprep.subr.bf16.mxu0 0
        %1235 = vmatpush1.bf16.msra.mxu0 %v1222
        %1236 = vmatprep.subr.bf16.mxu0 0
        %1237 = vmatpush1.bf16.msra.mxu0 %v1221
        %1238 = vmatprep.subr.bf16.mxu0 0
        %1239 = vmatpush1.bf16.msra.mxu0 %v1220
        %1240 = vmatprep.subr.bf16.mxu0 0
        %1241 = vmatpush1.bf16.msra.mxu0 %v1219
        %1242 = vmatprep.subr.bf16.mxu0 0
        %1243 = vmatpush1.bf16.msra.mxu0 %v1218
        %1244 = vmatprep.subr.bf16.mxu0 0
        %1245 = vmatpush1.bf16.msra.mxu0 %v1217
        %1246 = vmatprep.subr.bf16.mxu0 0
        %1247 = vmatpush1.bf16.msra.mxu0 %v1216
        %1248 = vmatprep.subr.bf16.mxu0 0
        %1249 = vmatpush2.bf16.msra.mxu0 0
        %1250 = vmatprep.subr.bf16.mxu0 0
        %1251 = vmatpush2.bf16.msra.mxu0 0
        %1252 = vmatprep.subr.bf16.mxu0 0
        %1253 = vmatpush2.bf16.msra.mxu0 0
        %1254 = vmatprep.subr.bf16.mxu0 0
        %1255 = vmatpush2.bf16.msra.mxu0 0
        %1256 = vmatprep.subr.bf16.mxu0 0
        %1257 = vmatpush2.bf16.msra.mxu0 0
        %1258 = vmatprep.subr.bf16.mxu0 0
        %1259 = vmatpush2.bf16.msra.mxu0 0
        %1260 = vmatprep.subr.bf16.mxu0 0
        %1261 = vmatpush2.bf16.msra.mxu0 0
        %1262 = vmatprep.subr.bf16.mxu0 0
        %1263 = vmatpush2.bf16.msra.mxu0 0
        %1264 = vmatprep.mubr.bf16.mxu0 0
        %1265 = vmatmul.mubr.bf16.gmra.mxu0 %v527
        %v1266 = vpop.f32.mrf.mxu0
        %v1267 = vadd.f32 0.0, %v1266
        %v1268 = vpop.f32.mrf.mxu0
        %v1269 = vpop.f32.mrf.mxu0
        %v1270 = vadd.f32 0.0, %v1269
        %v1271 = vpop.f32.mrf.mxu0
        %1272 = vmatprep.mubr.bf16.mxu0 0
        %1273 = vmatmul.mubr.bf16.gmra.mxu0 %v528
        %v1274 = vpop.f32.mrf.mxu0
        %v1275 = vadd.f32 0.0, %v1274
        %v1276 = vpop.f32.mrf.mxu0
        %v1277 = vpop.f32.mrf.mxu0
        %v1278 = vadd.f32 0.0, %v1277
        %v1279 = vpop.f32.mrf.mxu0
        %1280 = vmatprep.mubr.bf16.mxu0 0
        %1281 = vmatmul.mubr.bf16.gmra.mxu0 %v529
        %v1282 = vpop.f32.mrf.mxu0
        %v1283 = vadd.f32 0.0, %v1282
        %v1284 = vpop.f32.mrf.mxu0
        %v1285 = vpop.f32.mrf.mxu0
        %v1286 = vadd.f32 0.0, %v1285
        %v1287 = vpop.f32.mrf.mxu0
        %1288 = vdwg.mxu0
        %v1305 = vunpack.c.l.b16 %v983
        %v1306 = vunpack.c.l.b16 %v984
        %v1307 = vunpack.c.l.b16 %v985
        %v1308 = vunpack.c.l.b16 %v986
        %v1309 = vunpack.c.l.b16 %v987
        %v1310 = vunpack.c.l.b16 %v988
        %v1311 = vunpack.c.l.b16 %v989
        %v1312 = vunpack.c.l.b16 %v990
        %v1313 = vunpack.c.l.b16 %v991
        %v1314 = vunpack.c.l.b16 %v992
        %v1315 = vunpack.c.l.b16 %v993
        %v1316 = vunpack.c.l.b16 %v994
        %v1317 = vunpack.c.l.b16 %v995
        %v1318 = vunpack.c.l.b16 %v996
        %v1319 = vunpack.c.l.b16 %v997
        %v1320 = vunpack.c.l.b16 %v998
        %v1321 = vpack.c.b16 %v1306, %v1305
        %v1322 = vpack.c.b16 %v1308, %v1307
        %v1323 = vpack.c.b16 %v1310, %v1309
        %v1324 = vpack.c.b16 %v1312, %v1311
        %v1325 = vpack.c.b16 %v1314, %v1313
        %v1326 = vpack.c.b16 %v1316, %v1315
        %v1327 = vpack.c.b16 %v1318, %v1317
        %v1328 = vpack.c.b16 %v1320, %v1319
        %1337 = vmatprep.subr.bf16.mxu0 0
        %1338 = vmatpush1.bf16.msra.mxu0 %v1328
        %1339 = vmatprep.subr.bf16.mxu0 0
        %1340 = vmatpush1.bf16.msra.mxu0 %v1327
        %1341 = vmatprep.subr.bf16.mxu0 0
        %1342 = vmatpush1.bf16.msra.mxu0 %v1326
        %1343 = vmatprep.subr.bf16.mxu0 0
        %1344 = vmatpush1.bf16.msra.mxu0 %v1325
        %1345 = vmatprep.subr.bf16.mxu0 0
        %1346 = vmatpush1.bf16.msra.mxu0 %v1324
        %1347 = vmatprep.subr.bf16.mxu0 0
        %1348 = vmatpush1.bf16.msra.mxu0 %v1323
        %1349 = vmatprep.subr.bf16.mxu0 0
        %1350 = vmatpush1.bf16.msra.mxu0 %v1322
        %1351 = vmatprep.subr.bf16.mxu0 0
        %1352 = vmatpush1.bf16.msra.mxu0 %v1321
        %1353 = vmatprep.subr.bf16.mxu0 0
        %1354 = vmatpush2.bf16.msra.mxu0 0
        %1355 = vmatprep.subr.bf16.mxu0 0
        %1356 = vmatpush2.bf16.msra.mxu0 0
        %1357 = vmatprep.subr.bf16.mxu0 0
        %1358 = vmatpush2.bf16.msra.mxu0 0
        %1359 = vmatprep.subr.bf16.mxu0 0
        %1360 = vmatpush2.bf16.msra.mxu0 0
        %1361 = vmatprep.subr.bf16.mxu0 0
        %1362 = vmatpush2.bf16.msra.mxu0 0
        %1363 = vmatprep.subr.bf16.mxu0 0
        %1364 = vmatpush2.bf16.msra.mxu0 0
        %1365 = vmatprep.subr.bf16.mxu0 0
        %1366 = vmatpush2.bf16.msra.mxu0 0
        %1367 = vmatprep.subr.bf16.mxu0 0
        %1368 = vmatpush2.bf16.msra.mxu0 0
        %1369 = vmatprep.mubr.bf16.mxu0 0
        %1370 = vmatmul.mubr.bf16.gmra.mxu0 %v527
        %v1371 = vpop.f32.mrf.mxu0
        %v1372 = vadd.f32 0.0, %v1371
        %v1373 = vpop.f32.mrf.mxu0
        %v1374 = vpop.f32.mrf.mxu0
        %v1375 = vadd.f32 0.0, %v1374
        %v1376 = vpop.f32.mrf.mxu0
        %1377 = vmatprep.mubr.bf16.mxu0 0
        %1378 = vmatmul.mubr.bf16.gmra.mxu0 %v528
        %v1379 = vpop.f32.mrf.mxu0
        %v1380 = vadd.f32 0.0, %v1379
        %v1381 = vpop.f32.mrf.mxu0
        %v1382 = vpop.f32.mrf.mxu0
        %v1383 = vadd.f32 0.0, %v1382
        %v1384 = vpop.f32.mrf.mxu0
        %1385 = vmatprep.mubr.bf16.mxu0 0
        %1386 = vmatmul.mubr.bf16.gmra.mxu0 %v529
        %v1387 = vpop.f32.mrf.mxu0
        %v1388 = vadd.f32 0.0, %v1387
        %v1389 = vpop.f32.mrf.mxu0
        %v1390 = vpop.f32.mrf.mxu0
        %v1391 = vadd.f32 0.0, %v1390
        %v1392 = vpop.f32.mrf.mxu0
        %1393 = vdwg.mxu0
        %v1410 = vunpack.c.l.b16 %v999
        %v1411 = vunpack.c.l.b16 %v1000
        %v1412 = vunpack.c.l.b16 %v1001
        %v1413 = vunpack.c.l.b16 %v1002
        %v1414 = vunpack.c.l.b16 %v1003
        %v1415 = vunpack.c.l.b16 %v1004
        %v1416 = vunpack.c.l.b16 %v1005
        %v1417 = vunpack.c.l.b16 %v1006
        %v1418 = vunpack.c.l.b16 %v1007
        %v1419 = vunpack.c.l.b16 %v1008
        %v1420 = vunpack.c.l.b16 %v1009
        %v1421 = vunpack.c.l.b16 %v1010
        %v1422 = vunpack.c.l.b16 %v1011
        %v1423 = vunpack.c.l.b16 %v1012
        %v1424 = vunpack.c.l.b16 %v1013
        %v1425 = vunpack.c.l.b16 %v1014
        %v1426 = vpack.c.b16 %v1411, %v1410
        %v1427 = vpack.c.b16 %v1413, %v1412
        %v1428 = vpack.c.b16 %v1415, %v1414
        %v1429 = vpack.c.b16 %v1417, %v1416
        %v1430 = vpack.c.b16 %v1419, %v1418
        %v1431 = vpack.c.b16 %v1421, %v1420
        %v1432 = vpack.c.b16 %v1423, %v1422
        %v1433 = vpack.c.b16 %v1425, %v1424
        %1442 = vmatprep.subr.bf16.mxu0 0
        %1443 = vmatpush1.bf16.msra.mxu0 %v1433
        %1444 = vmatprep.subr.bf16.mxu0 0
        %1445 = vmatpush1.bf16.msra.mxu0 %v1432
        %1446 = vmatprep.subr.bf16.mxu0 0
        %1447 = vmatpush1.bf16.msra.mxu0 %v1431
        %1448 = vmatprep.subr.bf16.mxu0 0
        %1449 = vmatpush1.bf16.msra.mxu0 %v1430
        %1450 = vmatprep.subr.bf16.mxu0 0
        %1451 = vmatpush1.bf16.msra.mxu0 %v1429
        %1452 = vmatprep.subr.bf16.mxu0 0
        %1453 = vmatpush1.bf16.msra.mxu0 %v1428
        %1454 = vmatprep.subr.bf16.mxu0 0
        %1455 = vmatpush1.bf16.msra.mxu0 %v1427
        %1456 = vmatprep.subr.bf16.mxu0 0
        %1457 = vmatpush1.bf16.msra.mxu0 %v1426
        %1458 = vmatprep.subr.bf16.mxu0 0
        %1459 = vmatpush2.bf16.msra.mxu0 0
        %1460 = vmatprep.subr.bf16.mxu0 0
        %1461 = vmatpush2.bf16.msra.mxu0 0
        %1462 = vmatprep.subr.bf16.mxu0 0
        %1463 = vmatpush2.bf16.msra.mxu0 0
        %1464 = vmatprep.subr.bf16.mxu0 0
        %1465 = vmatpush2.bf16.msra.mxu0 0
        %1466 = vmatprep.subr.bf16.mxu0 0
        %1467 = vmatpush2.bf16.msra.mxu0 0
        %1468 = vmatprep.subr.bf16.mxu0 0
        %1469 = vmatpush2.bf16.msra.mxu0 0
        %1470 = vmatprep.subr.bf16.mxu0 0
        %1471 = vmatpush2.bf16.msra.mxu0 0
        %1472 = vmatprep.subr.bf16.mxu0 0
        %1473 = vmatpush2.bf16.msra.mxu0 0
        %1474 = vmatprep.mubr.bf16.mxu0 0
        %1475 = vmatmul.mubr.bf16.gmra.mxu0 %v527
        %v1476 = vpop.f32.mrf.mxu0
        %v1477 = vadd.f32 0.0, %v1476
        %v1478 = vpop.f32.mrf.mxu0
        %v1479 = vpop.f32.mrf.mxu0
        %v1480 = vadd.f32 0.0, %v1479
        %v1481 = vpop.f32.mrf.mxu0
        %1482 = vmatprep.mubr.bf16.mxu0 0
        %1483 = vmatmul.mubr.bf16.gmra.mxu0 %v528
        %v1484 = vpop.f32.mrf.mxu0
        %v1485 = vadd.f32 0.0, %v1484
        %v1486 = vpop.f32.mrf.mxu0
        %v1487 = vpop.f32.mrf.mxu0
        %v1488 = vadd.f32 0.0, %v1487
        %v1489 = vpop.f32.mrf.mxu0
        %1490 = vmatprep.mubr.bf16.mxu0 0
        %1491 = vmatmul.mubr.bf16.gmra.mxu0 %v529
        %v1492 = vpop.f32.mrf.mxu0
        %v1493 = vadd.f32 0.0, %v1492
        %v1494 = vpop.f32.mrf.mxu0
        %v1495 = vpop.f32.mrf.mxu0
        %v1496 = vadd.f32 0.0, %v1495
        %v1497 = vpop.f32.mrf.mxu0
        %1498 = vdwg.mxu0
        %v1515 = vunpack.c.l.b16 %v1015
        %v1516 = vunpack.c.l.b16 %v1016
        %v1517 = vunpack.c.l.b16 %v1017
        %v1518 = vunpack.c.l.b16 %v1018
        %v1519 = vunpack.c.l.b16 %v1019
        %v1520 = vunpack.c.l.b16 %v1020
        %v1521 = vunpack.c.l.b16 %v1021
        %v1522 = vunpack.c.l.b16 %v1022
        %v1523 = vunpack.c.l.b16 %v1023
        %v1524 = vunpack.c.l.b16 %v1024
        %v1525 = vunpack.c.l.b16 %v1025
        %v1526 = vunpack.c.l.b16 %v1026
        %v1527 = vunpack.c.l.b16 %v1027
        %v1528 = vunpack.c.l.b16 %v1028
        %v1529 = vunpack.c.l.b16 %v1029
        %v1530 = vunpack.c.l.b16 %v1030
        %v1531 = vpack.c.b16 %v1516, %v1515
        %v1532 = vpack.c.b16 %v1518, %v1517
        %v1533 = vpack.c.b16 %v1520, %v1519
        %v1534 = vpack.c.b16 %v1522, %v1521
        %v1535 = vpack.c.b16 %v1524, %v1523
        %v1536 = vpack.c.b16 %v1526, %v1525
        %v1537 = vpack.c.b16 %v1528, %v1527
        %v1538 = vpack.c.b16 %v1530, %v1529
        %1547 = vmatprep.subr.bf16.mxu0 0
        %1548 = vmatpush1.bf16.msra.mxu0 %v1538
        %1549 = vmatprep.subr.bf16.mxu0 0
        %1550 = vmatpush1.bf16.msra.mxu0 %v1537
        %1551 = vmatprep.subr.bf16.mxu0 0
        %1552 = vmatpush1.bf16.msra.mxu0 %v1536
        %1553 = vmatprep.subr.bf16.mxu0 0
        %1554 = vmatpush1.bf16.msra.mxu0 %v1535
        %1555 = vmatprep.subr.bf16.mxu0 0
        %1556 = vmatpush1.bf16.msra.mxu0 %v1534
        %1557 = vmatprep.subr.bf16.mxu0 0
        %1558 = vmatpush1.bf16.msra.mxu0 %v1533
        %1559 = vmatprep.subr.bf16.mxu0 0
        %1560 = vmatpush1.bf16.msra.mxu0 %v1532
        %1561 = vmatprep.subr.bf16.mxu0 0
        %1562 = vmatpush1.bf16.msra.mxu0 %v1531
        %1563 = vmatprep.subr.bf16.mxu0 0
        %1564 = vmatpush2.bf16.msra.mxu0 0
        %1565 = vmatprep.subr.bf16.mxu0 0
        %1566 = vmatpush2.bf16.msra.mxu0 0
        %1567 = vmatprep.subr.bf16.mxu0 0
        %1568 = vmatpush2.bf16.msra.mxu0 0
        %1569 = vmatprep.subr.bf16.mxu0 0
        %1570 = vmatpush2.bf16.msra.mxu0 0
        %1571 = vmatprep.subr.bf16.mxu0 0
        %1572 = vmatpush2.bf16.msra.mxu0 0
        %1573 = vmatprep.subr.bf16.mxu0 0
        %1574 = vmatpush2.bf16.msra.mxu0 0
        %1575 = vmatprep.subr.bf16.mxu0 0
        %1576 = vmatpush2.bf16.msra.mxu0 0
        %1577 = vmatprep.subr.bf16.mxu0 0
        %1578 = vmatpush2.bf16.msra.mxu0 0
        %1579 = vmatprep.mubr.bf16.mxu0 0
        %1580 = vmatmul.mubr.bf16.gmra.mxu0 %v527
        %v1581 = vpop.f32.mrf.mxu0
        %v1582 = vadd.f32 0.0, %v1581
        %v1583 = vpop.f32.mrf.mxu0
        %v1584 = vpop.f32.mrf.mxu0
        %v1585 = vadd.f32 0.0, %v1584
        %v1586 = vpop.f32.mrf.mxu0
        %1587 = vmatprep.mubr.bf16.mxu0 0
        %1588 = vmatmul.mubr.bf16.gmra.mxu0 %v528
        %v1589 = vpop.f32.mrf.mxu0
        %v1590 = vadd.f32 0.0, %v1589
        %v1591 = vpop.f32.mrf.mxu0
        %v1592 = vpop.f32.mrf.mxu0
        %v1593 = vadd.f32 0.0, %v1592
        %v1594 = vpop.f32.mrf.mxu0
        %1595 = vmatprep.mubr.bf16.mxu0 0
        %1596 = vmatmul.mubr.bf16.gmra.mxu0 %v529
        %v1597 = vpop.f32.mrf.mxu0
        %v1598 = vadd.f32 0.0, %v1597
        %v1599 = vpop.f32.mrf.mxu0
        %v1600 = vpop.f32.mrf.mxu0
        %v1601 = vadd.f32 0.0, %v1600
        %v1602 = vpop.f32.mrf.mxu0
        %1603 = vdwg.mxu0
        %v1620 = vunpack.c.l.b16 %v1031
        %v1621 = vunpack.c.l.b16 %v1032
        %v1622 = vunpack.c.l.b16 %v1033
        %v1623 = vunpack.c.l.b16 %v1034
        %v1624 = vunpack.c.l.b16 %v1035
        %v1625 = vunpack.c.l.b16 %v1036
        %v1626 = vunpack.c.l.b16 %v1037
        %v1627 = vunpack.c.l.b16 %v1038
        %v1628 = vunpack.c.l.b16 %v1039
        %v1629 = vunpack.c.l.b16 %v1040
        %v1630 = vunpack.c.l.b16 %v1041
        %v1631 = vunpack.c.l.b16 %v1042
        %v1632 = vunpack.c.l.b16 %v1043
        %v1633 = vunpack.c.l.b16 %v1044
        %v1634 = vunpack.c.l.b16 %v1045
        %v1635 = vunpack.c.l.b16 %v1046
        %v1636 = vpack.c.b16 %v1621, %v1620
        %v1637 = vpack.c.b16 %v1623, %v1622
        %v1638 = vpack.c.b16 %v1625, %v1624
        %v1639 = vpack.c.b16 %v1627, %v1626
        %v1640 = vpack.c.b16 %v1629, %v1628
        %v1641 = vpack.c.b16 %v1631, %v1630
        %v1642 = vpack.c.b16 %v1633, %v1632
        %v1643 = vpack.c.b16 %v1635, %v1634
        %1652 = vmatprep.subr.bf16.mxu0 0
        %1653 = vmatpush1.bf16.msra.mxu0 %v1643
        %1654 = vmatprep.subr.bf16.mxu0 0
        %1655 = vmatpush1.bf16.msra.mxu0 %v1642
        %1656 = vmatprep.subr.bf16.mxu0 0
        %1657 = vmatpush1.bf16.msra.mxu0 %v1641
        %1658 = vmatprep.subr.bf16.mxu0 0
        %1659 = vmatpush1.bf16.msra.mxu0 %v1640
        %1660 = vmatprep.subr.bf16.mxu0 0
        %1661 = vmatpush1.bf16.msra.mxu0 %v1639
        %1662 = vmatprep.subr.bf16.mxu0 0
        %1663 = vmatpush1.bf16.msra.mxu0 %v1638
        %1664 = vmatprep.subr.bf16.mxu0 0
        %1665 = vmatpush1.bf16.msra.mxu0 %v1637
        %1666 = vmatprep.subr.bf16.mxu0 0
        %1667 = vmatpush1.bf16.msra.mxu0 %v1636
        %1668 = vmatprep.subr.bf16.mxu0 0
        %1669 = vmatpush2.bf16.msra.mxu0 0
        %1670 = vmatprep.subr.bf16.mxu0 0
        %1671 = vmatpush2.bf16.msra.mxu0 0
        %1672 = vmatprep.subr.bf16.mxu0 0
        %1673 = vmatpush2.bf16.msra.mxu0 0
        %1674 = vmatprep.subr.bf16.mxu0 0
        %1675 = vmatpush2.bf16.msra.mxu0 0
        %1676 = vmatprep.subr.bf16.mxu0 0
        %1677 = vmatpush2.bf16.msra.mxu0 0
        %1678 = vmatprep.subr.bf16.mxu0 0
        %1679 = vmatpush2.bf16.msra.mxu0 0
        %1680 = vmatprep.subr.bf16.mxu0 0
        %1681 = vmatpush2.bf16.msra.mxu0 0
        %1682 = vmatprep.subr.bf16.mxu0 0
        %1683 = vmatpush2.bf16.msra.mxu0 0
        %1684 = vmatprep.mubr.bf16.mxu0 0
        %1685 = vmatmul.mubr.bf16.gmra.mxu0 %v527
        %v1686 = vpop.f32.mrf.mxu0
        %v1687 = vadd.f32 0.0, %v1686
        %v1688 = vpop.f32.mrf.mxu0
        %v1689 = vpop.f32.mrf.mxu0
        %v1690 = vadd.f32 0.0, %v1689
        %v1691 = vpop.f32.mrf.mxu0
        %1692 = vmatprep.mubr.bf16.mxu0 0
        %1693 = vmatmul.mubr.bf16.gmra.mxu0 %v528
        %v1694 = vpop.f32.mrf.mxu0
        %v1695 = vadd.f32 0.0, %v1694
        %v1696 = vpop.f32.mrf.mxu0
        %v1697 = vpop.f32.mrf.mxu0
        %v1698 = vadd.f32 0.0, %v1697
        %v1699 = vpop.f32.mrf.mxu0
        %1700 = vmatprep.mubr.bf16.mxu0 0
        %1701 = vmatmul.mubr.bf16.gmra.mxu0 %v529
        %v1702 = vpop.f32.mrf.mxu0
        %v1703 = vadd.f32 0.0, %v1702
        %v1704 = vpop.f32.mrf.mxu0
        %v1705 = vpop.f32.mrf.mxu0
        %v1706 = vadd.f32 0.0, %v1705
        %v1707 = vpop.f32.mrf.mxu0
        %1708 = vdwg.mxu0
        %v1725 = vunpack.c.l.b16 %v1047
        %v1726 = vunpack.c.l.b16 %v1048
        %v1727 = vunpack.c.l.b16 %v1049
        %v1728 = vunpack.c.l.b16 %v1050
        %v1729 = vunpack.c.l.b16 %v1051
        %v1730 = vunpack.c.l.b16 %v1052
        %v1731 = vunpack.c.l.b16 %v1053
        %v1732 = vunpack.c.l.b16 %v1054
        %v1733 = vunpack.c.l.b16 %v1055
        %v1734 = vunpack.c.l.b16 %v1056
        %v1735 = vunpack.c.l.b16 %v1057
        %v1736 = vunpack.c.l.b16 %v1058
        %v1737 = vunpack.c.l.b16 %v1059
        %v1738 = vunpack.c.l.b16 %v1060
        %v1739 = vunpack.c.l.b16 %v1061
        %v1740 = vunpack.c.l.b16 %v1062
        %v1741 = vpack.c.b16 %v1726, %v1725
        %v1742 = vpack.c.b16 %v1728, %v1727
        %v1743 = vpack.c.b16 %v1730, %v1729
        %v1744 = vpack.c.b16 %v1732, %v1731
        %v1745 = vpack.c.b16 %v1734, %v1733
        %v1746 = vpack.c.b16 %v1736, %v1735
        %v1747 = vpack.c.b16 %v1738, %v1737
        %v1748 = vpack.c.b16 %v1740, %v1739
        %1757 = vmatprep.subr.bf16.mxu0 0
        %1758 = vmatpush1.bf16.msra.mxu0 %v1748
        %1759 = vmatprep.subr.bf16.mxu0 0
        %1760 = vmatpush1.bf16.msra.mxu0 %v1747
        %1761 = vmatprep.subr.bf16.mxu0 0
        %1762 = vmatpush1.bf16.msra.mxu0 %v1746
        %1763 = vmatprep.subr.bf16.mxu0 0
        %1764 = vmatpush1.bf16.msra.mxu0 %v1745
        %1765 = vmatprep.subr.bf16.mxu0 0
        %1766 = vmatpush1.bf16.msra.mxu0 %v1744
        %1767 = vmatprep.subr.bf16.mxu0 0
        %1768 = vmatpush1.bf16.msra.mxu0 %v1743
        %1769 = vmatprep.subr.bf16.mxu0 0
        %1770 = vmatpush1.bf16.msra.mxu0 %v1742
        %1771 = vmatprep.subr.bf16.mxu0 0
        %1772 = vmatpush1.bf16.msra.mxu0 %v1741
        %1773 = vmatprep.subr.bf16.mxu0 0
        %1774 = vmatpush2.bf16.msra.mxu0 0
        %1775 = vmatprep.subr.bf16.mxu0 0
        %1776 = vmatpush2.bf16.msra.mxu0 0
        %1777 = vmatprep.subr.bf16.mxu0 0
        %1778 = vmatpush2.bf16.msra.mxu0 0
        %1779 = vmatprep.subr.bf16.mxu0 0
        %1780 = vmatpush2.bf16.msra.mxu0 0
        %1781 = vmatprep.subr.bf16.mxu0 0
        %1782 = vmatpush2.bf16.msra.mxu0 0
        %1783 = vmatprep.subr.bf16.mxu0 0
        %1784 = vmatpush2.bf16.msra.mxu0 0
        %1785 = vmatprep.subr.bf16.mxu0 0
        %1786 = vmatpush2.bf16.msra.mxu0 0
        %1787 = vmatprep.subr.bf16.mxu0 0
        %1788 = vmatpush2.bf16.msra.mxu0 0
        %1789 = vmatprep.mubr.bf16.mxu0 0
        %1790 = vmatmul.mubr.bf16.gmra.mxu0 %v527
        %v1791 = vpop.f32.mrf.mxu0
        %v1792 = vadd.f32 0.0, %v1791
        %v1793 = vpop.f32.mrf.mxu0
        %v1794 = vpop.f32.mrf.mxu0
        %v1795 = vadd.f32 0.0, %v1794
        %v1796 = vpop.f32.mrf.mxu0
        %1797 = vmatprep.mubr.bf16.mxu0 0
        %1798 = vmatmul.mubr.bf16.gmra.mxu0 %v528
        %v1799 = vpop.f32.mrf.mxu0
        %v1800 = vadd.f32 0.0, %v1799
        %v1801 = vpop.f32.mrf.mxu0
        %v1802 = vpop.f32.mrf.mxu0
        %v1803 = vadd.f32 0.0, %v1802
        %v1804 = vpop.f32.mrf.mxu0
        %1805 = vmatprep.mubr.bf16.mxu0 0
        %1806 = vmatmul.mubr.bf16.gmra.mxu0 %v529
        %v1807 = vpop.f32.mrf.mxu0
        %v1808 = vadd.f32 0.0, %v1807
        %v1809 = vpop.f32.mrf.mxu0
        %v1810 = vpop.f32.mrf.mxu0
        %v1811 = vadd.f32 0.0, %v1810
        %v1812 = vpop.f32.mrf.mxu0
        %1813 = vdwg.mxu0
        %v1830 = vunpack.c.l.b16 %v1063
        %v1831 = vunpack.c.l.b16 %v1064
        %v1832 = vunpack.c.l.b16 %v1065
        %v1833 = vunpack.c.l.b16 %v1066
        %v1834 = vunpack.c.l.b16 %v1067
        %v1835 = vunpack.c.l.b16 %v1068
        %v1836 = vunpack.c.l.b16 %v1069
        %v1837 = vunpack.c.l.b16 %v1070
        %v1838 = vunpack.c.l.b16 %v1071
        %v1839 = vunpack.c.l.b16 %v1072
        %v1840 = vunpack.c.l.b16 %v1073
        %v1841 = vunpack.c.l.b16 %v1074
        %v1842 = vunpack.c.l.b16 %v1075
        %v1843 = vunpack.c.l.b16 %v1076
        %v1844 = vunpack.c.l.b16 %v1077
        %v1845 = vunpack.c.l.b16 %v1078
        %v1846 = vpack.c.b16 %v1831, %v1830
        %v1847 = vpack.c.b16 %v1833, %v1832
        %v1848 = vpack.c.b16 %v1835, %v1834
        %v1849 = vpack.c.b16 %v1837, %v1836
        %v1850 = vpack.c.b16 %v1839, %v1838
        %v1851 = vpack.c.b16 %v1841, %v1840
        %v1852 = vpack.c.b16 %v1843, %v1842
        %v1853 = vpack.c.b16 %v1845, %v1844
        %1862 = vmatprep.subr.bf16.mxu0 0
        %1863 = vmatpush1.bf16.msra.mxu0 %v1853
        %1864 = vmatprep.subr.bf16.mxu0 0
        %1865 = vmatpush1.bf16.msra.mxu0 %v1852
        %1866 = vmatprep.subr.bf16.mxu0 0
        %1867 = vmatpush1.bf16.msra.mxu0 %v1851
        %1868 = vmatprep.subr.bf16.mxu0 0
        %1869 = vmatpush1.bf16.msra.mxu0 %v1850
        %1870 = vmatprep.subr.bf16.mxu0 0
        %1871 = vmatpush1.bf16.msra.mxu0 %v1849
        %1872 = vmatprep.subr.bf16.mxu0 0
        %1873 = vmatpush1.bf16.msra.mxu0 %v1848
        %1874 = vmatprep.subr.bf16.mxu0 0
        %1875 = vmatpush1.bf16.msra.mxu0 %v1847
        %1876 = vmatprep.subr.bf16.mxu0 0
        %1877 = vmatpush1.bf16.msra.mxu0 %v1846
        %1878 = vmatprep.subr.bf16.mxu0 0
        %1879 = vmatpush2.bf16.msra.mxu0 0
        %1880 = vmatprep.subr.bf16.mxu0 0
        %1881 = vmatpush2.bf16.msra.mxu0 0
        %1882 = vmatprep.subr.bf16.mxu0 0
        %1883 = vmatpush2.bf16.msra.mxu0 0
        %1884 = vmatprep.subr.bf16.mxu0 0
        %1885 = vmatpush2.bf16.msra.mxu0 0
        %1886 = vmatprep.subr.bf16.mxu0 0
        %1887 = vmatpush2.bf16.msra.mxu0 0
        %1888 = vmatprep.subr.bf16.mxu0 0
        %1889 = vmatpush2.bf16.msra.mxu0 0
        %1890 = vmatprep.subr.bf16.mxu0 0
        %1891 = vmatpush2.bf16.msra.mxu0 0
        %1892 = vmatprep.subr.bf16.mxu0 0
        %1893 = vmatpush2.bf16.msra.mxu0 0
        %1894 = vmatprep.mubr.bf16.mxu0 0
        %1895 = vmatmul.mubr.bf16.gmra.mxu0 %v527
        %v1896 = vpop.f32.mrf.mxu0
        %v1897 = vadd.f32 0.0, %v1896
        %v1898 = vpop.f32.mrf.mxu0
        %v1899 = vpop.f32.mrf.mxu0
        %v1900 = vadd.f32 0.0, %v1899
        %v1901 = vpop.f32.mrf.mxu0
        %1902 = vmatprep.mubr.bf16.mxu0 0
        %1903 = vmatmul.mubr.bf16.gmra.mxu0 %v528
        %v1904 = vpop.f32.mrf.mxu0
        %v1905 = vadd.f32 0.0, %v1904
        %v1906 = vpop.f32.mrf.mxu0
        %v1907 = vpop.f32.mrf.mxu0
        %v1908 = vadd.f32 0.0, %v1907
        %v1909 = vpop.f32.mrf.mxu0
        %1910 = vmatprep.mubr.bf16.mxu0 0
        %1911 = vmatmul.mubr.bf16.gmra.mxu0 %v529
        %v1912 = vpop.f32.mrf.mxu0
        %v1913 = vadd.f32 0.0, %v1912
        %v1914 = vpop.f32.mrf.mxu0
        %v1915 = vpop.f32.mrf.mxu0
        %v1916 = vadd.f32 0.0, %v1915
        %v1917 = vpop.f32.mrf.mxu0
        %1918 = vdwg.mxu0
        %v1919 = vpack.c.bf16 %v681, %v678
        %v1920 = vpack.c.bf16 %v770, %v767
        %v1921 = vpack.c.bf16 %v859, %v856
        %v1922 = vpack.c.bf16 %v948, %v945
        %v1927 = vunpack.c.l.b16 %v1919
        %v1928 = vunpack.c.h.b16 %v1919
        %v1929 = vunpack.c.l.b16 %v1920
        %v1930 = vunpack.c.h.b16 %v1920
        %v1931 = vunpack.c.l.b16 %v1921
        %v1932 = vunpack.c.h.b16 %v1921
        %v1933 = vunpack.c.l.b16 %v1922
        %v1934 = vunpack.c.h.b16 %v1922
        %v1935 = vpack.c.b16 %v1927, %v1927
        %v1936 = vpack.c.b16 %v1928, %v1928
        %v1937 = vpack.c.b16 %v1929, %v1929
        %v1938 = vpack.c.b16 %v1930, %v1930
        %v1939 = vpack.c.b16 %v1931, %v1931
        %v1940 = vpack.c.b16 %v1932, %v1932
        %v1941 = vpack.c.b16 %v1933, %v1933
        %v1942 = vpack.c.b16 %v1934, %v1934
        %v1943 = vpack.c.bf16 %v1165, %v1162
        %v1944 = vpack.c.bf16 %v1173, %v1170
        %v1945 = vpack.c.bf16 %v1181, %v1178
        %v1946 = vpack.c.bf16 %v1270, %v1267
        %v1947 = vpack.c.bf16 %v1278, %v1275
        %v1948 = vpack.c.bf16 %v1286, %v1283
        %v1949 = vpack.c.bf16 %v1375, %v1372
        %v1950 = vpack.c.bf16 %v1383, %v1380
        %v1951 = vpack.c.bf16 %v1391, %v1388
        %v1952 = vpack.c.bf16 %v1480, %v1477
        %v1953 = vpack.c.bf16 %v1488, %v1485
        %v1954 = vpack.c.bf16 %v1496, %v1493
        %v1967 = vunpack.c.l.b16 %v1943
        %v1968 = vunpack.c.h.b16 %v1943
        %v1969 = vunpack.c.l.b16 %v1944
        %v1970 = vunpack.c.h.b16 %v1944
        %v1971 = vunpack.c.l.b16 %v1945
        %v1972 = vunpack.c.h.b16 %v1945
        %v1973 = vunpack.c.l.b16 %v1946
        %v1974 = vunpack.c.h.b16 %v1946
        %v1975 = vunpack.c.l.b16 %v1947
        %v1976 = vunpack.c.h.b16 %v1947
        %v1977 = vunpack.c.l.b16 %v1948
        %v1978 = vunpack.c.h.b16 %v1948
        %v1979 = vunpack.c.l.b16 %v1949
        %v1980 = vunpack.c.h.b16 %v1949
        %v1981 = vunpack.c.l.b16 %v1950
        %v1982 = vunpack.c.h.b16 %v1950
        %v1983 = vunpack.c.l.b16 %v1951
        %v1984 = vunpack.c.h.b16 %v1951
        %v1985 = vunpack.c.l.b16 %v1952
        %v1986 = vunpack.c.h.b16 %v1952
        %v1987 = vunpack.c.l.b16 %v1953
        %v1988 = vunpack.c.h.b16 %v1953
        %v1989 = vunpack.c.l.b16 %v1954
        %v1990 = vunpack.c.h.b16 %v1954
        %v1991 = vpack.c.bf16 %v1585, %v1582
        %v1992 = vpack.c.bf16 %v1593, %v1590
        %v1993 = vpack.c.bf16 %v1601, %v1598
        %v1994 = vpack.c.bf16 %v1690, %v1687
        %v1995 = vpack.c.bf16 %v1698, %v1695
        %v1996 = vpack.c.bf16 %v1706, %v1703
        %v1997 = vpack.c.bf16 %v1795, %v1792
        %v1998 = vpack.c.bf16 %v1803, %v1800
        %v1999 = vpack.c.bf16 %v1811, %v1808
        %v2000 = vpack.c.bf16 %v1900, %v1897
        %v2001 = vpack.c.bf16 %v1908, %v1905
        %v2002 = vpack.c.bf16 %v1916, %v1913
        %v2015 = vunpack.c.l.b16 %v1991
        %v2016 = vunpack.c.h.b16 %v1991
        %v2017 = vunpack.c.l.b16 %v1992
        %v2018 = vunpack.c.h.b16 %v1992
        %v2019 = vunpack.c.l.b16 %v1993
        %v2020 = vunpack.c.h.b16 %v1993
        %v2021 = vunpack.c.l.b16 %v1994
        %v2022 = vunpack.c.h.b16 %v1994
        %v2023 = vunpack.c.l.b16 %v1995
        %v2024 = vunpack.c.h.b16 %v1995
        %v2025 = vunpack.c.l.b16 %v1996
        %v2026 = vunpack.c.h.b16 %v1996
        %v2027 = vunpack.c.l.b16 %v1997
        %v2028 = vunpack.c.h.b16 %v1997
        %v2029 = vunpack.c.l.b16 %v1998
        %v2030 = vunpack.c.h.b16 %v1998
        %v2031 = vunpack.c.l.b16 %v1999
        %v2032 = vunpack.c.h.b16 %v1999
        %v2033 = vunpack.c.l.b16 %v2000
        %v2034 = vunpack.c.h.b16 %v2000
        %v2035 = vunpack.c.l.b16 %v2001
        %v2036 = vunpack.c.h.b16 %v2001
        %v2037 = vunpack.c.l.b16 %v2002
        %v2038 = vunpack.c.h.b16 %v2002
        %v2039 = vpack.c.b16 %v1968, %v1967
        %v2040 = vpack.c.b16 %v1969, %v1969
        %vm2041 = vcmask 261120
        %v2043 = vsel %vm2041, %v1935, 0
        %v2046 = vsel %vm2041, %v2039, 0
        %v2049 = vsel %vm2041, %v2040, 0
        %2051 = vmatprep.subr.bf16.mxu0 0
        %2052 = vmatpush1.bf16.xpose.msra.mxu0 0
        %2053 = vmatprep.subr.bf16.mxu0 0
        %2054 = vmatpush1.bf16.xpose.msra.mxu0 0
        %2055 = vmatprep.subr.bf16.mxu0 0
        %2056 = vmatpush1.bf16.xpose.msra.mxu0 0
        %2057 = vmatprep.subr.bf16.mxu0 0
        %2058 = vmatpush1.bf16.xpose.msra.mxu0 0
        %2059 = vmatprep.subr.bf16.mxu0 0
        %2060 = vmatpush1.bf16.xpose.msra.mxu0 0
        %2061 = vmatprep.subr.bf16.mxu0 0
        %2062 = vmatpush1.bf16.xpose.msra.mxu0 0
        %2063 = vmatprep.subr.bf16.mxu0 0
        %2064 = vmatpush1.bf16.xpose.msra.mxu0 %v2049
        %2065 = vmatprep.subr.bf16.mxu0 0
        %2066 = vmatpush1.bf16.xpose.msra.mxu0 %v2046
        %2067 = vmatprep.subr.bf16.mxu0 0
        %2068 = vmatpush2.bf16.xpose.msra.mxu0 0
        %2069 = vmatprep.subr.bf16.mxu0 0
        %2070 = vmatpush2.bf16.xpose.msra.mxu0 0
        %2071 = vmatprep.subr.bf16.mxu0 0
        %2072 = vmatpush2.bf16.xpose.msra.mxu0 0
        %2073 = vmatprep.subr.bf16.mxu0 0
        %2074 = vmatpush2.bf16.xpose.msra.mxu0 0
        %2075 = vmatprep.subr.bf16.mxu0 0
        %2076 = vmatpush2.bf16.xpose.msra.mxu0 0
        %2077 = vmatprep.subr.bf16.mxu0 0
        %2078 = vmatpush2.bf16.xpose.msra.mxu0 0
        %2079 = vmatprep.subr.bf16.mxu0 0
        %2080 = vmatpush2.bf16.xpose.msra.mxu0 0
        %2081 = vmatprep.subr.bf16.mxu0 0
        %2082 = vmatpush2.bf16.xpose.msra.mxu0 0
        %2083 = vmatprep.mubr.bf16.mxu0 0
        %2084 = vmatmul.mubr.bf16.gmra.mxu0 %v2043
        %v2085 = vpop.f32.mrf.mxu0
        %v2086 = vadd.f32 0.0, %v2085
        %v2087 = vpop.f32.mrf.mxu0
        %v2088 = vpop.f32.mrf.mxu0
        %v2089 = vpop.f32.mrf.mxu0
        %2090 = vdwg.mxu0
        %v2091 = vpack.c.b16 %v1971, %v1970
        %v2092 = vpack.c.b16 %v1972, %v1972
        %v2094 = vsel %vm2041, %v1936, 0
        %v2097 = vsel %vm2041, %v2091, 0
        %v2100 = vsel %vm2041, %v2092, 0
        %2102 = vmatprep.subr.bf16.mxu0 0
        %2103 = vmatpush1.bf16.xpose.msra.mxu0 0
        %2104 = vmatprep.subr.bf16.mxu0 0
        %2105 = vmatpush1.bf16.xpose.msra.mxu0 0
        %2106 = vmatprep.subr.bf16.mxu0 0
        %2107 = vmatpush1.bf16.xpose.msra.mxu0 0
        %2108 = vmatprep.subr.bf16.mxu0 0
        %2109 = vmatpush1.bf16.xpose.msra.mxu0 0
        %2110 = vmatprep.subr.bf16.mxu0 0
        %2111 = vmatpush1.bf16.xpose.msra.mxu0 0
        %2112 = vmatprep.subr.bf16.mxu0 0
        %2113 = vmatpush1.bf16.xpose.msra.mxu0 0
        %2114 = vmatprep.subr.bf16.mxu0 0
        %2115 = vmatpush1.bf16.xpose.msra.mxu0 %v2100
        %2116 = vmatprep.subr.bf16.mxu0 0
        %2117 = vmatpush1.bf16.xpose.msra.mxu0 %v2097
        %2118 = vmatprep.subr.bf16.mxu0 0
        %2119 = vmatpush2.bf16.xpose.msra.mxu0 0
        %2120 = vmatprep.subr.bf16.mxu0 0
        %2121 = vmatpush2.bf16.xpose.msra.mxu0 0
        %2122 = vmatprep.subr.bf16.mxu0 0
        %2123 = vmatpush2.bf16.xpose.msra.mxu0 0
        %2124 = vmatprep.subr.bf16.mxu0 0
        %2125 = vmatpush2.bf16.xpose.msra.mxu0 0
        %2126 = vmatprep.subr.bf16.mxu0 0
        %2127 = vmatpush2.bf16.xpose.msra.mxu0 0
        %2128 = vmatprep.subr.bf16.mxu0 0
        %2129 = vmatpush2.bf16.xpose.msra.mxu0 0
        %2130 = vmatprep.subr.bf16.mxu0 0
        %2131 = vmatpush2.bf16.xpose.msra.mxu0 0
        %2132 = vmatprep.subr.bf16.mxu0 0
        %2133 = vmatpush2.bf16.xpose.msra.mxu0 0
        %2134 = vmatprep.mubr.bf16.mxu0 0
        %2135 = vmatmul.mubr.bf16.gmra.mxu0 %v2094
        %v2136 = vpop.f32.mrf.mxu0
        %v2137 = vadd.f32 0.0, %v2136
        %v2138 = vpop.f32.mrf.mxu0
        %v2139 = vpop.f32.mrf.mxu0
        %v2140 = vpop.f32.mrf.mxu0
        %2141 = vdwg.mxu0
        %v2142 = vpack.c.b16 %v1974, %v1973
        %v2143 = vpack.c.b16 %v1975, %v1975
        %v2145 = vsel %vm2041, %v1937, 0
        %v2148 = vsel %vm2041, %v2142, 0
        %v2151 = vsel %vm2041, %v2143, 0
        %2153 = vmatprep.subr.bf16.mxu0 0
        %2154 = vmatpush1.bf16.xpose.msra.mxu0 0
        %2155 = vmatprep.subr.bf16.mxu0 0
        %2156 = vmatpush1.bf16.xpose.msra.mxu0 0
        %2157 = vmatprep.subr.bf16.mxu0 0
        %2158 = vmatpush1.bf16.xpose.msra.mxu0 0
        %2159 = vmatprep.subr.bf16.mxu0 0
        %2160 = vmatpush1.bf16.xpose.msra.mxu0 0
        %2161 = vmatprep.subr.bf16.mxu0 0
        %2162 = vmatpush1.bf16.xpose.msra.mxu0 0
        %2163 = vmatprep.subr.bf16.mxu0 0
        %2164 = vmatpush1.bf16.xpose.msra.mxu0 0
        %2165 = vmatprep.subr.bf16.mxu0 0
        %2166 = vmatpush1.bf16.xpose.msra.mxu0 %v2151
        %2167 = vmatprep.subr.bf16.mxu0 0
        %2168 = vmatpush1.bf16.xpose.msra.mxu0 %v2148
        %2169 = vmatprep.subr.bf16.mxu0 0
        %2170 = vmatpush2.bf16.xpose.msra.mxu0 0
        %2171 = vmatprep.subr.bf16.mxu0 0
        %2172 = vmatpush2.bf16.xpose.msra.mxu0 0
        %2173 = vmatprep.subr.bf16.mxu0 0
        %2174 = vmatpush2.bf16.xpose.msra.mxu0 0
        %2175 = vmatprep.subr.bf16.mxu0 0
        %2176 = vmatpush2.bf16.xpose.msra.mxu0 0
        %2177 = vmatprep.subr.bf16.mxu0 0
        %2178 = vmatpush2.bf16.xpose.msra.mxu0 0
        %2179 = vmatprep.subr.bf16.mxu0 0
        %2180 = vmatpush2.bf16.xpose.msra.mxu0 0
        %2181 = vmatprep.subr.bf16.mxu0 0
        %2182 = vmatpush2.bf16.xpose.msra.mxu0 0
        %2183 = vmatprep.subr.bf16.mxu0 0
        %2184 = vmatpush2.bf16.xpose.msra.mxu0 0
        %2185 = vmatprep.mubr.bf16.mxu0 0
        %2186 = vmatmul.mubr.bf16.gmra.mxu0 %v2145
        %v2187 = vpop.f32.mrf.mxu0
        %v2188 = vadd.f32 0.0, %v2187
        %v2189 = vpop.f32.mrf.mxu0
        %v2190 = vpop.f32.mrf.mxu0
        %v2191 = vpop.f32.mrf.mxu0
        %2192 = vdwg.mxu0
        %v2193 = vpack.c.b16 %v1977, %v1976
        %v2194 = vpack.c.b16 %v1978, %v1978
        %v2196 = vsel %vm2041, %v1938, 0
        %v2199 = vsel %vm2041, %v2193, 0
        %v2202 = vsel %vm2041, %v2194, 0
        %2204 = vmatprep.subr.bf16.mxu0 0
        %2205 = vmatpush1.bf16.xpose.msra.mxu0 0
        %2206 = vmatprep.subr.bf16.mxu0 0
        %2207 = vmatpush1.bf16.xpose.msra.mxu0 0
        %2208 = vmatprep.subr.bf16.mxu0 0
        %2209 = vmatpush1.bf16.xpose.msra.mxu0 0
        %2210 = vmatprep.subr.bf16.mxu0 0
        %2211 = vmatpush1.bf16.xpose.msra.mxu0 0
        %2212 = vmatprep.subr.bf16.mxu0 0
        %2213 = vmatpush1.bf16.xpose.msra.mxu0 0
        %2214 = vmatprep.subr.bf16.mxu0 0
        %2215 = vmatpush1.bf16.xpose.msra.mxu0 0
        %2216 = vmatprep.subr.bf16.mxu0 0
        %2217 = vmatpush1.bf16.xpose.msra.mxu0 %v2202
        %2218 = vmatprep.subr.bf16.mxu0 0
        %2219 = vmatpush1.bf16.xpose.msra.mxu0 %v2199
        %2220 = vmatprep.subr.bf16.mxu0 0
        %2221 = vmatpush2.bf16.xpose.msra.mxu0 0
        %2222 = vmatprep.subr.bf16.mxu0 0
        %2223 = vmatpush2.bf16.xpose.msra.mxu0 0
        %2224 = vmatprep.subr.bf16.mxu0 0
        %2225 = vmatpush2.bf16.xpose.msra.mxu0 0
        %2226 = vmatprep.subr.bf16.mxu0 0
        %2227 = vmatpush2.bf16.xpose.msra.mxu0 0
        %2228 = vmatprep.subr.bf16.mxu0 0
        %2229 = vmatpush2.bf16.xpose.msra.mxu0 0
        %2230 = vmatprep.subr.bf16.mxu0 0
        %2231 = vmatpush2.bf16.xpose.msra.mxu0 0
        %2232 = vmatprep.subr.bf16.mxu0 0
        %2233 = vmatpush2.bf16.xpose.msra.mxu0 0
        %2234 = vmatprep.subr.bf16.mxu0 0
        %2235 = vmatpush2.bf16.xpose.msra.mxu0 0
        %2236 = vmatprep.mubr.bf16.mxu0 0
        %2237 = vmatmul.mubr.bf16.gmra.mxu0 %v2196
        %v2238 = vpop.f32.mrf.mxu0
        %v2239 = vadd.f32 0.0, %v2238
        %v2240 = vpop.f32.mrf.mxu0
        %v2241 = vpop.f32.mrf.mxu0
        %v2242 = vpop.f32.mrf.mxu0
        %2243 = vdwg.mxu0
        %v2244 = vpack.c.b16 %v1980, %v1979
        %v2245 = vpack.c.b16 %v1981, %v1981
        %v2247 = vsel %vm2041, %v1939, 0
        %v2250 = vsel %vm2041, %v2244, 0
        %v2253 = vsel %vm2041, %v2245, 0
        %2255 = vmatprep.subr.bf16.mxu0 0
        %2256 = vmatpush1.bf16.xpose.msra.mxu0 0
        %2257 = vmatprep.subr.bf16.mxu0 0
        %2258 = vmatpush1.bf16.xpose.msra.mxu0 0
        %2259 = vmatprep.subr.bf16.mxu0 0
        %2260 = vmatpush1.bf16.xpose.msra.mxu0 0
        %2261 = vmatprep.subr.bf16.mxu0 0
        %2262 = vmatpush1.bf16.xpose.msra.mxu0 0
        %2263 = vmatprep.subr.bf16.mxu0 0
        %2264 = vmatpush1.bf16.xpose.msra.mxu0 0
        %2265 = vmatprep.subr.bf16.mxu0 0
        %2266 = vmatpush1.bf16.xpose.msra.mxu0 0
        %2267 = vmatprep.subr.bf16.mxu0 0
        %2268 = vmatpush1.bf16.xpose.msra.mxu0 %v2253
        %2269 = vmatprep.subr.bf16.mxu0 0
        %2270 = vmatpush1.bf16.xpose.msra.mxu0 %v2250
        %2271 = vmatprep.subr.bf16.mxu0 0
        %2272 = vmatpush2.bf16.xpose.msra.mxu0 0
        %2273 = vmatprep.subr.bf16.mxu0 0
        %2274 = vmatpush2.bf16.xpose.msra.mxu0 0
        %2275 = vmatprep.subr.bf16.mxu0 0
        %2276 = vmatpush2.bf16.xpose.msra.mxu0 0
        %2277 = vmatprep.subr.bf16.mxu0 0
        %2278 = vmatpush2.bf16.xpose.msra.mxu0 0
        %2279 = vmatprep.subr.bf16.mxu0 0
        %2280 = vmatpush2.bf16.xpose.msra.mxu0 0
        %2281 = vmatprep.subr.bf16.mxu0 0
        %2282 = vmatpush2.bf16.xpose.msra.mxu0 0
        %2283 = vmatprep.subr.bf16.mxu0 0
        %2284 = vmatpush2.bf16.xpose.msra.mxu0 0
        %2285 = vmatprep.subr.bf16.mxu0 0
        %2286 = vmatpush2.bf16.xpose.msra.mxu0 0
        %2287 = vmatprep.mubr.bf16.mxu0 0
        %2288 = vmatmul.mubr.bf16.gmra.mxu0 %v2247
        %v2289 = vpop.f32.mrf.mxu0
        %v2290 = vadd.f32 0.0, %v2289
        %v2291 = vpop.f32.mrf.mxu0
        %v2292 = vpop.f32.mrf.mxu0
        %v2293 = vpop.f32.mrf.mxu0
        %2294 = vdwg.mxu0
        %v2295 = vpack.c.b16 %v1983, %v1982
        %v2296 = vpack.c.b16 %v1984, %v1984
        %v2298 = vsel %vm2041, %v1940, 0
        %v2301 = vsel %vm2041, %v2295, 0
        %v2304 = vsel %vm2041, %v2296, 0
        %2306 = vmatprep.subr.bf16.mxu0 0
        %2307 = vmatpush1.bf16.xpose.msra.mxu0 0
        %2308 = vmatprep.subr.bf16.mxu0 0
        %2309 = vmatpush1.bf16.xpose.msra.mxu0 0
        %2310 = vmatprep.subr.bf16.mxu0 0
        %2311 = vmatpush1.bf16.xpose.msra.mxu0 0
        %2312 = vmatprep.subr.bf16.mxu0 0
        %2313 = vmatpush1.bf16.xpose.msra.mxu0 0
        %2314 = vmatprep.subr.bf16.mxu0 0
        %2315 = vmatpush1.bf16.xpose.msra.mxu0 0
        %2316 = vmatprep.subr.bf16.mxu0 0
        %2317 = vmatpush1.bf16.xpose.msra.mxu0 0
        %2318 = vmatprep.subr.bf16.mxu0 0
        %2319 = vmatpush1.bf16.xpose.msra.mxu0 %v2304
        %2320 = vmatprep.subr.bf16.mxu0 0
        %2321 = vmatpush1.bf16.xpose.msra.mxu0 %v2301
        %2322 = vmatprep.subr.bf16.mxu0 0
        %2323 = vmatpush2.bf16.xpose.msra.mxu0 0
        %2324 = vmatprep.subr.bf16.mxu0 0
        %2325 = vmatpush2.bf16.xpose.msra.mxu0 0
        %2326 = vmatprep.subr.bf16.mxu0 0
        %2327 = vmatpush2.bf16.xpose.msra.mxu0 0
        %2328 = vmatprep.subr.bf16.mxu0 0
        %2329 = vmatpush2.bf16.xpose.msra.mxu0 0
        %2330 = vmatprep.subr.bf16.mxu0 0
        %2331 = vmatpush2.bf16.xpose.msra.mxu0 0
        %2332 = vmatprep.subr.bf16.mxu0 0
        %2333 = vmatpush2.bf16.xpose.msra.mxu0 0
        %2334 = vmatprep.subr.bf16.mxu0 0
        %2335 = vmatpush2.bf16.xpose.msra.mxu0 0
        %2336 = vmatprep.subr.bf16.mxu0 0
        %2337 = vmatpush2.bf16.xpose.msra.mxu0 0
        %2338 = vmatprep.mubr.bf16.mxu0 0
        %2339 = vmatmul.mubr.bf16.gmra.mxu0 %v2298
        %v2340 = vpop.f32.mrf.mxu0
        %v2341 = vadd.f32 0.0, %v2340
        %v2342 = vpop.f32.mrf.mxu0
        %v2343 = vpop.f32.mrf.mxu0
        %v2344 = vpop.f32.mrf.mxu0
        %2345 = vdwg.mxu0
        %v2346 = vpack.c.b16 %v1986, %v1985
        %v2347 = vpack.c.b16 %v1987, %v1987
        %v2349 = vsel %vm2041, %v1941, 0
        %v2352 = vsel %vm2041, %v2346, 0
        %v2355 = vsel %vm2041, %v2347, 0
        %2357 = vmatprep.subr.bf16.mxu0 0
        %2358 = vmatpush1.bf16.xpose.msra.mxu0 0
        %2359 = vmatprep.subr.bf16.mxu0 0
        %2360 = vmatpush1.bf16.xpose.msra.mxu0 0
        %2361 = vmatprep.subr.bf16.mxu0 0
        %2362 = vmatpush1.bf16.xpose.msra.mxu0 0
        %2363 = vmatprep.subr.bf16.mxu0 0
        %2364 = vmatpush1.bf16.xpose.msra.mxu0 0
        %2365 = vmatprep.subr.bf16.mxu0 0
        %2366 = vmatpush1.bf16.xpose.msra.mxu0 0
        %2367 = vmatprep.subr.bf16.mxu0 0
        %2368 = vmatpush1.bf16.xpose.msra.mxu0 0
        %2369 = vmatprep.subr.bf16.mxu0 0
        %2370 = vmatpush1.bf16.xpose.msra.mxu0 %v2355
        %2371 = vmatprep.subr.bf16.mxu0 0
        %2372 = vmatpush1.bf16.xpose.msra.mxu0 %v2352
        %2373 = vmatprep.subr.bf16.mxu0 0
        %2374 = vmatpush2.bf16.xpose.msra.mxu0 0
        %2375 = vmatprep.subr.bf16.mxu0 0
        %2376 = vmatpush2.bf16.xpose.msra.mxu0 0
        %2377 = vmatprep.subr.bf16.mxu0 0
        %2378 = vmatpush2.bf16.xpose.msra.mxu0 0
        %2379 = vmatprep.subr.bf16.mxu0 0
        %2380 = vmatpush2.bf16.xpose.msra.mxu0 0
        %2381 = vmatprep.subr.bf16.mxu0 0
        %2382 = vmatpush2.bf16.xpose.msra.mxu0 0
        %2383 = vmatprep.subr.bf16.mxu0 0
        %2384 = vmatpush2.bf16.xpose.msra.mxu0 0
        %2385 = vmatprep.subr.bf16.mxu0 0
        %2386 = vmatpush2.bf16.xpose.msra.mxu0 0
        %2387 = vmatprep.subr.bf16.mxu0 0
        %2388 = vmatpush2.bf16.xpose.msra.mxu0 0
        %2389 = vmatprep.mubr.bf16.mxu0 0
        %2390 = vmatmul.mubr.bf16.gmra.mxu0 %v2349
        %v2391 = vpop.f32.mrf.mxu0
        %v2392 = vadd.f32 0.0, %v2391
        %v2393 = vpop.f32.mrf.mxu0
        %v2394 = vpop.f32.mrf.mxu0
        %v2395 = vpop.f32.mrf.mxu0
        %2396 = vdwg.mxu0
        %v2397 = vpack.c.b16 %v1989, %v1988
        %v2398 = vpack.c.b16 %v1990, %v1990
        %v2400 = vsel %vm2041, %v1942, 0
        %v2403 = vsel %vm2041, %v2397, 0
        %v2406 = vsel %vm2041, %v2398, 0
        %2408 = vmatprep.subr.bf16.mxu0 0
        %2409 = vmatpush1.bf16.xpose.msra.mxu0 0
        %2410 = vmatprep.subr.bf16.mxu0 0
        %2411 = vmatpush1.bf16.xpose.msra.mxu0 0
        %2412 = vmatprep.subr.bf16.mxu0 0
        %2413 = vmatpush1.bf16.xpose.msra.mxu0 0
        %2414 = vmatprep.subr.bf16.mxu0 0
        %2415 = vmatpush1.bf16.xpose.msra.mxu0 0
        %2416 = vmatprep.subr.bf16.mxu0 0
        %2417 = vmatpush1.bf16.xpose.msra.mxu0 0
        %2418 = vmatprep.subr.bf16.mxu0 0
        %2419 = vmatpush1.bf16.xpose.msra.mxu0 0
        %2420 = vmatprep.subr.bf16.mxu0 0
        %2421 = vmatpush1.bf16.xpose.msra.mxu0 %v2406
        %2422 = vmatprep.subr.bf16.mxu0 0
        %2423 = vmatpush1.bf16.xpose.msra.mxu0 %v2403
        %2424 = vmatprep.subr.bf16.mxu0 0
        %2425 = vmatpush2.bf16.xpose.msra.mxu0 0
        %2426 = vmatprep.subr.bf16.mxu0 0
        %2427 = vmatpush2.bf16.xpose.msra.mxu0 0
        %2428 = vmatprep.subr.bf16.mxu0 0
        %2429 = vmatpush2.bf16.xpose.msra.mxu0 0
        %2430 = vmatprep.subr.bf16.mxu0 0
        %2431 = vmatpush2.bf16.xpose.msra.mxu0 0
        %2432 = vmatprep.subr.bf16.mxu0 0
        %2433 = vmatpush2.bf16.xpose.msra.mxu0 0
        %2434 = vmatprep.subr.bf16.mxu0 0
        %2435 = vmatpush2.bf16.xpose.msra.mxu0 0
        %2436 = vmatprep.subr.bf16.mxu0 0
        %2437 = vmatpush2.bf16.xpose.msra.mxu0 0
        %2438 = vmatprep.subr.bf16.mxu0 0
        %2439 = vmatpush2.bf16.xpose.msra.mxu0 0
        %2440 = vmatprep.mubr.bf16.mxu0 0
        %2441 = vmatmul.mubr.bf16.gmra.mxu0 %v2400
        %v2442 = vpop.f32.mrf.mxu0
        %v2443 = vadd.f32 0.0, %v2442
        %v2444 = vpop.f32.mrf.mxu0
        %v2445 = vpop.f32.mrf.mxu0
        %v2446 = vpop.f32.mrf.mxu0
        %2447 = vdwg.mxu0
        %vm2448 = vcmask 195584
        %v2449 = vsel %vm2448, %v2086, -inf
        %2450 = vmax.xlane.f32.xlu0 %v2449
        %v2451 = vpop.xlane.xlu0 %2450
        %v2452 = vsel %vm2448, %v2137, -inf
        %2453 = vmax.xlane.f32.xlu0 %v2452
        %v2454 = vpop.xlane.xlu0 %2453
        %v2455 = vsel %vm2448, %v2188, -inf
        %2456 = vmax.xlane.f32.xlu0 %v2455
        %v2457 = vpop.xlane.xlu0 %2456
        %v2458 = vsel %vm2448, %v2239, -inf
        %2459 = vmax.xlane.f32.xlu0 %v2458
        %v2460 = vpop.xlane.xlu0 %2459
        %v2461 = vsel %vm2448, %v2290, -inf
        %2462 = vmax.xlane.f32.xlu0 %v2461
        %v2463 = vpop.xlane.xlu0 %2462
        %v2464 = vsel %vm2448, %v2341, -inf
        %2465 = vmax.xlane.f32.xlu0 %v2464
        %v2466 = vpop.xlane.xlu0 %2465
        %v2467 = vsel %vm2448, %v2392, -inf
        %2468 = vmax.xlane.f32.xlu0 %v2467
        %v2469 = vpop.xlane.xlu0 %2468
        %v2470 = vsel %vm2448, %v2443, -inf
        %2471 = vmax.xlane.f32.xlu0 %v2470
        %v2472 = vpop.xlane.xlu0 %2471
        %v2473 = vsub.f32 %v2086, %v2451
        %v2474 = vsub.f32 %v2137, %v2454
        %v2475 = vsub.f32 %v2188, %v2457
        %v2476 = vsub.f32 %v2239, %v2460
        %v2477 = vsub.f32 %v2290, %v2463
        %v2478 = vsub.f32 %v2341, %v2466
        %v2479 = vsub.f32 %v2392, %v2469
        %v2480 = vsub.f32 %v2443, %v2472
        %v2481 = vmul.f32 %v2473, 1.442695
        %v2482 = vpow.pop %v2481
        %v2483 = vmul.f32 %v2474, 1.442695
        %v2484 = vpow.pop %v2483
        %v2485 = vmul.f32 %v2475, 1.442695
        %v2486 = vpow.pop %v2485
        %v2487 = vmul.f32 %v2476, 1.442695
        %v2488 = vpow.pop %v2487
        %v2489 = vmul.f32 %v2477, 1.442695
        %v2490 = vpow.pop %v2489
        %v2491 = vmul.f32 %v2478, 1.442695
        %v2492 = vpow.pop %v2491
        %v2493 = vmul.f32 %v2479, 1.442695
        %v2494 = vpow.pop %v2493
        %v2495 = vmul.f32 %v2480, 1.442695
        %v2496 = vpow.pop %v2495
        %v2497 = vsel %vm2448, %v2482, 0.0
        %2498 = vadd.xlane.f32.xlu0 %v2497
        %v2499 = vpop.xlane.xlu0 %2498
        %v2500 = vsel %vm2448, %v2484, 0.0
        %2501 = vadd.xlane.f32.xlu0 %v2500
        %v2502 = vpop.xlane.xlu0 %2501
        %v2503 = vsel %vm2448, %v2486, 0.0
        %2504 = vadd.xlane.f32.xlu0 %v2503
        %v2505 = vpop.xlane.xlu0 %2504
        %v2506 = vsel %vm2448, %v2488, 0.0
        %2507 = vadd.xlane.f32.xlu0 %v2506
        %v2508 = vpop.xlane.xlu0 %2507
        %v2509 = vsel %vm2448, %v2490, 0.0
        %2510 = vadd.xlane.f32.xlu0 %v2509
        %v2511 = vpop.xlane.xlu0 %2510
        %v2512 = vsel %vm2448, %v2492, 0.0
        %2513 = vadd.xlane.f32.xlu0 %v2512
        %v2514 = vpop.xlane.xlu0 %2513
        %v2515 = vsel %vm2448, %v2494, 0.0
        %2516 = vadd.xlane.f32.xlu0 %v2515
        %v2517 = vpop.xlane.xlu0 %2516
        %v2518 = vsel %vm2448, %v2496, 0.0
        %2519 = vadd.xlane.f32.xlu0 %v2518
        %v2520 = vpop.xlane.xlu0 %2519
        %v2521 = vpack.c.bf16 %v2482, %v2482
        %v2522 = vpack.c.bf16 %v2484, %v2484
        %v2523 = vpack.c.bf16 %v2486, %v2486
        %v2524 = vpack.c.bf16 %v2488, %v2488
        %v2525 = vpack.c.bf16 %v2490, %v2490
        %v2526 = vpack.c.bf16 %v2492, %v2492
        %v2527 = vpack.c.bf16 %v2494, %v2494
        %v2528 = vpack.c.bf16 %v2496, %v2496
        %v2529 = vpack.c.b16 %v2016, %v2015
        %v2530 = vpack.c.b16 %v2017, %v2017
        %v2533 = vsel %vm2448, %v2521, 0
        %vm2535 = vcmask 1043456
        %v2537 = vsel %vm2535, %v2530, 0
        %2539 = vmatprep.subr.bf16.mxu0 0
        %2540 = vmatpush1.bf16.msra.mxu0 0
        %2541 = vmatprep.subr.bf16.mxu0 0
        %2542 = vmatpush1.bf16.msra.mxu0 0
        %2543 = vmatprep.subr.bf16.mxu0 0
        %2544 = vmatpush1.bf16.msra.mxu0 0
        %2545 = vmatprep.subr.bf16.mxu0 0
        %2546 = vmatpush1.bf16.msra.mxu0 0
        %2547 = vmatprep.subr.bf16.mxu0 0
        %2548 = vmatpush1.bf16.msra.mxu0 0
        %2549 = vmatprep.subr.bf16.mxu0 0
        %2550 = vmatpush1.bf16.msra.mxu0 0
        %2551 = vmatprep.subr.bf16.mxu0 0
        %2552 = vmatpush1.bf16.msra.mxu0 %v2537
        %2553 = vmatprep.subr.bf16.mxu0 0
        %2554 = vmatpush1.bf16.msra.mxu0 %v2529
        %2555 = vmatprep.subr.bf16.mxu0 0
        %2556 = vmatpush2.bf16.msra.mxu0 0
        %2557 = vmatprep.subr.bf16.mxu0 0
        %2558 = vmatpush2.bf16.msra.mxu0 0
        %2559 = vmatprep.subr.bf16.mxu0 0
        %2560 = vmatpush2.bf16.msra.mxu0 0
        %2561 = vmatprep.subr.bf16.mxu0 0
        %2562 = vmatpush2.bf16.msra.mxu0 0
        %2563 = vmatprep.subr.bf16.mxu0 0
        %2564 = vmatpush2.bf16.msra.mxu0 0
        %2565 = vmatprep.subr.bf16.mxu0 0
        %2566 = vmatpush2.bf16.msra.mxu0 0
        %2567 = vmatprep.subr.bf16.mxu0 0
        %2568 = vmatpush2.bf16.msra.mxu0 0
        %2569 = vmatprep.subr.bf16.mxu0 0
        %2570 = vmatpush2.bf16.msra.mxu0 0
        %2571 = vmatprep.mubr.bf16.mxu0 0
        %2572 = vmatmul.mubr.bf16.gmra.mxu0 %v2533
        %v2573 = vpop.f32.mrf.mxu0
        %v2574 = vadd.f32 0.0, %v2573
        %v2575 = vpop.f32.mrf.mxu0
        %v2576 = vpop.f32.mrf.mxu0
        %v2577 = vpop.f32.mrf.mxu0
        %2578 = vdwg.mxu0
        %v2579 = vpack.c.b16 %v2019, %v2018
        %v2580 = vpack.c.b16 %v2020, %v2020
        %v2583 = vsel %vm2448, %v2522, 0
        %v2586 = vsel %vm2535, %v2580, 0
        %2588 = vmatprep.subr.bf16.mxu0 0
        %2589 = vmatpush1.bf16.msra.mxu0 0
        %2590 = vmatprep.subr.bf16.mxu0 0
        %2591 = vmatpush1.bf16.msra.mxu0 0
        %2592 = vmatprep.subr.bf16.mxu0 0
        %2593 = vmatpush1.bf16.msra.mxu0 0
        %2594 = vmatprep.subr.bf16.mxu0 0
        %2595 = vmatpush1.bf16.msra.mxu0 0
        %2596 = vmatprep.subr.bf16.mxu0 0
        %2597 = vmatpush1.bf16.msra.mxu0 0
        %2598 = vmatprep.subr.bf16.mxu0 0
        %2599 = vmatpush1.bf16.msra.mxu0 0
        %2600 = vmatprep.subr.bf16.mxu0 0
        %2601 = vmatpush1.bf16.msra.mxu0 %v2586
        %2602 = vmatprep.subr.bf16.mxu0 0
        %2603 = vmatpush1.bf16.msra.mxu0 %v2579
        %2604 = vmatprep.subr.bf16.mxu0 0
        %2605 = vmatpush2.bf16.msra.mxu0 0
        %2606 = vmatprep.subr.bf16.mxu0 0
        %2607 = vmatpush2.bf16.msra.mxu0 0
        %2608 = vmatprep.subr.bf16.mxu0 0
        %2609 = vmatpush2.bf16.msra.mxu0 0
        %2610 = vmatprep.subr.bf16.mxu0 0
        %2611 = vmatpush2.bf16.msra.mxu0 0
        %2612 = vmatprep.subr.bf16.mxu0 0
        %2613 = vmatpush2.bf16.msra.mxu0 0
        %2614 = vmatprep.subr.bf16.mxu0 0
        %2615 = vmatpush2.bf16.msra.mxu0 0
        %2616 = vmatprep.subr.bf16.mxu0 0
        %2617 = vmatpush2.bf16.msra.mxu0 0
        %2618 = vmatprep.subr.bf16.mxu0 0
        %2619 = vmatpush2.bf16.msra.mxu0 0
        %2620 = vmatprep.mubr.bf16.mxu0 0
        %2621 = vmatmul.mubr.bf16.gmra.mxu0 %v2583
        %v2622 = vpop.f32.mrf.mxu0
        %v2623 = vadd.f32 0.0, %v2622
        %v2624 = vpop.f32.mrf.mxu0
        %v2625 = vpop.f32.mrf.mxu0
        %v2626 = vpop.f32.mrf.mxu0
        %2627 = vdwg.mxu0
        %v2628 = vpack.c.b16 %v2022, %v2021
        %v2629 = vpack.c.b16 %v2023, %v2023
        %v2632 = vsel %vm2448, %v2523, 0
        %v2635 = vsel %vm2535, %v2629, 0
        %2637 = vmatprep.subr.bf16.mxu0 0
        %2638 = vmatpush1.bf16.msra.mxu0 0
        %2639 = vmatprep.subr.bf16.mxu0 0
        %2640 = vmatpush1.bf16.msra.mxu0 0
        %2641 = vmatprep.subr.bf16.mxu0 0
        %2642 = vmatpush1.bf16.msra.mxu0 0
        %2643 = vmatprep.subr.bf16.mxu0 0
        %2644 = vmatpush1.bf16.msra.mxu0 0
        %2645 = vmatprep.subr.bf16.mxu0 0
        %2646 = vmatpush1.bf16.msra.mxu0 0
        %2647 = vmatprep.subr.bf16.mxu0 0
        %2648 = vmatpush1.bf16.msra.mxu0 0
        %2649 = vmatprep.subr.bf16.mxu0 0
        %2650 = vmatpush1.bf16.msra.mxu0 %v2635
        %2651 = vmatprep.subr.bf16.mxu0 0
        %2652 = vmatpush1.bf16.msra.mxu0 %v2628
        %2653 = vmatprep.subr.bf16.mxu0 0
        %2654 = vmatpush2.bf16.msra.mxu0 0
        %2655 = vmatprep.subr.bf16.mxu0 0
        %2656 = vmatpush2.bf16.msra.mxu0 0
        %2657 = vmatprep.subr.bf16.mxu0 0
        %2658 = vmatpush2.bf16.msra.mxu0 0
        %2659 = vmatprep.subr.bf16.mxu0 0
        %2660 = vmatpush2.bf16.msra.mxu0 0
        %2661 = vmatprep.subr.bf16.mxu0 0
        %2662 = vmatpush2.bf16.msra.mxu0 0
        %2663 = vmatprep.subr.bf16.mxu0 0
        %2664 = vmatpush2.bf16.msra.mxu0 0
        %2665 = vmatprep.subr.bf16.mxu0 0
        %2666 = vmatpush2.bf16.msra.mxu0 0
        %2667 = vmatprep.subr.bf16.mxu0 0
        %2668 = vmatpush2.bf16.msra.mxu0 0
        %2669 = vmatprep.mubr.bf16.mxu0 0
        %2670 = vmatmul.mubr.bf16.gmra.mxu0 %v2632
        %v2671 = vpop.f32.mrf.mxu0
        %v2672 = vadd.f32 0.0, %v2671
        %v2673 = vpop.f32.mrf.mxu0
        %v2674 = vpop.f32.mrf.mxu0
        %v2675 = vpop.f32.mrf.mxu0
        %2676 = vdwg.mxu0
        %v2677 = vpack.c.b16 %v2025, %v2024
        %v2678 = vpack.c.b16 %v2026, %v2026
        %v2681 = vsel %vm2448, %v2524, 0
        %v2684 = vsel %vm2535, %v2678, 0
        %2686 = vmatprep.subr.bf16.mxu0 0
        %2687 = vmatpush1.bf16.msra.mxu0 0
        %2688 = vmatprep.subr.bf16.mxu0 0
        %2689 = vmatpush1.bf16.msra.mxu0 0
        %2690 = vmatprep.subr.bf16.mxu0 0
        %2691 = vmatpush1.bf16.msra.mxu0 0
        %2692 = vmatprep.subr.bf16.mxu0 0
        %2693 = vmatpush1.bf16.msra.mxu0 0
        %2694 = vmatprep.subr.bf16.mxu0 0
        %2695 = vmatpush1.bf16.msra.mxu0 0
        %2696 = vmatprep.subr.bf16.mxu0 0
        %2697 = vmatpush1.bf16.msra.mxu0 0
        %2698 = vmatprep.subr.bf16.mxu0 0
        %2699 = vmatpush1.bf16.msra.mxu0 %v2684
        %2700 = vmatprep.subr.bf16.mxu0 0
        %2701 = vmatpush1.bf16.msra.mxu0 %v2677
        %2702 = vmatprep.subr.bf16.mxu0 0
        %2703 = vmatpush2.bf16.msra.mxu0 0
        %2704 = vmatprep.subr.bf16.mxu0 0
        %2705 = vmatpush2.bf16.msra.mxu0 0
        %2706 = vmatprep.subr.bf16.mxu0 0
        %2707 = vmatpush2.bf16.msra.mxu0 0
        %2708 = vmatprep.subr.bf16.mxu0 0
        %2709 = vmatpush2.bf16.msra.mxu0 0
        %2710 = vmatprep.subr.bf16.mxu0 0
        %2711 = vmatpush2.bf16.msra.mxu0 0
        %2712 = vmatprep.subr.bf16.mxu0 0
        %2713 = vmatpush2.bf16.msra.mxu0 0
        %2714 = vmatprep.subr.bf16.mxu0 0
        %2715 = vmatpush2.bf16.msra.mxu0 0
        %2716 = vmatprep.subr.bf16.mxu0 0
        %2717 = vmatpush2.bf16.msra.mxu0 0
        %2718 = vmatprep.mubr.bf16.mxu0 0
        %2719 = vmatmul.mubr.bf16.gmra.mxu0 %v2681
        %v2720 = vpop.f32.mrf.mxu0
        %v2721 = vadd.f32 0.0, %v2720
        %v2722 = vpop.f32.mrf.mxu0
        %v2723 = vpop.f32.mrf.mxu0
        %v2724 = vpop.f32.mrf.mxu0
        %2725 = vdwg.mxu0
        %v2726 = vpack.c.b16 %v2028, %v2027
        %v2727 = vpack.c.b16 %v2029, %v2029
        %v2730 = vsel %vm2448, %v2525, 0
        %v2733 = vsel %vm2535, %v2727, 0
        %2735 = vmatprep.subr.bf16.mxu0 0
        %2736 = vmatpush1.bf16.msra.mxu0 0
        %2737 = vmatprep.subr.bf16.mxu0 0
        %2738 = vmatpush1.bf16.msra.mxu0 0
        %2739 = vmatprep.subr.bf16.mxu0 0
        %2740 = vmatpush1.bf16.msra.mxu0 0
        %2741 = vmatprep.subr.bf16.mxu0 0
        %2742 = vmatpush1.bf16.msra.mxu0 0
        %2743 = vmatprep.subr.bf16.mxu0 0
        %2744 = vmatpush1.bf16.msra.mxu0 0
        %2745 = vmatprep.subr.bf16.mxu0 0
        %2746 = vmatpush1.bf16.msra.mxu0 0
        %2747 = vmatprep.subr.bf16.mxu0 0
        %2748 = vmatpush1.bf16.msra.mxu0 %v2733
        %2749 = vmatprep.subr.bf16.mxu0 0
        %2750 = vmatpush1.bf16.msra.mxu0 %v2726
        %2751 = vmatprep.subr.bf16.mxu0 0
        %2752 = vmatpush2.bf16.msra.mxu0 0
        %2753 = vmatprep.subr.bf16.mxu0 0
        %2754 = vmatpush2.bf16.msra.mxu0 0
        %2755 = vmatprep.subr.bf16.mxu0 0
        %2756 = vmatpush2.bf16.msra.mxu0 0
        %2757 = vmatprep.subr.bf16.mxu0 0
        %2758 = vmatpush2.bf16.msra.mxu0 0
        %2759 = vmatprep.subr.bf16.mxu0 0
        %2760 = vmatpush2.bf16.msra.mxu0 0
        %2761 = vmatprep.subr.bf16.mxu0 0
        %2762 = vmatpush2.bf16.msra.mxu0 0
        %2763 = vmatprep.subr.bf16.mxu0 0
        %2764 = vmatpush2.bf16.msra.mxu0 0
        %2765 = vmatprep.subr.bf16.mxu0 0
        %2766 = vmatpush2.bf16.msra.mxu0 0
        %2767 = vmatprep.mubr.bf16.mxu0 0
        %2768 = vmatmul.mubr.bf16.gmra.mxu0 %v2730
        %v2769 = vpop.f32.mrf.mxu0
        %v2770 = vadd.f32 0.0, %v2769
        %v2771 = vpop.f32.mrf.mxu0
        %v2772 = vpop.f32.mrf.mxu0
        %v2773 = vpop.f32.mrf.mxu0
        %2774 = vdwg.mxu0
        %v2775 = vpack.c.b16 %v2031, %v2030
        %v2776 = vpack.c.b16 %v2032, %v2032
        %v2779 = vsel %vm2448, %v2526, 0
        %v2782 = vsel %vm2535, %v2776, 0
        %2784 = vmatprep.subr.bf16.mxu0 0
        %2785 = vmatpush1.bf16.msra.mxu0 0
        %2786 = vmatprep.subr.bf16.mxu0 0
        %2787 = vmatpush1.bf16.msra.mxu0 0
        %2788 = vmatprep.subr.bf16.mxu0 0
        %2789 = vmatpush1.bf16.msra.mxu0 0
        %2790 = vmatprep.subr.bf16.mxu0 0
        %2791 = vmatpush1.bf16.msra.mxu0 0
        %2792 = vmatprep.subr.bf16.mxu0 0
        %2793 = vmatpush1.bf16.msra.mxu0 0
        %2794 = vmatprep.subr.bf16.mxu0 0
        %2795 = vmatpush1.bf16.msra.mxu0 0
        %2796 = vmatprep.subr.bf16.mxu0 0
        %2797 = vmatpush1.bf16.msra.mxu0 %v2782
        %2798 = vmatprep.subr.bf16.mxu0 0
        %2799 = vmatpush1.bf16.msra.mxu0 %v2775
        %2800 = vmatprep.subr.bf16.mxu0 0
        %2801 = vmatpush2.bf16.msra.mxu0 0
        %2802 = vmatprep.subr.bf16.mxu0 0
        %2803 = vmatpush2.bf16.msra.mxu0 0
        %2804 = vmatprep.subr.bf16.mxu0 0
        %2805 = vmatpush2.bf16.msra.mxu0 0
        %2806 = vmatprep.subr.bf16.mxu0 0
        %2807 = vmatpush2.bf16.msra.mxu0 0
        %2808 = vmatprep.subr.bf16.mxu0 0
        %2809 = vmatpush2.bf16.msra.mxu0 0
        %2810 = vmatprep.subr.bf16.mxu0 0
        %2811 = vmatpush2.bf16.msra.mxu0 0
        %2812 = vmatprep.subr.bf16.mxu0 0
        %2813 = vmatpush2.bf16.msra.mxu0 0
        %2814 = vmatprep.subr.bf16.mxu0 0
        %2815 = vmatpush2.bf16.msra.mxu0 0
        %2816 = vmatprep.mubr.bf16.mxu0 0
        %2817 = vmatmul.mubr.bf16.gmra.mxu0 %v2779
        %v2818 = vpop.f32.mrf.mxu0
        %v2819 = vadd.f32 0.0, %v2818
        %v2820 = vpop.f32.mrf.mxu0
        %v2821 = vpop.f32.mrf.mxu0
        %v2822 = vpop.f32.mrf.mxu0
        %2823 = vdwg.mxu0
        %v2824 = vpack.c.b16 %v2034, %v2033
        %v2825 = vpack.c.b16 %v2035, %v2035
        %v2828 = vsel %vm2448, %v2527, 0
        %v2831 = vsel %vm2535, %v2825, 0
        %2833 = vmatprep.subr.bf16.mxu0 0
        %2834 = vmatpush1.bf16.msra.mxu0 0
        %2835 = vmatprep.subr.bf16.mxu0 0
        %2836 = vmatpush1.bf16.msra.mxu0 0
        %2837 = vmatprep.subr.bf16.mxu0 0
        %2838 = vmatpush1.bf16.msra.mxu0 0
        %2839 = vmatprep.subr.bf16.mxu0 0
        %2840 = vmatpush1.bf16.msra.mxu0 0
        %2841 = vmatprep.subr.bf16.mxu0 0
        %2842 = vmatpush1.bf16.msra.mxu0 0
        %2843 = vmatprep.subr.bf16.mxu0 0
        %2844 = vmatpush1.bf16.msra.mxu0 0
        %2845 = vmatprep.subr.bf16.mxu0 0
        %2846 = vmatpush1.bf16.msra.mxu0 %v2831
        %2847 = vmatprep.subr.bf16.mxu0 0
        %2848 = vmatpush1.bf16.msra.mxu0 %v2824
        %2849 = vmatprep.subr.bf16.mxu0 0
        %2850 = vmatpush2.bf16.msra.mxu0 0
        %2851 = vmatprep.subr.bf16.mxu0 0
        %2852 = vmatpush2.bf16.msra.mxu0 0
        %2853 = vmatprep.subr.bf16.mxu0 0
        %2854 = vmatpush2.bf16.msra.mxu0 0
        %2855 = vmatprep.subr.bf16.mxu0 0
        %2856 = vmatpush2.bf16.msra.mxu0 0
        %2857 = vmatprep.subr.bf16.mxu0 0
        %2858 = vmatpush2.bf16.msra.mxu0 0
        %2859 = vmatprep.subr.bf16.mxu0 0
        %2860 = vmatpush2.bf16.msra.mxu0 0
        %2861 = vmatprep.subr.bf16.mxu0 0
        %2862 = vmatpush2.bf16.msra.mxu0 0
        %2863 = vmatprep.subr.bf16.mxu0 0
        %2864 = vmatpush2.bf16.msra.mxu0 0
        %2865 = vmatprep.mubr.bf16.mxu0 0
        %2866 = vmatmul.mubr.bf16.gmra.mxu0 %v2828
        %v2867 = vpop.f32.mrf.mxu0
        %v2868 = vadd.f32 0.0, %v2867
        %v2869 = vpop.f32.mrf.mxu0
        %v2870 = vpop.f32.mrf.mxu0
        %v2871 = vpop.f32.mrf.mxu0
        %2872 = vdwg.mxu0
        %v2873 = vpack.c.b16 %v2037, %v2036
        %v2874 = vpack.c.b16 %v2038, %v2038
        %v2877 = vsel %vm2448, %v2528, 0
        %v2880 = vsel %vm2535, %v2874, 0
        %2882 = vmatprep.subr.bf16.mxu0 0
        %2883 = vmatpush1.bf16.msra.mxu0 0
        %2884 = vmatprep.subr.bf16.mxu0 0
        %2885 = vmatpush1.bf16.msra.mxu0 0
        %2886 = vmatprep.subr.bf16.mxu0 0
        %2887 = vmatpush1.bf16.msra.mxu0 0
        %2888 = vmatprep.subr.bf16.mxu0 0
        %2889 = vmatpush1.bf16.msra.mxu0 0
        %2890 = vmatprep.subr.bf16.mxu0 0
        %2891 = vmatpush1.bf16.msra.mxu0 0
        %2892 = vmatprep.subr.bf16.mxu0 0
        %2893 = vmatpush1.bf16.msra.mxu0 0
        %2894 = vmatprep.subr.bf16.mxu0 0
        %2895 = vmatpush1.bf16.msra.mxu0 %v2880
        %2896 = vmatprep.subr.bf16.mxu0 0
        %2897 = vmatpush1.bf16.msra.mxu0 %v2873
        %2898 = vmatprep.subr.bf16.mxu0 0
        %2899 = vmatpush2.bf16.msra.mxu0 0
        %2900 = vmatprep.subr.bf16.mxu0 0
        %2901 = vmatpush2.bf16.msra.mxu0 0
        %2902 = vmatprep.subr.bf16.mxu0 0
        %2903 = vmatpush2.bf16.msra.mxu0 0
        %2904 = vmatprep.subr.bf16.mxu0 0
        %2905 = vmatpush2.bf16.msra.mxu0 0
        %2906 = vmatprep.subr.bf16.mxu0 0
        %2907 = vmatpush2.bf16.msra.mxu0 0
        %2908 = vmatprep.subr.bf16.mxu0 0
        %2909 = vmatpush2.bf16.msra.mxu0 0
        %2910 = vmatprep.subr.bf16.mxu0 0
        %2911 = vmatpush2.bf16.msra.mxu0 0
        %2912 = vmatprep.subr.bf16.mxu0 0
        %2913 = vmatpush2.bf16.msra.mxu0 0
        %2914 = vmatprep.mubr.bf16.mxu0 0
        %2915 = vmatmul.mubr.bf16.gmra.mxu0 %v2877
        %v2916 = vpop.f32.mrf.mxu0
        %v2917 = vadd.f32 0.0, %v2916
        %v2918 = vpop.f32.mrf.mxu0
        %v2919 = vpop.f32.mrf.mxu0
        %v2920 = vpop.f32.mrf.mxu0
        %2921 = vdwg.mxu0
        %v2922 = vrcp.pop %v2499
        %v2923 = vrcp.pop %v2502
        %v2924 = vrcp.pop %v2505
        %v2925 = vrcp.pop %v2508
        %v2926 = vrcp.pop %v2511
        %v2927 = vrcp.pop %v2514
        %v2928 = vrcp.pop %v2517
        %v2929 = vrcp.pop %v2520
        %v2930 = vmul.f32 %v2574, %v2922
        %v2931 = vmul.f32 %v2623, %v2923
        %v2932 = vmul.f32 %v2672, %v2924
        %v2933 = vmul.f32 %v2721, %v2925
        %v2934 = vmul.f32 %v2770, %v2926
        %v2935 = vmul.f32 %v2819, %v2927
        %v2936 = vmul.f32 %v2868, %v2928
        %v2937 = vmul.f32 %v2917, %v2929
        %v2938 = vpack.c.bf16 %v2930, %v2930
        %v2939 = vpack.c.bf16 %v2931, %v2931
        %v2940 = vpack.c.bf16 %v2932, %v2932
        %v2941 = vpack.c.bf16 %v2933, %v2933
        %v2942 = vpack.c.bf16 %v2934, %v2934
        %v2943 = vpack.c.bf16 %v2935, %v2935
        %v2944 = vpack.c.bf16 %v2936, %v2936
        %v2945 = vpack.c.bf16 %v2937, %v2937
        %v2946 = vld [vmem:[%s8] sm:$0xf]
        %v2947 = vld [vmem:[%s8 + $0x4] sm:$0xf]
        %v2948 = vld [vmem:[%s8 + $0x8] sm:$0xf]
        %v2949 = vld [vmem:[%s8 + $0xc] sm:$0xf]
        %v2950 = vld [vmem:[%s8 + $0x10] sm:$0xf]
        %v2951 = vld [vmem:[%s8 + $0x14] sm:$0xf]
        %v2952 = vld [vmem:[%s8 + $0x18] sm:$0xf]
        %v2953 = vld [vmem:[%s8 + $0x1c] sm:$0xf]
        %v2954 = vld [vmem:[%s8 + $0x20] sm:$0xf]
        %v2955 = vld [vmem:[%s8 + $0x24] sm:$0xf]
        %v2956 = vld [vmem:[%s8 + $0x28] sm:$0xf]
        %v2957 = vld [vmem:[%s8 + $0x2c] sm:$0xf]
        %v2958 = vld [vmem:[%s8 + $0x30] sm:$0xf]
        %v2959 = vld [vmem:[%s8 + $0x34] sm:$0xf]
        %v2960 = vld [vmem:[%s8 + $0x38] sm:$0xf]
        %v2961 = vld [vmem:[%s8 + $0x3c] sm:$0xf]
        %v2964 = vunpack.c.l.b16 %v2938
        %v2965 = vunpack.c.l.b16 %v2939
        %v2966 = vpack.c.b16 %v2965, %v2964
        %v2971 = vunpack.c.l.b16 %v2946
        %v2972 = vunpack.c.l.b16 %v2947
        %v2973 = vunpack.c.l.b16 %v2948
        %v2974 = vunpack.c.l.b16 %v2949
        %v2975 = vpack.c.b16 %v2972, %v2971
        %v2976 = vpack.c.b16 %v2974, %v2973
        %v2980 = vsel %vm2041, %v2966, 0
        %2982 = vmatprep.subr.bf16.mxu0 0
        %2983 = vmatpush1.bf16.msra.mxu0 0
        %2984 = vmatprep.subr.bf16.mxu0 0
        %2985 = vmatpush1.bf16.msra.mxu0 0
        %2986 = vmatprep.subr.bf16.mxu0 0
        %2987 = vmatpush1.bf16.msra.mxu0 0
        %2988 = vmatprep.subr.bf16.mxu0 0
        %2989 = vmatpush1.bf16.msra.mxu0 0
        %2990 = vmatprep.subr.bf16.mxu0 0
        %2991 = vmatpush1.bf16.msra.mxu0 0
        %2992 = vmatprep.subr.bf16.mxu0 0
        %2993 = vmatpush1.bf16.msra.mxu0 0
        %2994 = vmatprep.subr.bf16.mxu0 0
        %2995 = vmatpush1.bf16.msra.mxu0 %v2976
        %2996 = vmatprep.subr.bf16.mxu0 0
        %2997 = vmatpush1.bf16.msra.mxu0 %v2975
        %2998 = vmatprep.subr.bf16.mxu0 0
        %2999 = vmatpush2.bf16.msra.mxu0 0
        %3000 = vmatprep.subr.bf16.mxu0 0
        %3001 = vmatpush2.bf16.msra.mxu0 0
        %3002 = vmatprep.subr.bf16.mxu0 0
        %3003 = vmatpush2.bf16.msra.mxu0 0
        %3004 = vmatprep.subr.bf16.mxu0 0
        %3005 = vmatpush2.bf16.msra.mxu0 0
        %3006 = vmatprep.subr.bf16.mxu0 0
        %3007 = vmatpush2.bf16.msra.mxu0 0
        %3008 = vmatprep.subr.bf16.mxu0 0
        %3009 = vmatpush2.bf16.msra.mxu0 0
        %3010 = vmatprep.subr.bf16.mxu0 0
        %3011 = vmatpush2.bf16.msra.mxu0 0
        %3012 = vmatprep.subr.bf16.mxu0 0
        %3013 = vmatpush2.bf16.msra.mxu0 0
        %3014 = vmatprep.mubr.bf16.mxu0 0
        %3015 = vmatmul.mubr.bf16.gmra.mxu0 %v2980
        %v3016 = vpop.f32.mrf.mxu0
        %v3017 = vadd.f32 0.0, %v3016
        %v3018 = vpop.f32.mrf.mxu0
        %v3019 = vpop.f32.mrf.mxu0
        %v3020 = vadd.f32 0.0, %v3019
        %v3021 = vpop.f32.mrf.mxu0
        %3022 = vdwg.mxu0
        %v3025 = vunpack.c.l.b16 %v2940
        %v3026 = vunpack.c.l.b16 %v2941
        %v3027 = vpack.c.b16 %v3026, %v3025
        %v3032 = vunpack.c.l.b16 %v2950
        %v3033 = vunpack.c.l.b16 %v2951
        %v3034 = vunpack.c.l.b16 %v2952
        %v3035 = vunpack.c.l.b16 %v2953
        %v3036 = vpack.c.b16 %v3033, %v3032
        %v3037 = vpack.c.b16 %v3035, %v3034
        %v3041 = vsel %vm2041, %v3027, 0
        %3043 = vmatprep.subr.bf16.mxu0 0
        %3044 = vmatpush1.bf16.msra.mxu0 0
        %3045 = vmatprep.subr.bf16.mxu0 0
        %3046 = vmatpush1.bf16.msra.mxu0 0
        %3047 = vmatprep.subr.bf16.mxu0 0
        %3048 = vmatpush1.bf16.msra.mxu0 0
        %3049 = vmatprep.subr.bf16.mxu0 0
        %3050 = vmatpush1.bf16.msra.mxu0 0
        %3051 = vmatprep.subr.bf16.mxu0 0
        %3052 = vmatpush1.bf16.msra.mxu0 0
        %3053 = vmatprep.subr.bf16.mxu0 0
        %3054 = vmatpush1.bf16.msra.mxu0 0
        %3055 = vmatprep.subr.bf16.mxu0 0
        %3056 = vmatpush1.bf16.msra.mxu0 %v3037
        %3057 = vmatprep.subr.bf16.mxu0 0
        %3058 = vmatpush1.bf16.msra.mxu0 %v3036
        %3059 = vmatprep.subr.bf16.mxu0 0
        %3060 = vmatpush2.bf16.msra.mxu0 0
        %3061 = vmatprep.subr.bf16.mxu0 0
        %3062 = vmatpush2.bf16.msra.mxu0 0
        %3063 = vmatprep.subr.bf16.mxu0 0
        %3064 = vmatpush2.bf16.msra.mxu0 0
        %3065 = vmatprep.subr.bf16.mxu0 0
        %3066 = vmatpush2.bf16.msra.mxu0 0
        %3067 = vmatprep.subr.bf16.mxu0 0
        %3068 = vmatpush2.bf16.msra.mxu0 0
        %3069 = vmatprep.subr.bf16.mxu0 0
        %3070 = vmatpush2.bf16.msra.mxu0 0
        %3071 = vmatprep.subr.bf16.mxu0 0
        %3072 = vmatpush2.bf16.msra.mxu0 0
        %3073 = vmatprep.subr.bf16.mxu0 0
        %3074 = vmatpush2.bf16.msra.mxu0 0
        %3075 = vmatprep.mubr.bf16.mxu0 0
        %3076 = vmatmul.mubr.bf16.gmra.mxu0 %v3041
        %v3077 = vpop.f32.mrf.mxu0
        %v3078 = vadd.f32 0.0, %v3077
        %v3079 = vpop.f32.mrf.mxu0
        %v3080 = vpop.f32.mrf.mxu0
        %v3081 = vadd.f32 0.0, %v3080
        %v3082 = vpop.f32.mrf.mxu0
        %3083 = vdwg.mxu0
        %v3086 = vunpack.c.l.b16 %v2942
        %v3087 = vunpack.c.l.b16 %v2943
        %v3088 = vpack.c.b16 %v3087, %v3086
        %v3093 = vunpack.c.l.b16 %v2954
        %v3094 = vunpack.c.l.b16 %v2955
        %v3095 = vunpack.c.l.b16 %v2956
        %v3096 = vunpack.c.l.b16 %v2957
        %v3097 = vpack.c.b16 %v3094, %v3093
        %v3098 = vpack.c.b16 %v3096, %v3095
        %v3102 = vsel %vm2041, %v3088, 0
        %3104 = vmatprep.subr.bf16.mxu0 0
        %3105 = vmatpush1.bf16.msra.mxu0 0
        %3106 = vmatprep.subr.bf16.mxu0 0
        %3107 = vmatpush1.bf16.msra.mxu0 0
        %3108 = vmatprep.subr.bf16.mxu0 0
        %3109 = vmatpush1.bf16.msra.mxu0 0
        %3110 = vmatprep.subr.bf16.mxu0 0
        %3111 = vmatpush1.bf16.msra.mxu0 0
        %3112 = vmatprep.subr.bf16.mxu0 0
        %3113 = vmatpush1.bf16.msra.mxu0 0
        %3114 = vmatprep.subr.bf16.mxu0 0
        %3115 = vmatpush1.bf16.msra.mxu0 0
        %3116 = vmatprep.subr.bf16.mxu0 0
        %3117 = vmatpush1.bf16.msra.mxu0 %v3098
        %3118 = vmatprep.subr.bf16.mxu0 0
        %3119 = vmatpush1.bf16.msra.mxu0 %v3097
        %3120 = vmatprep.subr.bf16.mxu0 0
        %3121 = vmatpush2.bf16.msra.mxu0 0
        %3122 = vmatprep.subr.bf16.mxu0 0
        %3123 = vmatpush2.bf16.msra.mxu0 0
        %3124 = vmatprep.subr.bf16.mxu0 0
        %3125 = vmatpush2.bf16.msra.mxu0 0
        %3126 = vmatprep.subr.bf16.mxu0 0
        %3127 = vmatpush2.bf16.msra.mxu0 0
        %3128 = vmatprep.subr.bf16.mxu0 0
        %3129 = vmatpush2.bf16.msra.mxu0 0
        %3130 = vmatprep.subr.bf16.mxu0 0
        %3131 = vmatpush2.bf16.msra.mxu0 0
        %3132 = vmatprep.subr.bf16.mxu0 0
        %3133 = vmatpush2.bf16.msra.mxu0 0
        %3134 = vmatprep.subr.bf16.mxu0 0
        %3135 = vmatpush2.bf16.msra.mxu0 0
        %3136 = vmatprep.mubr.bf16.mxu0 0
        %3137 = vmatmul.mubr.bf16.gmra.mxu0 %v3102
        %v3138 = vpop.f32.mrf.mxu0
        %v3139 = vadd.f32 0.0, %v3138
        %v3140 = vpop.f32.mrf.mxu0
        %v3141 = vpop.f32.mrf.mxu0
        %v3142 = vadd.f32 0.0, %v3141
        %v3143 = vpop.f32.mrf.mxu0
        %3144 = vdwg.mxu0
        %v3147 = vunpack.c.l.b16 %v2944
        %v3148 = vunpack.c.l.b16 %v2945
        %v3149 = vpack.c.b16 %v3148, %v3147
        %v3154 = vunpack.c.l.b16 %v2958
        %v3155 = vunpack.c.l.b16 %v2959
        %v3156 = vunpack.c.l.b16 %v2960
        %v3157 = vunpack.c.l.b16 %v2961
        %v3158 = vpack.c.b16 %v3155, %v3154
        %v3159 = vpack.c.b16 %v3157, %v3156
        %v3163 = vsel %vm2041, %v3149, 0
        %3165 = vmatprep.subr.bf16.mxu0 0
        %3166 = vmatpush1.bf16.msra.mxu0 0
        %3167 = vmatprep.subr.bf16.mxu0 0
        %3168 = vmatpush1.bf16.msra.mxu0 0
        %3169 = vmatprep.subr.bf16.mxu0 0
        %3170 = vmatpush1.bf16.msra.mxu0 0
        %3171 = vmatprep.subr.bf16.mxu0 0
        %3172 = vmatpush1.bf16.msra.mxu0 0
        %3173 = vmatprep.subr.bf16.mxu0 0
        %3174 = vmatpush1.bf16.msra.mxu0 0
        %3175 = vmatprep.subr.bf16.mxu0 0
        %3176 = vmatpush1.bf16.msra.mxu0 0
        %3177 = vmatprep.subr.bf16.mxu0 0
        %3178 = vmatpush1.bf16.msra.mxu0 %v3159
        %3179 = vmatprep.subr.bf16.mxu0 0
        %3180 = vmatpush1.bf16.msra.mxu0 %v3158
        %3181 = vmatprep.subr.bf16.mxu0 0
        %3182 = vmatpush2.bf16.msra.mxu0 0
        %3183 = vmatprep.subr.bf16.mxu0 0
        %3184 = vmatpush2.bf16.msra.mxu0 0
        %3185 = vmatprep.subr.bf16.mxu0 0
        %3186 = vmatpush2.bf16.msra.mxu0 0
        %3187 = vmatprep.subr.bf16.mxu0 0
        %3188 = vmatpush2.bf16.msra.mxu0 0
        %3189 = vmatprep.subr.bf16.mxu0 0
        %3190 = vmatpush2.bf16.msra.mxu0 0
        %3191 = vmatprep.subr.bf16.mxu0 0
        %3192 = vmatpush2.bf16.msra.mxu0 0
        %3193 = vmatprep.subr.bf16.mxu0 0
        %3194 = vmatpush2.bf16.msra.mxu0 0
        %3195 = vmatprep.subr.bf16.mxu0 0
        %3196 = vmatpush2.bf16.msra.mxu0 0
        %3197 = vmatprep.mubr.bf16.mxu0 0
        %3198 = vmatmul.mubr.bf16.gmra.mxu0 %v3163
        %v3199 = vpop.f32.mrf.mxu0
        %v3200 = vadd.f32 0.0, %v3199
        %v3201 = vpop.f32.mrf.mxu0
        %v3202 = vpop.f32.mrf.mxu0
        %v3203 = vadd.f32 0.0, %v3202
        %v3204 = vpop.f32.mrf.mxu0
        %3205 = vdwg.mxu0
        %v3206 = vadd.f32 %v3017, %v3078
        %v3207 = vadd.f32 %v3206, %v3139
        %v3208 = vadd.f32 %v3207, %v3200
        %v3209 = vadd.f32 %v3020, %v3081
        %v3210 = vadd.f32 %v3209, %v3142
        %v3211 = vadd.f32 %v3210, %v3203
        %v3212 = vld [vmem:[%s9] sm:$0x1]
        %v3213 = vld [vmem:[%s10] sm:$0x1]
        %3214 = vadd.xlane.f32.xlu0 %v3208
        %v3215 = vpop.xlane.xlu0 %3214
        %3216 = vadd.xlane.f32.xlu0 %v3211
        %v3217 = vpop.xlane.xlu0 %3216
        %v3218 = vmul.f32 %v3215, %v430
        %v3219 = vmul.f32 %v3217, %v430
        %v3220 = vsub.f32 %v3208, %v3218
        %v3221 = vsub.f32 %v3211, %v3219
        %v3222 = vmul.f32 %v3220, %v3220
        %v3223 = vmul.f32 %v3221, %v3221
        %3224 = vadd.xlane.f32.xlu0 %v3222
        %v3225 = vpop.xlane.xlu0 %3224
        %3226 = vadd.xlane.f32.xlu0 %v3223
        %v3227 = vpop.xlane.xlu0 %3226
        %v3228 = vmul.f32 %v3225, %v430
        %v3229 = vmul.f32 %v3227, %v430
        %v3230 = vadd.f32 %v3228, 1e-05
        %v3231 = vadd.f32 %v3229, 1e-05
        %v3232 = vrsqrt.pop %v3230
        %v3233 = vrsqrt.pop %v3231
        %v3234 = vmul.f32 %v3220, %v3232
        %v3235 = vmul.f32 %v3221, %v3233
        %v3237 = vlaneseq
        %v3238 = vshrl.u32 %v3237, 7
        %v3239 = vsub.s32 0, %v3238
        %v3240 = vrot.slane %v3212, %v3239
        %v3242 = vmul.f32 %v3234, %v3240
        %v3243 = vmul.f32 %v3235, %v3240
        %v3245 = vlaneseq
        %v3246 = vshrl.u32 %v3245, 7
        %v3247 = vsub.s32 0, %v3246
        %v3248 = vrot.slane %v3213, %v3247
        %v3250 = vadd.f32 %v3242, %v3248
        %v3251 = vadd.f32 %v3243, %v3248
        %3252 = vst [vmem:[%s398] sm:$0xff] %v3250
        %3253 = vst [vmem:[%s398 + $0x8] sm:$0xff] %v3251
        %s3254 = sand.u32 %s274, 1
        %s3255 = scalar_lea.sflag [#allocation3], %s3254
        %s3256 = sand.u32 %s274, 1
        %s3257 = smul.addr %s3256, 16
        %s3258 = scalar_lea.vmem [#allocation2], %s3257
        // Predicated region
        $region65: #{tpu_custom_call.1} parent=63 // pred_check
          %p3259 = pneg %p284
        $region66: #{tpu_custom_call.1} parent=63 // pred_check_branch
          %3261 = sbr.rel (%p3259) target = $region68
        $region67: #{tpu_custom_call.1} parent=63 // pred_region
          %s3262 = smul.u32 2, %s25
          %s3264 = ssub.s32 256, 256
          %3265 = vsyncadd %s3255, %s3264
          %s3266 = smul.addr %s3262, 128
          %s3267 = scalar_lea.hbm %s11, %s3266
          %s3268 = sshll.u32 %s3258, 4
          %s3269 = int_to_ptr.vmem [resolvable:$true] %s3268
          %3274 = dma.vmem_to_hbm [thread:$0]  %s3269, 256, %s3267, %s3255, 128, 128, 8
        $region68: #{tpu_custom_call.1} parent=63 // pred_fallthru
          _
      $region64: #{tpu_custom_call.1} parent=5 // pred_fallthru
        _
      %p3275 = scmp.le.s32.totalorder 2, %s20
      // Predicated region
      $region69: #{tpu_custom_call.1} parent=5 // pred_check
        %p3276 = pneg %p3275
      $region70: #{tpu_custom_call.1} parent=5 // pred_check_branch
        %3278 = sbr.rel (%p3276) target = $region72
      $region71: #{tpu_custom_call.1} parent=5 // pred_region
        %s3279 = ssub.s32 %s20, 2
        // Predicated region
        $region73: #{tpu_custom_call.1} parent=71 // pred_check
          %p3280 = pneg %p290
        $region74: #{tpu_custom_call.1} parent=71 // pred_check_branch
          %3282 = sbr.rel (%p3280) target = $region76
        $region75: #{tpu_custom_call.1} parent=71 // pred_region
          %s3283 = sand.u32 %s275, 1
          %s3284 = scalar_lea.sflag [#allocation3], %s3283
          %s3285 = sand.u32 %s275, 1
          %s3286 = smul.addr %s3285, 16
          %s3287 = scalar_lea.vmem [#allocation2], %s3286
          %3288 = dma.done %s3284, 256
        $region76: #{tpu_custom_call.1} parent=71 // pred_fallthru
          _
      $region72: #{tpu_custom_call.1} parent=5 // pred_fallthru
        _
    $region6: #{tpu_custom_call.1} parent=1 // loop_footer
      %s24 = sadd.s32 1, %s20
    $region7: #{tpu_custom_call.1} parent=1 // loop_footer_branch
      %19 = sbr.rel target = $region3
    $region8: #{tpu_custom_call.1} parent=1 // loop_exit
      _
    %3289 = vsyncpa [#allocation3], 1
    %s3290 = scalar_lea.sflag [#allocation3], 1
    %3291 = vsyncpa %s3290, 1

</llo_original>
